<compile_context>
chip_gen: v5e
topology: v5e:2x2
jax: 0.10.0
libtpu: 0.0.40
codegen_flags: <defaults>
</compile_context>

<pallas_src>
import functools
import math

import jax
import jax.numpy as jnp
from jax.experimental import pallas as pl
from jax.experimental.pallas import tpu as pltpu

HEADS = 4          # nn.MultiheadAttention(num_heads=4) and CrossAttention(heads=4)
DIM_HEAD_CA = 64   # CrossAttention dim_head
LN_EPS = 1e-5

PARAM_ORDER = [
    'ln1_w', 'ln1_b', 'ln2_w', 'ln2_b', 'ln3_w', 'ln3_b',
    'sa_q_wt', 'sa_q_b', 'sa_k_wt', 'sa_k_b', 'sa_v_wt', 'sa_v_b',
    'sa_out_wt', 'sa_out_b',
    'ca_q_wt', 'ca_k_wt', 'ca_v_wt', 'ca_out_wt', 'ca_out_b',
    'mlp_w1t', 'mlp_b1', 'mlp_w2t', 'mlp_b2',
]

# Matmul RHS operands: pre-cast to bf16 in the wrapper (MXU fast path).
_MATMUL_WEIGHTS = frozenset({
    'sa_q_wt', 'sa_k_wt', 'sa_v_wt', 'sa_out_wt',
    'ca_q_wt', 'ca_k_wt', 'ca_v_wt', 'ca_out_wt',
    'mlp_w1t', 'mlp_w2t',
})


def flowblock_kernel(x_ref, ctx_ref,
                     ln1_w, ln1_b, ln2_w, ln2_b, ln3_w, ln3_b,
                     sa_q_wt, sa_q_b, sa_k_wt, sa_k_b, sa_v_wt, sa_v_b,
                     sa_out_wt, sa_out_b,
                     ca_q_wt, ca_k_wt, ca_v_wt, ca_out_wt, ca_out_b,
                     mlp_w1t, mlp_b1, mlp_w2t, mlp_b2,
                     o_ref,
                     xn1_c, sak_c, sav_c, cak_c, cav_c):
    f32 = jnp.float32
    bf16 = jnp.bfloat16
    TQ, D = o_ref.shape

    t = pl.program_id(1)
    row0 = t * TQ
    if TQ % 8 == 0:
        row0 = pl.multiple_of(row0, 8)

    def layernorm(v, w_r, b_r):
        mu = jnp.mean(v, axis=-1, keepdims=True)
        var = jnp.mean((v - mu) ** 2, axis=-1, keepdims=True)
        return (v - mu) * jax.lax.rsqrt(var + LN_EPS) * w_r[...] + b_r[...]

    def mm(a_bf, w_ref, b_ref=None):
        # bf16 operands (weights pre-cast in the wrapper), f32 accumulation.
        out = jnp.dot(a_bf, w_ref[...], preferred_element_type=f32)
        return out if b_ref is None else out + b_ref[...]

    def heads_major(v2d, heads):
        # (rows, heads*dh) -> (heads, rows, dh)
        rows, inner = v2d.shape
        return jnp.swapaxes(v2d.reshape(rows, heads, inner // heads), 0, 1)

    def attend(q_f32, kh_bf, vh_bf, heads):
        # q: (TQ, inner) f32; kh/vh: (heads, nk, dh) bf16 from the per-batch cache.
        nq, inner = q_f32.shape
        dh = inner // heads
        # fold softmax scale into Q (O(TQ*dh), not O(TQ*nk)); only TQ rows relayout
        qh = heads_major((q_f32 * (dh ** -0.5)).astype(bf16), heads)   # (H, TQ, dh)
        sim = jnp.einsum('hnd,hmd->hnm', qh, kh_bf,
                         preferred_element_type=f32)                   # (H, TQ, nk)
        # TODO(synk): for large sequence/context lengths, tile K/V with an
        # online (flash-style) softmax instead of materializing (H, TQ, nk).
        sim = sim - jnp.max(sim, axis=-1, keepdims=True)
        e = jnp.exp(sim)
        p = (e * pl.reciprocal(jnp.sum(e, axis=-1, keepdims=True),
                               approx=True)).astype(bf16)
        oh = jnp.einsum('hnm,hmd->hnd', p, vh_bf,
                        preferred_element_type=f32)                    # (H, TQ, dh)
        return jnp.swapaxes(oh, 0, 1).reshape(nq, inner)               # concat heads

    # ---- per-batch caches, built once at the first query tile --------------
    @pl.when(t == 0)
    def _build_caches():
        xn_all = layernorm(x_ref[...].astype(f32), ln1_w, ln1_b).astype(bf16)
        xn1_c[...] = xn_all                                            # (N, D)
        sak_c[...] = heads_major(mm(xn_all, sa_k_wt, sa_k_b).astype(bf16), HEADS)
        sav_c[...] = heads_major(mm(xn_all, sa_v_wt, sa_v_b).astype(bf16), HEADS)
        ctx_bf = ctx_ref[...].astype(bf16)
        cak_c[...] = heads_major(mm(ctx_bf, ca_k_wt).astype(bf16), HEADS)
        cav_c[...] = heads_major(mm(ctx_bf, ca_v_wt).astype(bf16), HEADS)

    # residual stream of this query tile, kept in f32
    x_t = x_ref[pl.ds(row0, TQ), :].astype(f32)                        # (TQ, D)

    # ---- self-attention: queries = tile rows, keys/values = cached full seq
    xn_t = xn1_c[pl.ds(row0, TQ), :]                                   # (TQ, D) bf16
    q = mm(xn_t, sa_q_wt, sa_q_b)                                      # (TQ, D) f32
    a_sa = attend(q, sak_c[...], sav_c[...], HEADS)
    x_t = x_t + mm(a_sa.astype(bf16), sa_out_wt, sa_out_b)

    # ---- cross-attention against the cached context K/V (no q/kv biases) ---
    xn2 = layernorm(x_t, ln2_w, ln2_b).astype(bf16)
    qc = mm(xn2, ca_q_wt)                                              # (TQ, inner_ca)
    a_ca = attend(qc, cak_c[...], cav_c[...], HEADS)
    x_t = x_t + mm(a_ca.astype(bf16), ca_out_wt, ca_out_b)

    # ---- MLP (exact-erf GELU for PyTorch nn.GELU parity) -------------------
    xn3 = layernorm(x_t, ln3_w, ln3_b).astype(bf16)
    h1 = mm(xn3, mlp_w1t, mlp_b1)                                      # (TQ, 4D) f32
    g = 0.5 * h1 * (1.0 + jax.lax.erf(h1 * (1.0 / math.sqrt(2.0))))
    # TODO(synk): for large D, stream the 4D hidden dim in chunks
    # (pltpu.emit_pipeline) so mlp_w1t/mlp_w2t need not be fully VMEM-resident.
    x_t = x_t + mm(g.astype(bf16), mlp_w2t, mlp_b2)

    o_ref[...] = x_t.astype(o_ref.dtype)


def _vmem_limit_bytes():
    # Derive the scoped-VMEM budget from the actual chip (64 MiB/TC on v7x,
    # 128 MiB on v5e/v6e) instead of hard-coding; leave ~25% headroom.
    cap = None
    try:
        cap = getattr(pltpu.get_tpu_info(), "vmem_capacity_bytes", None)
    except Exception:
        cap = None
    if not cap:
        cap = 64 * 1024 * 1024   # conservative (v7x-sized) fallback
    return int(cap) * 3 // 4


@functools.lru_cache(maxsize=1)
def _single_buffer_supported():
    # Trace-time capability probe for pl.Buffered(1) — no device execution, so
    # it cannot mask deferred runtime failures (unlike a try/except around the
    # real pallas_call execution).
    if not hasattr(pl, "Buffered"):
        return False
    try:
        def _k(x_r, o_r):
            o_r[...] = x_r[...]
        fn = pl.pallas_call(
            _k,
            out_shape=jax.ShapeDtypeStruct((8, 128), jnp.float32),
            grid=(1,),
            in_specs=[pl.BlockSpec((8, 128), lambda i: (0, 0),
                                   pipeline_mode=pl.Buffered(1))],
            out_specs=pl.BlockSpec((8, 128), lambda i: (0, 0)),
        )
        jax.jit(fn).lower(jax.ShapeDtypeStruct((8, 128), jnp.float32))
        return True
    except Exception:
        return False


def _flow_block_call(x, context, plist, tq, inner_ca):
    B, N, D = x.shape
    _, M, Dc = context.shape
    n_tiles = N // tq
    dh_sa = D // HEADS
    single_w = _single_buffer_supported()

    def weight_spec(shape):
        # Weights are grid-invariant: a single VMEM buffer is enough (the
        # same-index block is never re-fetched either way; this saves VMEM).
        if single_w:
            return pl.BlockSpec(shape, lambda b, t: (0, 0),
                                pipeline_mode=pl.Buffered(1))
        return pl.BlockSpec(shape, lambda b, t: (0, 0))

    in_specs = [
        # full sequence per batch element (self-attn K/V cache needs all rows)
        pl.BlockSpec((None, N, D), lambda b, t: (b, 0, 0)),
        # full context per batch element (cross-attn K/V cache)
        pl.BlockSpec((None, M, Dc), lambda b, t: (b, 0, 0)),
    ] + [weight_spec(p.shape) for p in plist]
    out_spec = pl.BlockSpec((None, tq, D), lambda b, t: (b, t, 0))

    scratch = [
        pltpu.VMEM((N, D), jnp.bfloat16),                          # LN1(x) rows
        pltpu.VMEM((HEADS, N, dh_sa), jnp.bfloat16),               # self-attn K
        pltpu.VMEM((HEADS, N, dh_sa), jnp.bfloat16),               # self-attn V
        pltpu.VMEM((HEADS, M, inner_ca // HEADS), jnp.bfloat16),   # cross-attn K
        pltpu.VMEM((HEADS, M, inner_ca // HEADS), jnp.bfloat16),   # cross-attn V
    ]

    # TODO(synk): if D / inner / 4D are not multiples of 128 the output stores
    # are masked and the MXU contraction is shallow; pad the feature dims at
    # this boundary (keeping LayerNorm statistics over the true D) for
    # lane-dense stores and full MXU utilization.
    return pl.pallas_call(
        flowblock_kernel,
        out_shape=jax.ShapeDtypeStruct((B, N, D), x.dtype),
        grid_spec=pltpu.PrefetchScalarGridSpec(
            num_scalar_prefetch=0,
            grid=(B, n_tiles),
            in_specs=in_specs,
            out_specs=out_spec,
            scratch_shapes=scratch,
        ),
        compiler_params=pltpu.CompilerParams(
            # batch axis parallel (megacore); the tile axis must stay
            # "arbitrary" so the per-batch caches built at t == 0 stay valid.
            dimension_semantics=("parallel", "arbitrary"),
            vmem_limit_bytes=_vmem_limit_bytes(),
        ),
    )(x, context, *plist)


def flow_block(x, context, params, seq_tile=None):
    B, N, D = x.shape
    assert D % HEADS == 0, "model dim must be divisible by the number of heads"
    tq = seq_tile if seq_tile is not None else min(N, 512)
    if N % tq != 0 or (tq != N and tq % 8 != 0):
        tq = N
    inner_ca = params['ca_k_wt'].shape[1]
    plist = [
        params[name].astype(jnp.bfloat16) if name in _MATMUL_WEIGHTS
        else params[name].astype(jnp.float32)
        for name in PARAM_ORDER
    ]
    return _flow_block_call(x, context, plist, tq, inner_ca)


def init_params(key, dim, context_dim, heads=HEADS, dim_head=DIM_HEAD_CA):
    inner = heads * dim_head
    ks = jax.random.split(key, 23)

    def w(k, shape, scale=0.05):
        return jax.random.normal(k, shape, jnp.float32) * scale

    return {
        'ln1_w': 1.0 + w(ks[0], (1, dim), 0.1), 'ln1_b': w(ks[1], (1, dim), 0.05),
        'ln2_w': 1.0 + w(ks[2], (1, dim), 0.1), 'ln2_b': w(ks[3], (1, dim), 0.05),
        'ln3_w': 1.0 + w(ks[4], (1, dim), 0.1), 'ln3_b': w(ks[5], (1, dim), 0.05),
        # self-attn in_proj split into q/k/v (each dim->dim, with bias) + out_proj
        'sa_q_wt': w(ks[6], (dim, dim)),  'sa_q_b': w(ks[7], (1, dim)),
        'sa_k_wt': w(ks[8], (dim, dim)),  'sa_k_b': w(ks[9], (1, dim)),
        'sa_v_wt': w(ks[10], (dim, dim)), 'sa_v_b': w(ks[11], (1, dim)),
        'sa_out_wt': w(ks[12], (dim, dim)), 'sa_out_b': w(ks[13], (1, dim)),
        # cross-attn: to_q (no bias), to_kv split into k/v (no bias), to_out (bias)
        'ca_q_wt': w(ks[14], (dim, inner)),
        'ca_k_wt': w(ks[15], (context_dim, inner)),
        'ca_v_wt': w(ks[16], (context_dim, inner)),
        'ca_out_wt': w(ks[17], (inner, dim)), 'ca_out_b': w(ks[18], (1, dim)),
        # mlp: dim -> 4*dim -> dim (both with bias)
        'mlp_w1t': w(ks[19], (dim, 4 * dim)), 'mlp_b1': w(ks[20], (1, 4 * dim)),
        'mlp_w2t': w(ks[21], (4 * dim, dim)), 'mlp_b2': w(ks[22], (1, dim)),
    }


def flow_block_ref(x, ctx, p, heads=HEADS):
    """Pure-JAX f32 reference mirroring the PyTorch forward."""
    def ln(v, w_, b_):
        mu = jnp.mean(v, -1, keepdims=True)
        var = jnp.mean((v - mu) ** 2, -1, keepdims=True)
        return (v - mu) / jnp.sqrt(var + LN_EPS) * w_[0] + b_[0]

    def attn(q, k, v, nh):
        B, N, Dq = q.shape
        M = k.shape[1]
        dh = Dq // nh
        qh = q.reshape(B, N, nh, dh).transpose(0, 2, 1, 3)
        kh = k.reshape(B, M, nh, dh).transpose(0, 2, 1, 3)
        vh = v.reshape(B, M, nh, dh).transpose(0, 2, 1, 3)
        sim = jnp.einsum('bhnd,bhmd->bhnm', qh, kh) / math.sqrt(dh)
        a = jax.nn.softmax(sim, axis=-1)
        o = jnp.einsum('bhnm,bhmd->bhnd', a, vh)
        return o.transpose(0, 2, 1, 3).reshape(B, N, Dq)

    xn = ln(x, p['ln1_w'], p['ln1_b'])
    q = xn @ p['sa_q_wt'] + p['sa_q_b'][0]
    k = xn @ p['sa_k_wt'] + p['sa_k_b'][0]
    v = xn @ p['sa_v_wt'] + p['sa_v_b'][0]
    x = x + attn(q, k, v, heads) @ p['sa_out_wt'] + p['sa_out_b'][0]

    xn2 = ln(x, p['ln2_w'], p['ln2_b'])
    qc = xn2 @ p['ca_q_wt']
    kc = ctx @ p['ca_k_wt']
    vc = ctx @ p['ca_v_wt']
    x = x + attn(qc, kc, vc, heads) @ p['ca_out_wt'] + p['ca_out_b'][0]

    xn3 = ln(x, p['ln3_w'], p['ln3_b'])
    h1 = xn3 @ p['mlp_w1t'] + p['mlp_b1'][0]
    g = 0.5 * h1 * (1.0 + jax.lax.erf(h1 / math.sqrt(2.0)))
    x = x + g @ p['mlp_w2t'] + p['mlp_b2'][0]
    return x


if __name__ == "__main__":
    B, N, M = 2, 16, 8
    dim, context_dim = 32, 16

    key = jax.random.PRNGKey(0)
    kx, kc, kp = jax.random.split(key, 3)
    x = jax.random.normal(kx, (B, N, dim), jnp.float32)
    context = jax.random.normal(kc, (B, M, context_dim), jnp.float32)
    params = init_params(kp, dim, context_dim)

    # grid = (B=2, N/8=2): exercises the t==0 cache build + reuse at t==1.
    out = flow_block(x, context, params, seq_tile=8)
    out = jax.block_until_ready(out)

    ref = flow_block_ref(x, context, params)
    assert out.shape == (B, N, dim)
    err = jnp.max(jnp.abs(out - ref))
    # bf16 matmul operands + approx softmax reciprocal vs. an all-f32 reference.
    assert jnp.allclose(out, ref, atol=2e-2, rtol=2e-2), f"max abs diff {err}"

    print("KERNEL_OK")
</pallas_src>

<mosaic_0001>
module attributes {stable_mosaic.version = 11 : i64} {
  func.func @flowblock_kernel(%arg0: i32, %arg1: i32, %arg2: memref<1x16x32xf32, #tpu.memory_space<vmem>>, %arg3: memref<1x8x16xf32, #tpu.memory_space<vmem>>, %arg4: memref<1x32xf32, #tpu.memory_space<vmem>>, %arg5: memref<1x32xf32, #tpu.memory_space<vmem>>, %arg6: memref<1x32xf32, #tpu.memory_space<vmem>>, %arg7: memref<1x32xf32, #tpu.memory_space<vmem>>, %arg8: memref<1x32xf32, #tpu.memory_space<vmem>>, %arg9: memref<1x32xf32, #tpu.memory_space<vmem>>, %arg10: memref<32x32xbf16, #tpu.memory_space<vmem>>, %arg11: memref<1x32xf32, #tpu.memory_space<vmem>>, %arg12: memref<32x32xbf16, #tpu.memory_space<vmem>>, %arg13: memref<1x32xf32, #tpu.memory_space<vmem>>, %arg14: memref<32x32xbf16, #tpu.memory_space<vmem>>, %arg15: memref<1x32xf32, #tpu.memory_space<vmem>>, %arg16: memref<32x32xbf16, #tpu.memory_space<vmem>>, %arg17: memref<1x32xf32, #tpu.memory_space<vmem>>, %arg18: memref<32x256xbf16, #tpu.memory_space<vmem>>, %arg19: memref<16x256xbf16, #tpu.memory_space<vmem>>, %arg20: memref<16x256xbf16, #tpu.memory_space<vmem>>, %arg21: memref<256x32xbf16, #tpu.memory_space<vmem>>, %arg22: memref<1x32xf32, #tpu.memory_space<vmem>>, %arg23: memref<32x128xbf16, #tpu.memory_space<vmem>>, %arg24: memref<1x128xf32, #tpu.memory_space<vmem>>, %arg25: memref<128x32xbf16, #tpu.memory_space<vmem>>, %arg26: memref<1x32xf32, #tpu.memory_space<vmem>>, %arg27: memref<1x8x32xf32, #tpu.memory_space<vmem>>, %arg28: memref<16x32xbf16, #tpu.memory_space<vmem>>, %arg29: memref<4x16x8xbf16, #tpu.memory_space<vmem>>, %arg30: memref<4x16x8xbf16, #tpu.memory_space<vmem>>, %arg31: memref<4x8x64xbf16, #tpu.memory_space<vmem>>, %arg32: memref<4x8x64xbf16, #tpu.memory_space<vmem>>) attributes {dimension_semantics = [#tpu.dimension_semantics<parallel>, #tpu.dimension_semantics<arbitrary>], iteration_bounds = array<i64: 2, 2>, scalar_prefetch = 0 : i64, scratch_operands = 5 : i64, tpu.core_type = #tpu.core_type<tc>, window_params = [{transform_indices = @transform_0, window_bounds = array<i64: 1, 16, 32>}, {transform_indices = @transform_1, window_bounds = array<i64: 1, 8, 16>}, {pipeline_mode = #tpu.pipeline_mode<synchronous>, transform_indices = @transform_2, window_bounds = array<i64: 1, 32>}, {pipeline_mode = #tpu.pipeline_mode<synchronous>, transform_indices = @transform_3, window_bounds = array<i64: 1, 32>}, {pipeline_mode = #tpu.pipeline_mode<synchronous>, transform_indices = @transform_4, window_bounds = array<i64: 1, 32>}, {pipeline_mode = #tpu.pipeline_mode<synchronous>, transform_indices = @transform_5, window_bounds = array<i64: 1, 32>}, {pipeline_mode = #tpu.pipeline_mode<synchronous>, transform_indices = @transform_6, window_bounds = array<i64: 1, 32>}, {pipeline_mode = #tpu.pipeline_mode<synchronous>, transform_indices = @transform_7, window_bounds = array<i64: 1, 32>}, {pipeline_mode = #tpu.pipeline_mode<synchronous>, transform_indices = @transform_8, window_bounds = array<i64: 32, 32>}, {pipeline_mode = #tpu.pipeline_mode<synchronous>, transform_indices = @transform_9, window_bounds = array<i64: 1, 32>}, {pipeline_mode = #tpu.pipeline_mode<synchronous>, transform_indices = @transform_10, window_bounds = array<i64: 32, 32>}, {pipeline_mode = #tpu.pipeline_mode<synchronous>, transform_indices = @transform_11, window_bounds = array<i64: 1, 32>}, {pipeline_mode = #tpu.pipeline_mode<synchronous>, transform_indices = @transform_12, window_bounds = array<i64: 32, 32>}, {pipeline_mode = #tpu.pipeline_mode<synchronous>, transform_indices = @transform_13, window_bounds = array<i64: 1, 32>}, {pipeline_mode = #tpu.pipeline_mode<synchronous>, transform_indices = @transform_14, window_bounds = array<i64: 32, 32>}, {pipeline_mode = #tpu.pipeline_mode<synchronous>, transform_indices = @transform_15, window_bounds = array<i64: 1, 32>}, {pipeline_mode = #tpu.pipeline_mode<synchronous>, transform_indices = @transform_16, window_bounds = array<i64: 32, 256>}, {pipeline_mode = #tpu.pipeline_mode<synchronous>, transform_indices = @transform_17, window_bounds = array<i64: 16, 256>}, {pipeline_mode = #tpu.pipeline_mode<synchronous>, transform_indices = @transform_18, window_bounds = array<i64: 16, 256>}, {pipeline_mode = #tpu.pipeline_mode<synchronous>, transform_indices = @transform_19, window_bounds = array<i64: 256, 32>}, {pipeline_mode = #tpu.pipeline_mode<synchronous>, transform_indices = @transform_20, window_bounds = array<i64: 1, 32>}, {pipeline_mode = #tpu.pipeline_mode<synchronous>, transform_indices = @transform_21, window_bounds = array<i64: 32, 128>}, {pipeline_mode = #tpu.pipeline_mode<synchronous>, transform_indices = @transform_22, window_bounds = array<i64: 1, 128>}, {pipeline_mode = #tpu.pipeline_mode<synchronous>, transform_indices = @transform_23, window_bounds = array<i64: 128, 32>}, {pipeline_mode = #tpu.pipeline_mode<synchronous>, transform_indices = @transform_24, window_bounds = array<i64: 1, 32>}, {transform_indices = @transform_25, window_bounds = array<i64: 1, 8, 32>}]} {
    %c8_i32 = arith.constant 8 : i32
    %0 = arith.muli %arg1, %c8_i32 : i32
    %1 = tpu.assume_multiple %0, 8 : i32
    %c0_i32 = arith.constant 0 : i32
    %2 = arith.cmpi eq, %arg1, %c0_i32 : i32
    %3 = arith.extui %2 : i1 to i32
    %c0_i32_0 = arith.constant 0 : i32
    %4 = arith.cmpi ne, %3, %c0_i32_0 : i32
    scf.if %4 {
      %c0_76 = arith.constant 0 : index
      %c0_77 = arith.constant 0 : index
      %c0_78 = arith.constant 0 : index
      %148 = vector.load %arg2[%c0_76, %c0_77, %c0_78] : memref<1x16x32xf32, #tpu.memory_space<vmem>>, vector<1x16x32xf32>
      %149 = vector.shape_cast %148 : vector<1x16x32xf32> to vector<16x32xf32>
      %cst_79 = arith.constant dense<0.000000e+00> : vector<16xf32>
      %150 = vector.multi_reduction <add>, %149, %cst_79 [1] : vector<16x32xf32> to vector<16xf32>
      %151 = vector.shape_cast %150 : vector<16xf32> to vector<16x1xf32>
      %cst_80 = arith.constant 3.200000e+01 : f32
      %152 = vector.broadcast %cst_80 : f32 to vector<16x1xf32>
      %153 = arith.divf %151, %152 : vector<16x1xf32>
      %154 = vector.broadcast %153 : vector<16x1xf32> to vector<16x32xf32>
      %155 = arith.subf %149, %154 : vector<16x32xf32>
      %156 = arith.mulf %155, %155 : vector<16x32xf32>
      %cst_81 = arith.constant dense<0.000000e+00> : vector<16xf32>
      %157 = vector.multi_reduction <add>, %156, %cst_81 [1] : vector<16x32xf32> to vector<16xf32>
      %158 = vector.shape_cast %157 : vector<16xf32> to vector<16x1xf32>
      %cst_82 = arith.constant 3.200000e+01 : f32
      %159 = vector.broadcast %cst_82 : f32 to vector<16x1xf32>
      %160 = arith.divf %158, %159 : vector<16x1xf32>
      %161 = vector.broadcast %153 : vector<16x1xf32> to vector<16x32xf32>
      %162 = arith.subf %149, %161 : vector<16x32xf32>
      %cst_83 = arith.constant 9.99999974E-6 : f32
      %163 = vector.broadcast %cst_83 : f32 to vector<16x1xf32>
      %164 = arith.addf %160, %163 : vector<16x1xf32>
      %165 = math.rsqrt %164 : vector<16x1xf32>
      %166 = vector.broadcast %165 : vector<16x1xf32> to vector<16x32xf32>
      %167 = arith.mulf %162, %166 : vector<16x32xf32>
      %c0_84 = arith.constant 0 : index
      %c0_85 = arith.constant 0 : index
      %168 = vector.load %arg4[%c0_84, %c0_85] : memref<1x32xf32, #tpu.memory_space<vmem>>, vector<1x32xf32>
      %169 = vector.broadcast %168 : vector<1x32xf32> to vector<16x32xf32>
      %170 = arith.mulf %167, %169 : vector<16x32xf32>
      %c0_86 = arith.constant 0 : index
      %c0_87 = arith.constant 0 : index
      %171 = vector.load %arg5[%c0_86, %c0_87] : memref<1x32xf32, #tpu.memory_space<vmem>>, vector<1x32xf32>
      %172 = vector.broadcast %171 : vector<1x32xf32> to vector<16x32xf32>
      %173 = arith.addf %170, %172 : vector<16x32xf32>
      %174 = arith.truncf %173 : vector<16x32xf32> to vector<16x32xbf16>
      %c0_88 = arith.constant 0 : index
      %c0_89 = arith.constant 0 : index
      %175 = vector.load %arg28[%c0_88, %c0_89] : memref<16x32xbf16, #tpu.memory_space<vmem>>, vector<16x32xbf16>
      tpu.vector_store %arg28[%c0_88, %c0_89], %174 {strides = array<i32>} : memref<16x32xbf16, #tpu.memory_space<vmem>>, vector<16x32xbf16>,
      %c0_90 = arith.constant 0 : index
      %c0_91 = arith.constant 0 : index
      %176 = vector.load %arg12[%c0_90, %c0_91] : memref<32x32xbf16, #tpu.memory_space<vmem>>, vector<32x32xbf16>
      %cst_92 = arith.constant dense<0.000000e+00> : vector<16x32xf32>
      %177 = tpu.matmul %174, %176, %cst_92 {dimension_numbers = #tpu.dot_dimension_numbers<[1], [0], [0], [1], [0, 0, 1, 1], [], []>} : vector<16x32xbf16>, vector<32x32xbf16>, vector<16x32xf32> -> vector<16x32xf32>
      %c0_93 = arith.constant 0 : index
      %c0_94 = arith.constant 0 : index
      %178 = vector.load %arg13[%c0_93, %c0_94] : memref<1x32xf32, #tpu.memory_space<vmem>>, vector<1x32xf32>
      %179 = vector.broadcast %178 : vector<1x32xf32> to vector<16x32xf32>
      %180 = arith.addf %177, %179 : vector<16x32xf32>
      %181 = arith.truncf %180 : vector<16x32xf32> to vector<16x32xbf16>
      %182 = vector.shape_cast %181 : vector<16x32xbf16> to vector<16x4x8xbf16>
      %183 = tpu.transpose %182, [1, 0, 2] : vector<16x4x8xbf16> -> vector<4x16x8xbf16>
      %c0_95 = arith.constant 0 : index
      %c0_96 = arith.constant 0 : index
      %c0_97 = arith.constant 0 : index
      %184 = vector.load %arg29[%c0_95, %c0_96, %c0_97] : memref<4x16x8xbf16, #tpu.memory_space<vmem>>, vector<4x16x8xbf16>
      tpu.vector_store %arg29[%c0_95, %c0_96, %c0_97], %183 {strides = array<i32>} : memref<4x16x8xbf16, #tpu.memory_space<vmem>>, vector<4x16x8xbf16>,
      %c0_98 = arith.constant 0 : index
      %c0_99 = arith.constant 0 : index
      %185 = vector.load %arg14[%c0_98, %c0_99] : memref<32x32xbf16, #tpu.memory_space<vmem>>, vector<32x32xbf16>
      %cst_100 = arith.constant dense<0.000000e+00> : vector<16x32xf32>
      %186 = tpu.matmul %174, %185, %cst_100 {dimension_numbers = #tpu.dot_dimension_numbers<[1], [0], [0], [1], [0, 0, 1, 1], [], []>} : vector<16x32xbf16>, vector<32x32xbf16>, vector<16x32xf32> -> vector<16x32xf32>
      %c0_101 = arith.constant 0 : index
      %c0_102 = arith.constant 0 : index
      %187 = vector.load %arg15[%c0_101, %c0_102] : memref<1x32xf32, #tpu.memory_space<vmem>>, vector<1x32xf32>
      %188 = vector.broadcast %187 : vector<1x32xf32> to vector<16x32xf32>
      %189 = arith.addf %186, %188 : vector<16x32xf32>
      %190 = arith.truncf %189 : vector<16x32xf32> to vector<16x32xbf16>
      %191 = vector.shape_cast %190 : vector<16x32xbf16> to vector<16x4x8xbf16>
      %192 = tpu.transpose %191, [1, 0, 2] : vector<16x4x8xbf16> -> vector<4x16x8xbf16>
      %c0_103 = arith.constant 0 : index
      %c0_104 = arith.constant 0 : index
      %c0_105 = arith.constant 0 : index
      %193 = vector.load %arg30[%c0_103, %c0_104, %c0_105] : memref<4x16x8xbf16, #tpu.memory_space<vmem>>, vector<4x16x8xbf16>
      tpu.vector_store %arg30[%c0_103, %c0_104, %c0_105], %192 {strides = array<i32>} : memref<4x16x8xbf16, #tpu.memory_space<vmem>>, vector<4x16x8xbf16>,
      %c0_106 = arith.constant 0 : index
      %c0_107 = arith.constant 0 : index
      %c0_108 = arith.constant 0 : index
      %194 = vector.load %arg3[%c0_106, %c0_107, %c0_108] : memref<1x8x16xf32, #tpu.memory_space<vmem>>, vector<1x8x16xf32>
      %195 = vector.shape_cast %194 : vector<1x8x16xf32> to vector<8x16xf32>
      %196 = arith.truncf %195 : vector<8x16xf32> to vector<8x16xbf16>
      %c0_109 = arith.constant 0 : index
      %c0_110 = arith.constant 0 : index
      %197 = vector.load %arg19[%c0_109, %c0_110] : memref<16x256xbf16, #tpu.memory_space<vmem>>, vector<16x256xbf16>
      %cst_111 = arith.constant dense<0.000000e+00> : vector<8x256xf32>
      %198 = tpu.matmul %196, %197, %cst_111 {dimension_numbers = #tpu.dot_dimension_numbers<[1], [0], [0], [1], [0, 0, 1, 1], [], []>} : vector<8x16xbf16>, vector<16x256xbf16>, vector<8x256xf32> -> vector<8x256xf32>
      %199 = arith.truncf %198 : vector<8x256xf32> to vector<8x256xbf16>
      %200 = vector.shape_cast %199 : vector<8x256xbf16> to vector<8x4x64xbf16>
      %201 = tpu.transpose %200, [1, 0, 2] : vector<8x4x64xbf16> -> vector<4x8x64xbf16>
      %c0_112 = arith.constant 0 : index
      %c0_113 = arith.constant 0 : index
      %c0_114 = arith.constant 0 : index
      %202 = vector.load %arg31[%c0_112, %c0_113, %c0_114] : memref<4x8x64xbf16, #tpu.memory_space<vmem>>, vector<4x8x64xbf16>
      tpu.vector_store %arg31[%c0_112, %c0_113, %c0_114], %201 {strides = array<i32>} : memref<4x8x64xbf16, #tpu.memory_space<vmem>>, vector<4x8x64xbf16>,
      %c0_115 = arith.constant 0 : index
      %c0_116 = arith.constant 0 : index
      %203 = vector.load %arg20[%c0_115, %c0_116] : memref<16x256xbf16, #tpu.memory_space<vmem>>, vector<16x256xbf16>
      %cst_117 = arith.constant dense<0.000000e+00> : vector<8x256xf32>
      %204 = tpu.matmul %196, %203, %cst_117 {dimension_numbers = #tpu.dot_dimension_numbers<[1], [0], [0], [1], [0, 0, 1, 1], [], []>} : vector<8x16xbf16>, vector<16x256xbf16>, vector<8x256xf32> -> vector<8x256xf32>
      %205 = arith.truncf %204 : vector<8x256xf32> to vector<8x256xbf16>
      %206 = vector.shape_cast %205 : vector<8x256xbf16> to vector<8x4x64xbf16>
      %207 = tpu.transpose %206, [1, 0, 2] : vector<8x4x64xbf16> -> vector<4x8x64xbf16>
      %c0_118 = arith.constant 0 : index
      %c0_119 = arith.constant 0 : index
      %c0_120 = arith.constant 0 : index
      %208 = vector.load %arg32[%c0_118, %c0_119, %c0_120] : memref<4x8x64xbf16, #tpu.memory_space<vmem>>, vector<4x8x64xbf16>
      tpu.vector_store %arg32[%c0_118, %c0_119, %c0_120], %207 {strides = array<i32>} : memref<4x8x64xbf16, #tpu.memory_space<vmem>>, vector<4x8x64xbf16>,
    } else {
    }
    %c0 = arith.constant 0 : index
    %5 = arith.index_cast %1 : i32 to index
    %c0_1 = arith.constant 0 : index
    %6 = vector.load %arg2[%c0, %5, %c0_1] : memref<1x16x32xf32, #tpu.memory_space<vmem>>, vector<1x8x32xf32>
    %7 = vector.shape_cast %6 : vector<1x8x32xf32> to vector<8x32xf32>
    %8 = arith.index_cast %1 : i32 to index
    %c0_2 = arith.constant 0 : index
    %9 = vector.load %arg28[%8, %c0_2] : memref<16x32xbf16, #tpu.memory_space<vmem>>, vector<8x32xbf16>
    %c0_3 = arith.constant 0 : index
    %c0_4 = arith.constant 0 : index
    %10 = vector.load %arg10[%c0_3, %c0_4] : memref<32x32xbf16, #tpu.memory_space<vmem>>, vector<32x32xbf16>
    %cst = arith.constant dense<0.000000e+00> : vector<8x32xf32>
    %11 = tpu.matmul %9, %10, %cst {dimension_numbers = #tpu.dot_dimension_numbers<[1], [0], [0], [1], [0, 0, 1, 1], [], []>} : vector<8x32xbf16>, vector<32x32xbf16>, vector<8x32xf32> -> vector<8x32xf32>
    %c0_5 = arith.constant 0 : index
    %c0_6 = arith.constant 0 : index
    %12 = vector.load %arg11[%c0_5, %c0_6] : memref<1x32xf32, #tpu.memory_space<vmem>>, vector<1x32xf32>
    %13 = vector.broadcast %12 : vector<1x32xf32> to vector<8x32xf32>
    %14 = arith.addf %11, %13 : vector<8x32xf32>
    %c0_7 = arith.constant 0 : index
    %c0_8 = arith.constant 0 : index
    %c0_9 = arith.constant 0 : index
    %15 = vector.load %arg29[%c0_7, %c0_8, %c0_9] : memref<4x16x8xbf16, #tpu.memory_space<vmem>>, vector<4x16x8xbf16>
    %c0_10 = arith.constant 0 : index
    %c0_11 = arith.constant 0 : index
    %c0_12 = arith.constant 0 : index
    %16 = vector.load %arg30[%c0_10, %c0_11, %c0_12] : memref<4x16x8xbf16, #tpu.memory_space<vmem>>, vector<4x16x8xbf16>
    %cst_13 = arith.constant 0.353553385 : f32
    %17 = vector.broadcast %cst_13 : f32 to vector<8x32xf32>
    %18 = arith.mulf %14, %17 : vector<8x32xf32>
    %19 = arith.truncf %18 : vector<8x32xf32> to vector<8x32xbf16>
    %20 = vector.shape_cast %19 : vector<8x32xbf16> to vector<8x4x8xbf16>
    %21 = tpu.transpose %20, [1, 0, 2] : vector<8x4x8xbf16> -> vector<4x8x8xbf16>
    "tpu.trace_start"() <{level = 10 : i32, message = "hnd,hmd->hnm"}> : () -> ()
    %cst_14 = arith.constant dense<0.000000e+00> : vector<4x8x16xf32>
    %22 = tpu.matmul %21, %15, %cst_14 {dimension_numbers = #tpu.dot_dimension_numbers<[2], [2], [1], [1], [0, 0, 0, 1, 1, 1], [0], [0]>} : vector<4x8x8xbf16>, vector<4x16x8xbf16>, vector<4x8x16xf32> -> vector<4x8x16xf32>
    "tpu.trace_stop"() : () -> ()
    %cst_15 = arith.constant dense<0xFF800000> : vector<4x8xf32>
    %23 = vector.multi_reduction <maximumf>, %22, %cst_15 [2] : vector<4x8x16xf32> to vector<4x8xf32>
    %24 = vector.shape_cast %23 : vector<4x8xf32> to vector<4x8x1xf32>
    %25 = vector.broadcast %24 : vector<4x8x1xf32> to vector<4x8x16xf32>
    %26 = arith.subf %22, %25 : vector<4x8x16xf32>
    %27 = math.exp %26 : vector<4x8x16xf32>
    %cst_16 = arith.constant dense<0.000000e+00> : vector<4x8xf32>
    %28 = vector.multi_reduction <add>, %27, %cst_16 [2] : vector<4x8x16xf32> to vector<4x8xf32>
    %29 = vector.shape_cast %28 : vector<4x8xf32> to vector<4x8x1xf32>
    %30 = tpu.reciprocal %29 {approx = true} : vector<4x8x1xf32> -> vector<4x8x1xf32>
    %31 = vector.broadcast %30 : vector<4x8x1xf32> to vector<4x8x16xf32>
    %32 = arith.mulf %27, %31 : vector<4x8x16xf32>
    %33 = arith.truncf %32 : vector<4x8x16xf32> to vector<4x8x16xbf16>
    "tpu.trace_start"() <{level = 10 : i32, message = "hnm,hmd->hnd"}> : () -> ()
    %cst_17 = arith.constant dense<0.000000e+00> : vector<4x8x8xf32>
    %34 = tpu.matmul %33, %16, %cst_17 {dimension_numbers = #tpu.dot_dimension_numbers<[2], [1], [1], [2], [0, 0, 0, 1, 1, 2], [0], [0]>} : vector<4x8x16xbf16>, vector<4x16x8xbf16>, vector<4x8x8xf32> -> vector<4x8x8xf32>
    "tpu.trace_stop"() : () -> ()
    %35 = tpu.transpose %34, [1, 0, 2] : vector<4x8x8xf32> -> vector<8x4x8xf32>
    %36 = vector.shape_cast %35 : vector<8x4x8xf32> to vector<8x32xf32>
    %37 = arith.truncf %36 : vector<8x32xf32> to vector<8x32xbf16>
    %c0_18 = arith.constant 0 : index
    %c0_19 = arith.constant 0 : index
    %38 = vector.load %arg16[%c0_18, %c0_19] : memref<32x32xbf16, #tpu.memory_space<vmem>>, vector<32x32xbf16>
    %cst_20 = arith.constant dense<0.000000e+00> : vector<8x32xf32>
    %39 = tpu.matmul %37, %38, %cst_20 {dimension_numbers = #tpu.dot_dimension_numbers<[1], [0], [0], [1], [0, 0, 1, 1], [], []>} : vector<8x32xbf16>, vector<32x32xbf16>, vector<8x32xf32> -> vector<8x32xf32>
    %c0_21 = arith.constant 0 : index
    %c0_22 = arith.constant 0 : index
    %40 = vector.load %arg17[%c0_21, %c0_22] : memref<1x32xf32, #tpu.memory_space<vmem>>, vector<1x32xf32>
    %41 = vector.broadcast %40 : vector<1x32xf32> to vector<8x32xf32>
    %42 = arith.addf %39, %41 : vector<8x32xf32>
    %43 = arith.addf %7, %42 : vector<8x32xf32>
    %cst_23 = arith.constant dense<0.000000e+00> : vector<8xf32>
    %44 = vector.multi_reduction <add>, %43, %cst_23 [1] : vector<8x32xf32> to vector<8xf32>
    %45 = vector.shape_cast %44 : vector<8xf32> to vector<8x1xf32>
    %cst_24 = arith.constant 3.200000e+01 : f32
    %46 = vector.broadcast %cst_24 : f32 to vector<8x1xf32>
    %47 = arith.divf %45, %46 : vector<8x1xf32>
    %48 = vector.broadcast %47 : vector<8x1xf32> to vector<8x32xf32>
    %49 = arith.subf %43, %48 : vector<8x32xf32>
    %50 = arith.mulf %49, %49 : vector<8x32xf32>
    %cst_25 = arith.constant dense<0.000000e+00> : vector<8xf32>
    %51 = vector.multi_reduction <add>, %50, %cst_25 [1] : vector<8x32xf32> to vector<8xf32>
    %52 = vector.shape_cast %51 : vector<8xf32> to vector<8x1xf32>
    %cst_26 = arith.constant 3.200000e+01 : f32
    %53 = vector.broadcast %cst_26 : f32 to vector<8x1xf32>
    %54 = arith.divf %52, %53 : vector<8x1xf32>
    %55 = vector.broadcast %47 : vector<8x1xf32> to vector<8x32xf32>
    %56 = arith.subf %43, %55 : vector<8x32xf32>
    %cst_27 = arith.constant 9.99999974E-6 : f32
    %57 = vector.broadcast %cst_27 : f32 to vector<8x1xf32>
    %58 = arith.addf %54, %57 : vector<8x1xf32>
    %59 = math.rsqrt %58 : vector<8x1xf32>
    %60 = vector.broadcast %59 : vector<8x1xf32> to vector<8x32xf32>
    %61 = arith.mulf %56, %60 : vector<8x32xf32>
    %c0_28 = arith.constant 0 : index
    %c0_29 = arith.constant 0 : index
    %62 = vector.load %arg6[%c0_28, %c0_29] : memref<1x32xf32, #tpu.memory_space<vmem>>, vector<1x32xf32>
    %63 = vector.broadcast %62 : vector<1x32xf32> to vector<8x32xf32>
    %64 = arith.mulf %61, %63 : vector<8x32xf32>
    %c0_30 = arith.constant 0 : index
    %c0_31 = arith.constant 0 : index
    %65 = vector.load %arg7[%c0_30, %c0_31] : memref<1x32xf32, #tpu.memory_space<vmem>>, vector<1x32xf32>
    %66 = vector.broadcast %65 : vector<1x32xf32> to vector<8x32xf32>
    %67 = arith.addf %64, %66 : vector<8x32xf32>
    %68 = arith.truncf %67 : vector<8x32xf32> to vector<8x32xbf16>
    %c0_32 = arith.constant 0 : index
    %c0_33 = arith.constant 0 : index
    %69 = vector.load %arg18[%c0_32, %c0_33] : memref<32x256xbf16, #tpu.memory_space<vmem>>, vector<32x256xbf16>
    %cst_34 = arith.constant dense<0.000000e+00> : vector<8x256xf32>
    %70 = tpu.matmul %68, %69, %cst_34 {dimension_numbers = #tpu.dot_dimension_numbers<[1], [0], [0], [1], [0, 0, 1, 1], [], []>} : vector<8x32xbf16>, vector<32x256xbf16>, vector<8x256xf32> -> vector<8x256xf32>
    %c0_35 = arith.constant 0 : index
    %c0_36 = arith.constant 0 : index
    %c0_37 = arith.constant 0 : index
    %71 = vector.load %arg31[%c0_35, %c0_36, %c0_37] : memref<4x8x64xbf16, #tpu.memory_space<vmem>>, vector<4x8x64xbf16>
    %c0_38 = arith.constant 0 : index
    %c0_39 = arith.constant 0 : index
    %c0_40 = arith.constant 0 : index
    %72 = vector.load %arg32[%c0_38, %c0_39, %c0_40] : memref<4x8x64xbf16, #tpu.memory_space<vmem>>, vector<4x8x64xbf16>
    %cst_41 = arith.constant 1.250000e-01 : f32
    %73 = vector.broadcast %cst_41 : f32 to vector<8x256xf32>
    %74 = arith.mulf %70, %73 : vector<8x256xf32>
    %75 = arith.truncf %74 : vector<8x256xf32> to vector<8x256xbf16>
    %76 = vector.shape_cast %75 : vector<8x256xbf16> to vector<8x4x64xbf16>
    %77 = tpu.transpose %76, [1, 0, 2] : vector<8x4x64xbf16> -> vector<4x8x64xbf16>
    "tpu.trace_start"() <{level = 10 : i32, message = "hnd,hmd->hnm"}> : () -> ()
    %cst_42 = arith.constant dense<0.000000e+00> : vector<4x8x8xf32>
    %78 = tpu.matmul %77, %71, %cst_42 {dimension_numbers = #tpu.dot_dimension_numbers<[2], [2], [1], [1], [0, 0, 0, 1, 1, 1], [0], [0]>} : vector<4x8x64xbf16>, vector<4x8x64xbf16>, vector<4x8x8xf32> -> vector<4x8x8xf32>
    "tpu.trace_stop"() : () -> ()
    %cst_43 = arith.constant dense<0xFF800000> : vector<4x8xf32>
    %79 = vector.multi_reduction <maximumf>, %78, %cst_43 [2] : vector<4x8x8xf32> to vector<4x8xf32>
    %80 = vector.shape_cast %79 : vector<4x8xf32> to vector<4x8x1xf32>
    %81 = vector.broadcast %80 : vector<4x8x1xf32> to vector<4x8x8xf32>
    %82 = arith.subf %78, %81 : vector<4x8x8xf32>
    %83 = math.exp %82 : vector<4x8x8xf32>
    %cst_44 = arith.constant dense<0.000000e+00> : vector<4x8xf32>
    %84 = vector.multi_reduction <add>, %83, %cst_44 [2] : vector<4x8x8xf32> to vector<4x8xf32>
    %85 = vector.shape_cast %84 : vector<4x8xf32> to vector<4x8x1xf32>
    %86 = tpu.reciprocal %85 {approx = true} : vector<4x8x1xf32> -> vector<4x8x1xf32>
    %87 = vector.broadcast %86 : vector<4x8x1xf32> to vector<4x8x8xf32>
    %88 = arith.mulf %83, %87 : vector<4x8x8xf32>
    %89 = arith.truncf %88 : vector<4x8x8xf32> to vector<4x8x8xbf16>
    "tpu.trace_start"() <{level = 10 : i32, message = "hnm,hmd->hnd"}> : () -> ()
    %cst_45 = arith.constant dense<0.000000e+00> : vector<4x8x64xf32>
    %90 = tpu.matmul %89, %72, %cst_45 {dimension_numbers = #tpu.dot_dimension_numbers<[2], [1], [1], [2], [0, 0, 0, 1, 1, 2], [0], [0]>} : vector<4x8x8xbf16>, vector<4x8x64xbf16>, vector<4x8x64xf32> -> vector<4x8x64xf32>
    "tpu.trace_stop"() : () -> ()
    %91 = tpu.transpose %90, [1, 0, 2] : vector<4x8x64xf32> -> vector<8x4x64xf32>
    %92 = vector.shape_cast %91 : vector<8x4x64xf32> to vector<8x256xf32>
    %93 = arith.truncf %92 : vector<8x256xf32> to vector<8x256xbf16>
    %c0_46 = arith.constant 0 : index
    %c0_47 = arith.constant 0 : index
    %94 = vector.load %arg21[%c0_46, %c0_47] : memref<256x32xbf16, #tpu.memory_space<vmem>>, vector<256x32xbf16>
    %cst_48 = arith.constant dense<0.000000e+00> : vector<8x32xf32>
    %95 = tpu.matmul %93, %94, %cst_48 {dimension_numbers = #tpu.dot_dimension_numbers<[1], [0], [0], [1], [0, 0, 1, 1], [], []>} : vector<8x256xbf16>, vector<256x32xbf16>, vector<8x32xf32> -> vector<8x32xf32>
    %c0_49 = arith.constant 0 : index
    %c0_50 = arith.constant 0 : index
    %96 = vector.load %arg22[%c0_49, %c0_50] : memref<1x32xf32, #tpu.memory_space<vmem>>, vector<1x32xf32>
    %97 = vector.broadcast %96 : vector<1x32xf32> to vector<8x32xf32>
    %98 = arith.addf %95, %97 : vector<8x32xf32>
    %99 = arith.addf %43, %98 : vector<8x32xf32>
    %cst_51 = arith.constant dense<0.000000e+00> : vector<8xf32>
    %100 = vector.multi_reduction <add>, %99, %cst_51 [1] : vector<8x32xf32> to vector<8xf32>
    %101 = vector.shape_cast %100 : vector<8xf32> to vector<8x1xf32>
    %cst_52 = arith.constant 3.200000e+01 : f32
    %102 = vector.broadcast %cst_52 : f32 to vector<8x1xf32>
    %103 = arith.divf %101, %102 : vector<8x1xf32>
    %104 = vector.broadcast %103 : vector<8x1xf32> to vector<8x32xf32>
    %105 = arith.subf %99, %104 : vector<8x32xf32>
    %106 = arith.mulf %105, %105 : vector<8x32xf32>
    %cst_53 = arith.constant dense<0.000000e+00> : vector<8xf32>
    %107 = vector.multi_reduction <add>, %106, %cst_53 [1] : vector<8x32xf32> to vector<8xf32>
    %108 = vector.shape_cast %107 : vector<8xf32> to vector<8x1xf32>
    %cst_54 = arith.constant 3.200000e+01 : f32
    %109 = vector.broadcast %cst_54 : f32 to vector<8x1xf32>
    %110 = arith.divf %108, %109 : vector<8x1xf32>
    %111 = vector.broadcast %103 : vector<8x1xf32> to vector<8x32xf32>
    %112 = arith.subf %99, %111 : vector<8x32xf32>
    %cst_55 = arith.constant 9.99999974E-6 : f32
    %113 = vector.broadcast %cst_55 : f32 to vector<8x1xf32>
    %114 = arith.addf %110, %113 : vector<8x1xf32>
    %115 = math.rsqrt %114 : vector<8x1xf32>
    %116 = vector.broadcast %115 : vector<8x1xf32> to vector<8x32xf32>
    %117 = arith.mulf %112, %116 : vector<8x32xf32>
    %c0_56 = arith.constant 0 : index
    %c0_57 = arith.constant 0 : index
    %118 = vector.load %arg8[%c0_56, %c0_57] : memref<1x32xf32, #tpu.memory_space<vmem>>, vector<1x32xf32>
    %119 = vector.broadcast %118 : vector<1x32xf32> to vector<8x32xf32>
    %120 = arith.mulf %117, %119 : vector<8x32xf32>
    %c0_58 = arith.constant 0 : index
    %c0_59 = arith.constant 0 : index
    %121 = vector.load %arg9[%c0_58, %c0_59] : memref<1x32xf32, #tpu.memory_space<vmem>>, vector<1x32xf32>
    %122 = vector.broadcast %121 : vector<1x32xf32> to vector<8x32xf32>
    %123 = arith.addf %120, %122 : vector<8x32xf32>
    %124 = arith.truncf %123 : vector<8x32xf32> to vector<8x32xbf16>
    %c0_60 = arith.constant 0 : index
    %c0_61 = arith.constant 0 : index
    %125 = vector.load %arg23[%c0_60, %c0_61] : memref<32x128xbf16, #tpu.memory_space<vmem>>, vector<32x128xbf16>
    %cst_62 = arith.constant dense<0.000000e+00> : vector<8x128xf32>
    %126 = tpu.matmul %124, %125, %cst_62 {dimension_numbers = #tpu.dot_dimension_numbers<[1], [0], [0], [1], [0, 0, 1, 1], [], []>} : vector<8x32xbf16>, vector<32x128xbf16>, vector<8x128xf32> -> vector<8x128xf32>
    %c0_63 = arith.constant 0 : index
    %c0_64 = arith.constant 0 : index
    %127 = vector.load %arg24[%c0_63, %c0_64] : memref<1x128xf32, #tpu.memory_space<vmem>>, vector<1x128xf32>
    %128 = vector.broadcast %127 : vector<1x128xf32> to vector<8x128xf32>
    %129 = arith.addf %126, %128 : vector<8x128xf32>
    %cst_65 = arith.constant 5.000000e-01 : f32
    %130 = vector.broadcast %cst_65 : f32 to vector<8x128xf32>
    %131 = arith.mulf %130, %129 : vector<8x128xf32>
    %cst_66 = arith.constant 0.707106769 : f32
    %132 = vector.broadcast %cst_66 : f32 to vector<8x128xf32>
    %133 = arith.mulf %129, %132 : vector<8x128xf32>
    %134 = math.erf %133 : vector<8x128xf32>
    %cst_67 = arith.constant 1.000000e+00 : f32
    %135 = vector.broadcast %cst_67 : f32 to vector<8x128xf32>
    %136 = arith.addf %135, %134 : vector<8x128xf32>
    %137 = arith.mulf %131, %136 : vector<8x128xf32>
    %138 = arith.truncf %137 : vector<8x128xf32> to vector<8x128xbf16>
    %c0_68 = arith.constant 0 : index
    %c0_69 = arith.constant 0 : index
    %139 = vector.load %arg25[%c0_68, %c0_69] : memref<128x32xbf16, #tpu.memory_space<vmem>>, vector<128x32xbf16>
    %cst_70 = arith.constant dense<0.000000e+00> : vector<8x32xf32>
    %140 = tpu.matmul %138, %139, %cst_70 {dimension_numbers = #tpu.dot_dimension_numbers<[1], [0], [0], [1], [0, 0, 1, 1], [], []>} : vector<8x128xbf16>, vector<128x32xbf16>, vector<8x32xf32> -> vector<8x32xf32>
    %c0_71 = arith.constant 0 : index
    %c0_72 = arith.constant 0 : index
    %141 = vector.load %arg26[%c0_71, %c0_72] : memref<1x32xf32, #tpu.memory_space<vmem>>, vector<1x32xf32>
    %142 = vector.broadcast %141 : vector<1x32xf32> to vector<8x32xf32>
    %143 = arith.addf %140, %142 : vector<8x32xf32>
    %144 = arith.addf %99, %143 : vector<8x32xf32>
    %c0_73 = arith.constant 0 : index
    %c0_74 = arith.constant 0 : index
    %c0_75 = arith.constant 0 : index
    %145 = vector.load %arg27[%c0_73, %c0_74, %c0_75] : memref<1x8x32xf32, #tpu.memory_space<vmem>>, vector<1x8x32xf32>
    %146 = vector.shape_cast %145 : vector<1x8x32xf32> to vector<8x32xf32>
    %147 = vector.shape_cast %144 : vector<8x32xf32> to vector<1x8x32xf32>
    tpu.vector_store %arg27[%c0_73, %c0_74, %c0_75], %147 {strides = array<i32>} : memref<1x8x32xf32, #tpu.memory_space<vmem>>, vector<1x8x32xf32>,
    return
  }
  func.func @transform_0(%arg0: i32, %arg1: i32) -> (i32, i32, i32) {
    %c0_i32 = arith.constant 0 : i32
    %c0_i32_0 = arith.constant 0 : i32
    %c0_i32_1 = arith.constant 0 : i32
    return %arg0, %c0_i32, %c0_i32_0 : i32, i32, i32
  }
  func.func @transform_1(%arg0: i32, %arg1: i32) -> (i32, i32, i32) {
    %c0_i32 = arith.constant 0 : i32
    %c0_i32_0 = arith.constant 0 : i32
    %c0_i32_1 = arith.constant 0 : i32
    return %arg0, %c0_i32, %c0_i32_0 : i32, i32, i32
  }
  func.func @transform_2(%arg0: i32, %arg1: i32) -> (i32, i32) {
    %c0_i32 = arith.constant 0 : i32
    %c0_i32_0 = arith.constant 0 : i32
    %c0_i32_1 = arith.constant 0 : i32
    return %c0_i32, %c0_i32_0 : i32, i32
  }
  func.func @transform_3(%arg0: i32, %arg1: i32) -> (i32, i32) {
    %c0_i32 = arith.constant 0 : i32
    %c0_i32_0 = arith.constant 0 : i32
    %c0_i32_1 = arith.constant 0 : i32
    return %c0_i32, %c0_i32_0 : i32, i32
  }
  func.func @transform_4(%arg0: i32, %arg1: i32) -> (i32, i32) {
    %c0_i32 = arith.constant 0 : i32
    %c0_i32_0 = arith.constant 0 : i32
    %c0_i32_1 = arith.constant 0 : i32
    return %c0_i32, %c0_i32_0 : i32, i32
  }
  func.func @transform_5(%arg0: i32, %arg1: i32) -> (i32, i32) {
    %c0_i32 = arith.constant 0 : i32
    %c0_i32_0 = arith.constant 0 : i32
    %c0_i32_1 = arith.constant 0 : i32
    return %c0_i32, %c0_i32_0 : i32, i32
  }
  func.func @transform_6(%arg0: i32, %arg1: i32) -> (i32, i32) {
    %c0_i32 = arith.constant 0 : i32
    %c0_i32_0 = arith.constant 0 : i32
    %c0_i32_1 = arith.constant 0 : i32
    return %c0_i32, %c0_i32_0 : i32, i32
  }
  func.func @transform_7(%arg0: i32, %arg1: i32) -> (i32, i32) {
    %c0_i32 = arith.constant 0 : i32
    %c0_i32_0 = arith.constant 0 : i32
    %c0_i32_1 = arith.constant 0 : i32
    return %c0_i32, %c0_i32_0 : i32, i32
  }
  func.func @transform_8(%arg0: i32, %arg1: i32) -> (i32, i32) {
    %c0_i32 = arith.constant 0 : i32
    %c0_i32_0 = arith.constant 0 : i32
    %c0_i32_1 = arith.constant 0 : i32
    return %c0_i32, %c0_i32_0 : i32, i32
  }
  func.func @transform_9(%arg0: i32, %arg1: i32) -> (i32, i32) {
    %c0_i32 = arith.constant 0 : i32
    %c0_i32_0 = arith.constant 0 : i32
    %c0_i32_1 = arith.constant 0 : i32
    return %c0_i32, %c0_i32_0 : i32, i32
  }
  func.func @transform_10(%arg0: i32, %arg1: i32) -> (i32, i32) {
    %c0_i32 = arith.constant 0 : i32
    %c0_i32_0 = arith.constant 0 : i32
    %c0_i32_1 = arith.constant 0 : i32
    return %c0_i32, %c0_i32_0 : i32, i32
  }
  func.func @transform_11(%arg0: i32, %arg1: i32) -> (i32, i32) {
    %c0_i32 = arith.constant 0 : i32
    %c0_i32_0 = arith.constant 0 : i32
    %c0_i32_1 = arith.constant 0 : i32
    return %c0_i32, %c0_i32_0 : i32, i32
  }
  func.func @transform_12(%arg0: i32, %arg1: i32) -> (i32, i32) {
    %c0_i32 = arith.constant 0 : i32
    %c0_i32_0 = arith.constant 0 : i32
    %c0_i32_1 = arith.constant 0 : i32
    return %c0_i32, %c0_i32_0 : i32, i32
  }
  func.func @transform_13(%arg0: i32, %arg1: i32) -> (i32, i32) {
    %c0_i32 = arith.constant 0 : i32
    %c0_i32_0 = arith.constant 0 : i32
    %c0_i32_1 = arith.constant 0 : i32
    return %c0_i32, %c0_i32_0 : i32, i32
  }
  func.func @transform_14(%arg0: i32, %arg1: i32) -> (i32, i32) {
    %c0_i32 = arith.constant 0 : i32
    %c0_i32_0 = arith.constant 0 : i32
    %c0_i32_1 = arith.constant 0 : i32
    return %c0_i32, %c0_i32_0 : i32, i32
  }
  func.func @transform_15(%arg0: i32, %arg1: i32) -> (i32, i32) {
    %c0_i32 = arith.constant 0 : i32
    %c0_i32_0 = arith.constant 0 : i32
    %c0_i32_1 = arith.constant 0 : i32
    return %c0_i32, %c0_i32_0 : i32, i32
  }
  func.func @transform_16(%arg0: i32, %arg1: i32) -> (i32, i32) {
    %c0_i32 = arith.constant 0 : i32
    %c0_i32_0 = arith.constant 0 : i32
    %c0_i32_1 = arith.constant 0 : i32
    return %c0_i32, %c0_i32_0 : i32, i32
  }
  func.func @transform_17(%arg0: i32, %arg1: i32) -> (i32, i32) {
    %c0_i32 = arith.constant 0 : i32
    %c0_i32_0 = arith.constant 0 : i32
    %c0_i32_1 = arith.constant 0 : i32
    return %c0_i32, %c0_i32_0 : i32, i32
  }
  func.func @transform_18(%arg0: i32, %arg1: i32) -> (i32, i32) {
    %c0_i32 = arith.constant 0 : i32
    %c0_i32_0 = arith.constant 0 : i32
    %c0_i32_1 = arith.constant 0 : i32
    return %c0_i32, %c0_i32_0 : i32, i32
  }
  func.func @transform_19(%arg0: i32, %arg1: i32) -> (i32, i32) {
    %c0_i32 = arith.constant 0 : i32
    %c0_i32_0 = arith.constant 0 : i32
    %c0_i32_1 = arith.constant 0 : i32
    return %c0_i32, %c0_i32_0 : i32, i32
  }
  func.func @transform_20(%arg0: i32, %arg1: i32) -> (i32, i32) {
    %c0_i32 = arith.constant 0 : i32
    %c0_i32_0 = arith.constant 0 : i32
    %c0_i32_1 = arith.constant 0 : i32
    return %c0_i32, %c0_i32_0 : i32, i32
  }
  func.func @transform_21(%arg0: i32, %arg1: i32) -> (i32, i32) {
    %c0_i32 = arith.constant 0 : i32
    %c0_i32_0 = arith.constant 0 : i32
    %c0_i32_1 = arith.constant 0 : i32
    return %c0_i32, %c0_i32_0 : i32, i32
  }
  func.func @transform_22(%arg0: i32, %arg1: i32) -> (i32, i32) {
    %c0_i32 = arith.constant 0 : i32
    %c0_i32_0 = arith.constant 0 : i32
    %c0_i32_1 = arith.constant 0 : i32
    return %c0_i32, %c0_i32_0 : i32, i32
  }
  func.func @transform_23(%arg0: i32, %arg1: i32) -> (i32, i32) {
    %c0_i32 = arith.constant 0 : i32
    %c0_i32_0 = arith.constant 0 : i32
    %c0_i32_1 = arith.constant 0 : i32
    return %c0_i32, %c0_i32_0 : i32, i32
  }
  func.func @transform_24(%arg0: i32, %arg1: i32) -> (i32, i32) {
    %c0_i32 = arith.constant 0 : i32
    %c0_i32_0 = arith.constant 0 : i32
    %c0_i32_1 = arith.constant 0 : i32
    return %c0_i32, %c0_i32_0 : i32, i32
  }
  func.func @transform_25(%arg0: i32, %arg1: i32) -> (i32, i32, i32) {
    %c0_i32 = arith.constant 0 : i32
    %c0_i32_0 = arith.constant 0 : i32
    return %arg0, %arg1, %c0_i32 : i32, i32, i32
  }
}

</mosaic_0001>

<llo_original>
// kernel: tpu_custom_call.1
$region0: #{tpu_custom_call.1}
  #allocation0 [shape = 'u32[]', space=smem, size = 0x4, offset = 0x4, fixed_abs, tag = 'smem constant byte address 0x4 - core index']
  #allocation1 [shape = 'u32[72,128]{1,0:T(1,128)}', space=vmem, size = 0x9000, scoped, tag = 'internal scratch']
  #allocation2 [shape = 'bf16[16,32]{1,0:T(8,128)(2,1)}', space=vmem, size = 0x1000, scoped, tag = 'scratch operand']
  #allocation3 [shape = 'bf16[4,16,8]{2,1,0:T(8,128)(2,1)}', space=vmem, size = 0x4000, scoped, tag = 'scratch operand']
  #allocation4 [shape = 'bf16[4,16,8]{2,1,0:T(8,128)(2,1)}', space=vmem, size = 0x4000, scoped, tag = 'scratch operand']
  #allocation5 [shape = 'bf16[4,8,64]{2,1,0:T(8,128)(2,1)}', space=vmem, size = 0x2000, scoped, tag = 'scratch operand']
  #allocation6 [shape = 'bf16[4,8,64]{2,1,0:T(8,128)(2,1)}', space=vmem, size = 0x2000, scoped, tag = 'scratch operand']
  %s0 = inlined_call_operand.vmem [shape: f32[2,16,32], index: 0, kind: input, shape index: {}]
  %s1 = inlined_call_operand.vmem [shape: f32[2,8,16], index: 1, kind: input, shape index: {}]
  %s2 = inlined_call_operand.vmem [shape: f32[1,32], index: 2, kind: input, shape index: {}]
  %s3 = inlined_call_operand.vmem [shape: f32[1,32], index: 3, kind: input, shape index: {}]
  %s4 = inlined_call_operand.vmem [shape: f32[1,32], index: 4, kind: input, shape index: {}]
  %s5 = inlined_call_operand.vmem [shape: f32[1,32], index: 5, kind: input, shape index: {}]
  %s6 = inlined_call_operand.vmem [shape: f32[1,32], index: 6, kind: input, shape index: {}]
  %s7 = inlined_call_operand.vmem [shape: f32[1,32], index: 7, kind: input, shape index: {}]
  %s8 = inlined_call_operand.vmem [shape: bf16[32,32], index: 8, kind: input, shape index: {}]
  %s9 = inlined_call_operand.vmem [shape: f32[1,32], index: 9, kind: input, shape index: {}]
  %s10 = inlined_call_operand.vmem [shape: bf16[32,32], index: 10, kind: input, shape index: {}]
  %s11 = inlined_call_operand.vmem [shape: f32[1,32], index: 11, kind: input, shape index: {}]
  %s12 = inlined_call_operand.vmem [shape: bf16[32,32], index: 12, kind: input, shape index: {}]
  %s13 = inlined_call_operand.vmem [shape: f32[1,32], index: 13, kind: input, shape index: {}]
  %s14 = inlined_call_operand.vmem [shape: bf16[32,32], index: 14, kind: input, shape index: {}]
  %s15 = inlined_call_operand.vmem [shape: f32[1,32], index: 15, kind: input, shape index: {}]
  %s16 = inlined_call_operand.vmem [shape: bf16[32,256], index: 16, kind: input, shape index: {}]
  %s17 = inlined_call_operand.vmem [shape: bf16[16,256], index: 17, kind: input, shape index: {}]
  %s18 = inlined_call_operand.vmem [shape: bf16[16,256], index: 18, kind: input, shape index: {}]
  %s19 = inlined_call_operand.vmem [shape: bf16[256,32], index: 19, kind: input, shape index: {}]
  %s20 = inlined_call_operand.vmem [shape: f32[1,32], index: 20, kind: input, shape index: {}]
  %s21 = inlined_call_operand.vmem [shape: bf16[32,128], index: 21, kind: input, shape index: {}]
  %s22 = inlined_call_operand.vmem [shape: f32[1,128], index: 22, kind: input, shape index: {}]
  %s23 = inlined_call_operand.vmem [shape: bf16[128,32], index: 23, kind: input, shape index: {}]
  %s24 = inlined_call_operand.vmem [shape: f32[1,32], index: 24, kind: input, shape index: {}]
  %s25 = inlined_call_operand.hbm [shape: f32[2,16,32], index: 25, kind: output, shape index: {}]
  %s26 = sld [smem:[#allocation0]]
  $region137: #{tpu_custom_call.1} parent=0
    _
  %s28 = ssub.s32 1, %s26
  %s29 = scalar_select 0, %s28, %s26
  $region1: #{tpu_custom_call.1} parent=0
    #allocation7 [shape = 'u8[8192]{0}', space=vmem, size = 0x2000, scoped, tag = 'output window, operand 0']
    #allocation8 [shape = 's32[2]{0}', space=sflag, size = 0x8, scoped, tag = 'scoped memory for tpu_custom_call.1']
    %30 = vsyncpa [#allocation8], 0
    %s31 = scalar_lea.sflag [#allocation8], 1
    %32 = vsyncpa %s31, 0
    loop: start=0, step=1, limit=6
    $region2: #{tpu_custom_call.1} parent=1 // loop_pre_header
      _
    $region3: #{tpu_custom_call.1} parent=1 // loop_header
      %s34 = sphi 0, %s38
      %p35 = scmp.ge.s32.totalorder %s34, 6
      %s41 = sphi 0, %s53
      %s42 = sphi 0, %s49
      %s43 = sphi 0, %s41
      %s44 = sphi 0, %s42
      %s45 = sphi 0, %s43
      %s46 = sphi 0, %s44
      %s56 = sphi 0, %s58
      %s59 = sphi 0, %s56
      %s60 = sphi 0, %s59
      %s76 = sphi 0, %s60
      %s82 = sphi 0, %s84
      %s85 = sphi 0, %s82
      %s86 = sphi 0, %s85
      %s102 = sphi 0, %s86
      %s106 = sphi 0, %s106
      %s108 = sphi 0, %s106
      %s109 = sphi 0, %s108
      %s123 = sphi 0, %s109
      %s127 = sphi 0, %s127
      %s129 = sphi 0, %s127
      %s130 = sphi 0, %s129
      %s144 = sphi 0, %s130
      %s148 = sphi 0, %s148
      %s150 = sphi 0, %s148
      %s151 = sphi 0, %s150
      %s165 = sphi 0, %s151
      %s169 = sphi 0, %s169
      %s171 = sphi 0, %s169
      %s172 = sphi 0, %s171
      %s186 = sphi 0, %s172
      %s190 = sphi 0, %s190
      %s192 = sphi 0, %s190
      %s193 = sphi 0, %s192
      %s207 = sphi 0, %s193
      %s211 = sphi 0, %s211
      %s213 = sphi 0, %s211
      %s214 = sphi 0, %s213
      %s228 = sphi 0, %s214
      %s232 = sphi 0, %s232
      %s234 = sphi 0, %s232
      %s235 = sphi 0, %s234
      %s249 = sphi 0, %s235
      %s253 = sphi 0, %s253
      %s255 = sphi 0, %s253
      %s256 = sphi 0, %s255
      %s270 = sphi 0, %s256
      %s274 = sphi 0, %s274
      %s276 = sphi 0, %s274
      %s277 = sphi 0, %s276
      %s291 = sphi 0, %s277
      %s295 = sphi 0, %s295
      %s297 = sphi 0, %s295
      %s298 = sphi 0, %s297
      %s312 = sphi 0, %s298
      %s316 = sphi 0, %s316
      %s318 = sphi 0, %s316
      %s319 = sphi 0, %s318
      %s333 = sphi 0, %s319
      %s337 = sphi 0, %s337
      %s339 = sphi 0, %s337
      %s340 = sphi 0, %s339
      %s354 = sphi 0, %s340
      %s358 = sphi 0, %s358
      %s360 = sphi 0, %s358
      %s361 = sphi 0, %s360
      %s375 = sphi 0, %s361
      %s379 = sphi 0, %s379
      %s381 = sphi 0, %s379
      %s382 = sphi 0, %s381
      %s396 = sphi 0, %s382
      %s400 = sphi 0, %s400
      %s402 = sphi 0, %s400
      %s403 = sphi 0, %s402
      %s417 = sphi 0, %s403
      %s421 = sphi 0, %s421
      %s423 = sphi 0, %s421
      %s424 = sphi 0, %s423
      %s438 = sphi 0, %s424
      %s442 = sphi 0, %s442
      %s444 = sphi 0, %s442
      %s445 = sphi 0, %s444
      %s459 = sphi 0, %s445
      %s463 = sphi 0, %s463
      %s465 = sphi 0, %s463
      %s466 = sphi 0, %s465
      %s480 = sphi 0, %s466
      %s484 = sphi 0, %s484
      %s486 = sphi 0, %s484
      %s487 = sphi 0, %s486
      %s501 = sphi 0, %s487
      %s505 = sphi 0, %s505
      %s507 = sphi 0, %s505
      %s508 = sphi 0, %s507
      %s522 = sphi 0, %s508
      %s526 = sphi 0, %s526
      %s528 = sphi 0, %s526
      %s529 = sphi 0, %s528
      %s543 = sphi 0, %s529
      %s547 = sphi 0, %s547
      %s549 = sphi 0, %s547
      %s550 = sphi 0, %s549
      %s564 = sphi 0, %s550
      %s568 = sphi 0, %s568
      %s570 = sphi 0, %s568
      %s571 = sphi 0, %s570
      %s585 = sphi 0, %s571
      %s593 = sphi 0, %s595
      %s596 = sphi 0, %s593
      %s597 = sphi 0, %s596
      %s613 = sphi 0, %s597
    $region4: #{tpu_custom_call.1} parent=1 // loop_header_branch
      %37 = sbr.rel (%p35) target = $region8
    $region5: #{tpu_custom_call.1} parent=1 // loop_body
      %s39 = ssub.s32 %s34, 1
      %s40 = ssub.s32 %s34, 2
      %s47 = sadd.s32 1, %s42
      %p48 = scmp.ge.s32.totalorder %s47, 2
      %s49 = scalar_select %p48, 0, %s47
      %s50 = sadd.s32 1, %s41
      %s51 = scalar_select %p48, %s50, %s41
      %p52 = scmp.ge.s32.totalorder %s51, 2
      %s53 = scalar_select %p52, 0, %s51
      %s54 = ssub.s32 %s41, %s53
      %p55 = scmp.eq.s32.totalorder %s54, 0
      %s57 = sadd.s32 %s56, 1
      %s58 = scalar_select %p55, %s56, %s57
      %p61 = pneg %p55
      %p62 = scmp.eq.s32.totalorder %s34, 3
      %p63 = por %p61, %p62
      %p64 = scmp.ne.s32.totalorder %s56, %s59
      %p65 = scmp.eq.s32.totalorder %s34, 0
      %p66 = por %p64, %p65
      %p67 = scmp.ne.s32.totalorder %s56, %s59
      %p68 = scmp.eq.s32.totalorder %s39, 3
      %p69 = por %p67, %p68
      %p70 = scmp.ne.s32.totalorder %s59, %s60
      %p71 = scmp.eq.s32.totalorder %s39, 0
      %p72 = por %p70, %p71
      %p73 = scmp.ne.s32.totalorder %s59, %s60
      %p74 = scmp.eq.s32.totalorder %s40, 3
      %p75 = por %p73, %p74
      %p77 = scmp.ne.s32.totalorder %s60, %s76
      %p78 = scmp.eq.s32.totalorder %s40, 0
      %p79 = por %p77, %p78
      %s80 = ssub.s32 %s41, %s53
      %p81 = scmp.eq.s32.totalorder %s80, 0
      %s83 = sadd.s32 %s82, 1
      %s84 = scalar_select %p81, %s82, %s83
      %p87 = pneg %p81
      %p88 = scmp.eq.s32.totalorder %s34, 3
      %p89 = por %p87, %p88
      %p90 = scmp.ne.s32.totalorder %s82, %s85
      %p91 = scmp.eq.s32.totalorder %s34, 0
      %p92 = por %p90, %p91
      %p93 = scmp.ne.s32.totalorder %s82, %s85
      %p94 = scmp.eq.s32.totalorder %s39, 3
      %p95 = por %p93, %p94
      %p96 = scmp.ne.s32.totalorder %s85, %s86
      %p97 = scmp.eq.s32.totalorder %s39, 0
      %p98 = por %p96, %p97
      %p99 = scmp.ne.s32.totalorder %s85, %s86
      %p100 = scmp.eq.s32.totalorder %s40, 3
      %p101 = por %p99, %p100
      %p103 = scmp.ne.s32.totalorder %s86, %s102
      %p104 = scmp.eq.s32.totalorder %s40, 0
      %p105 = por %p103, %p104
      %s107 = sadd.s32 %s106, 1
      %p110 = scmp.eq.s32.totalorder %s34, 3
      %p111 = scmp.ne.s32.totalorder %s106, %s108
      %p112 = scmp.eq.s32.totalorder %s34, 0
      %p113 = por %p111, %p112
      %p114 = scmp.ne.s32.totalorder %s106, %s108
      %p115 = scmp.eq.s32.totalorder %s39, 3
      %p116 = por %p114, %p115
      %p117 = scmp.ne.s32.totalorder %s108, %s109
      %p118 = scmp.eq.s32.totalorder %s39, 0
      %p119 = por %p117, %p118
      %p120 = scmp.ne.s32.totalorder %s108, %s109
      %p121 = scmp.eq.s32.totalorder %s40, 3
      %p122 = por %p120, %p121
      %p124 = scmp.ne.s32.totalorder %s109, %s123
      %p125 = scmp.eq.s32.totalorder %s40, 0
      %p126 = por %p124, %p125
      %s128 = sadd.s32 %s127, 1
      %p131 = scmp.eq.s32.totalorder %s34, 3
      %p132 = scmp.ne.s32.totalorder %s127, %s129
      %p133 = scmp.eq.s32.totalorder %s34, 0
      %p134 = por %p132, %p133
      %p135 = scmp.ne.s32.totalorder %s127, %s129
      %p136 = scmp.eq.s32.totalorder %s39, 3
      %p137 = por %p135, %p136
      %p138 = scmp.ne.s32.totalorder %s129, %s130
      %p139 = scmp.eq.s32.totalorder %s39, 0
      %p140 = por %p138, %p139
      %p141 = scmp.ne.s32.totalorder %s129, %s130
      %p142 = scmp.eq.s32.totalorder %s40, 3
      %p143 = por %p141, %p142
      %p145 = scmp.ne.s32.totalorder %s130, %s144
      %p146 = scmp.eq.s32.totalorder %s40, 0
      %p147 = por %p145, %p146
      %s149 = sadd.s32 %s148, 1
      %p152 = scmp.eq.s32.totalorder %s34, 3
      %p153 = scmp.ne.s32.totalorder %s148, %s150
      %p154 = scmp.eq.s32.totalorder %s34, 0
      %p155 = por %p153, %p154
      %p156 = scmp.ne.s32.totalorder %s148, %s150
      %p157 = scmp.eq.s32.totalorder %s39, 3
      %p158 = por %p156, %p157
      %p159 = scmp.ne.s32.totalorder %s150, %s151
      %p160 = scmp.eq.s32.totalorder %s39, 0
      %p161 = por %p159, %p160
      %p162 = scmp.ne.s32.totalorder %s150, %s151
      %p163 = scmp.eq.s32.totalorder %s40, 3
      %p164 = por %p162, %p163
      %p166 = scmp.ne.s32.totalorder %s151, %s165
      %p167 = scmp.eq.s32.totalorder %s40, 0
      %p168 = por %p166, %p167
      %s170 = sadd.s32 %s169, 1
      %p173 = scmp.eq.s32.totalorder %s34, 3
      %p174 = scmp.ne.s32.totalorder %s169, %s171
      %p175 = scmp.eq.s32.totalorder %s34, 0
      %p176 = por %p174, %p175
      %p177 = scmp.ne.s32.totalorder %s169, %s171
      %p178 = scmp.eq.s32.totalorder %s39, 3
      %p179 = por %p177, %p178
      %p180 = scmp.ne.s32.totalorder %s171, %s172
      %p181 = scmp.eq.s32.totalorder %s39, 0
      %p182 = por %p180, %p181
      %p183 = scmp.ne.s32.totalorder %s171, %s172
      %p184 = scmp.eq.s32.totalorder %s40, 3
      %p185 = por %p183, %p184
      %p187 = scmp.ne.s32.totalorder %s172, %s186
      %p188 = scmp.eq.s32.totalorder %s40, 0
      %p189 = por %p187, %p188
      %s191 = sadd.s32 %s190, 1
      %p194 = scmp.eq.s32.totalorder %s34, 3
      %p195 = scmp.ne.s32.totalorder %s190, %s192
      %p196 = scmp.eq.s32.totalorder %s34, 0
      %p197 = por %p195, %p196
      %p198 = scmp.ne.s32.totalorder %s190, %s192
      %p199 = scmp.eq.s32.totalorder %s39, 3
      %p200 = por %p198, %p199
      %p201 = scmp.ne.s32.totalorder %s192, %s193
      %p202 = scmp.eq.s32.totalorder %s39, 0
      %p203 = por %p201, %p202
      %p204 = scmp.ne.s32.totalorder %s192, %s193
      %p205 = scmp.eq.s32.totalorder %s40, 3
      %p206 = por %p204, %p205
      %p208 = scmp.ne.s32.totalorder %s193, %s207
      %p209 = scmp.eq.s32.totalorder %s40, 0
      %p210 = por %p208, %p209
      %s212 = sadd.s32 %s211, 1
      %p215 = scmp.eq.s32.totalorder %s34, 3
      %p216 = scmp.ne.s32.totalorder %s211, %s213
      %p217 = scmp.eq.s32.totalorder %s34, 0
      %p218 = por %p216, %p217
      %p219 = scmp.ne.s32.totalorder %s211, %s213
      %p220 = scmp.eq.s32.totalorder %s39, 3
      %p221 = por %p219, %p220
      %p222 = scmp.ne.s32.totalorder %s213, %s214
      %p223 = scmp.eq.s32.totalorder %s39, 0
      %p224 = por %p222, %p223
      %p225 = scmp.ne.s32.totalorder %s213, %s214
      %p226 = scmp.eq.s32.totalorder %s40, 3
      %p227 = por %p225, %p226
      %p229 = scmp.ne.s32.totalorder %s214, %s228
      %p230 = scmp.eq.s32.totalorder %s40, 0
      %p231 = por %p229, %p230
      %s233 = sadd.s32 %s232, 1
      %p236 = scmp.eq.s32.totalorder %s34, 3
      %p237 = scmp.ne.s32.totalorder %s232, %s234
      %p238 = scmp.eq.s32.totalorder %s34, 0
      %p239 = por %p237, %p238
      %p240 = scmp.ne.s32.totalorder %s232, %s234
      %p241 = scmp.eq.s32.totalorder %s39, 3
      %p242 = por %p240, %p241
      %p243 = scmp.ne.s32.totalorder %s234, %s235
      %p244 = scmp.eq.s32.totalorder %s39, 0
      %p245 = por %p243, %p244
      %p246 = scmp.ne.s32.totalorder %s234, %s235
      %p247 = scmp.eq.s32.totalorder %s40, 3
      %p248 = por %p246, %p247
      %p250 = scmp.ne.s32.totalorder %s235, %s249
      %p251 = scmp.eq.s32.totalorder %s40, 0
      %p252 = por %p250, %p251
      %s254 = sadd.s32 %s253, 1
      %p257 = scmp.eq.s32.totalorder %s34, 3
      %p258 = scmp.ne.s32.totalorder %s253, %s255
      %p259 = scmp.eq.s32.totalorder %s34, 0
      %p260 = por %p258, %p259
      %p261 = scmp.ne.s32.totalorder %s253, %s255
      %p262 = scmp.eq.s32.totalorder %s39, 3
      %p263 = por %p261, %p262
      %p264 = scmp.ne.s32.totalorder %s255, %s256
      %p265 = scmp.eq.s32.totalorder %s39, 0
      %p266 = por %p264, %p265
      %p267 = scmp.ne.s32.totalorder %s255, %s256
      %p268 = scmp.eq.s32.totalorder %s40, 3
      %p269 = por %p267, %p268
      %p271 = scmp.ne.s32.totalorder %s256, %s270
      %p272 = scmp.eq.s32.totalorder %s40, 0
      %p273 = por %p271, %p272
      %s275 = sadd.s32 %s274, 1
      %p278 = scmp.eq.s32.totalorder %s34, 3
      %p279 = scmp.ne.s32.totalorder %s274, %s276
      %p280 = scmp.eq.s32.totalorder %s34, 0
      %p281 = por %p279, %p280
      %p282 = scmp.ne.s32.totalorder %s274, %s276
      %p283 = scmp.eq.s32.totalorder %s39, 3
      %p284 = por %p282, %p283
      %p285 = scmp.ne.s32.totalorder %s276, %s277
      %p286 = scmp.eq.s32.totalorder %s39, 0
      %p287 = por %p285, %p286
      %p288 = scmp.ne.s32.totalorder %s276, %s277
      %p289 = scmp.eq.s32.totalorder %s40, 3
      %p290 = por %p288, %p289
      %p292 = scmp.ne.s32.totalorder %s277, %s291
      %p293 = scmp.eq.s32.totalorder %s40, 0
      %p294 = por %p292, %p293
      %s296 = sadd.s32 %s295, 1
      %p299 = scmp.eq.s32.totalorder %s34, 3
      %p300 = scmp.ne.s32.totalorder %s295, %s297
      %p301 = scmp.eq.s32.totalorder %s34, 0
      %p302 = por %p300, %p301
      %p303 = scmp.ne.s32.totalorder %s295, %s297
      %p304 = scmp.eq.s32.totalorder %s39, 3
      %p305 = por %p303, %p304
      %p306 = scmp.ne.s32.totalorder %s297, %s298
      %p307 = scmp.eq.s32.totalorder %s39, 0
      %p308 = por %p306, %p307
      %p309 = scmp.ne.s32.totalorder %s297, %s298
      %p310 = scmp.eq.s32.totalorder %s40, 3
      %p311 = por %p309, %p310
      %p313 = scmp.ne.s32.totalorder %s298, %s312
      %p314 = scmp.eq.s32.totalorder %s40, 0
      %p315 = por %p313, %p314
      %s317 = sadd.s32 %s316, 1
      %p320 = scmp.eq.s32.totalorder %s34, 3
      %p321 = scmp.ne.s32.totalorder %s316, %s318
      %p322 = scmp.eq.s32.totalorder %s34, 0
      %p323 = por %p321, %p322
      %p324 = scmp.ne.s32.totalorder %s316, %s318
      %p325 = scmp.eq.s32.totalorder %s39, 3
      %p326 = por %p324, %p325
      %p327 = scmp.ne.s32.totalorder %s318, %s319
      %p328 = scmp.eq.s32.totalorder %s39, 0
      %p329 = por %p327, %p328
      %p330 = scmp.ne.s32.totalorder %s318, %s319
      %p331 = scmp.eq.s32.totalorder %s40, 3
      %p332 = por %p330, %p331
      %p334 = scmp.ne.s32.totalorder %s319, %s333
      %p335 = scmp.eq.s32.totalorder %s40, 0
      %p336 = por %p334, %p335
      %s338 = sadd.s32 %s337, 1
      %p341 = scmp.eq.s32.totalorder %s34, 3
      %p342 = scmp.ne.s32.totalorder %s337, %s339
      %p343 = scmp.eq.s32.totalorder %s34, 0
      %p344 = por %p342, %p343
      %p345 = scmp.ne.s32.totalorder %s337, %s339
      %p346 = scmp.eq.s32.totalorder %s39, 3
      %p347 = por %p345, %p346
      %p348 = scmp.ne.s32.totalorder %s339, %s340
      %p349 = scmp.eq.s32.totalorder %s39, 0
      %p350 = por %p348, %p349
      %p351 = scmp.ne.s32.totalorder %s339, %s340
      %p352 = scmp.eq.s32.totalorder %s40, 3
      %p353 = por %p351, %p352
      %p355 = scmp.ne.s32.totalorder %s340, %s354
      %p356 = scmp.eq.s32.totalorder %s40, 0
      %p357 = por %p355, %p356
      %s359 = sadd.s32 %s358, 1
      %p362 = scmp.eq.s32.totalorder %s34, 3
      %p363 = scmp.ne.s32.totalorder %s358, %s360
      %p364 = scmp.eq.s32.totalorder %s34, 0
      %p365 = por %p363, %p364
      %p366 = scmp.ne.s32.totalorder %s358, %s360
      %p367 = scmp.eq.s32.totalorder %s39, 3
      %p368 = por %p366, %p367
      %p369 = scmp.ne.s32.totalorder %s360, %s361
      %p370 = scmp.eq.s32.totalorder %s39, 0
      %p371 = por %p369, %p370
      %p372 = scmp.ne.s32.totalorder %s360, %s361
      %p373 = scmp.eq.s32.totalorder %s40, 3
      %p374 = por %p372, %p373
      %p376 = scmp.ne.s32.totalorder %s361, %s375
      %p377 = scmp.eq.s32.totalorder %s40, 0
      %p378 = por %p376, %p377
      %s380 = sadd.s32 %s379, 1
      %p383 = scmp.eq.s32.totalorder %s34, 3
      %p384 = scmp.ne.s32.totalorder %s379, %s381
      %p385 = scmp.eq.s32.totalorder %s34, 0
      %p386 = por %p384, %p385
      %p387 = scmp.ne.s32.totalorder %s379, %s381
      %p388 = scmp.eq.s32.totalorder %s39, 3
      %p389 = por %p387, %p388
      %p390 = scmp.ne.s32.totalorder %s381, %s382
      %p391 = scmp.eq.s32.totalorder %s39, 0
      %p392 = por %p390, %p391
      %p393 = scmp.ne.s32.totalorder %s381, %s382
      %p394 = scmp.eq.s32.totalorder %s40, 3
      %p395 = por %p393, %p394
      %p397 = scmp.ne.s32.totalorder %s382, %s396
      %p398 = scmp.eq.s32.totalorder %s40, 0
      %p399 = por %p397, %p398
      %s401 = sadd.s32 %s400, 1
      %p404 = scmp.eq.s32.totalorder %s34, 3
      %p405 = scmp.ne.s32.totalorder %s400, %s402
      %p406 = scmp.eq.s32.totalorder %s34, 0
      %p407 = por %p405, %p406
      %p408 = scmp.ne.s32.totalorder %s400, %s402
      %p409 = scmp.eq.s32.totalorder %s39, 3
      %p410 = por %p408, %p409
      %p411 = scmp.ne.s32.totalorder %s402, %s403
      %p412 = scmp.eq.s32.totalorder %s39, 0
      %p413 = por %p411, %p412
      %p414 = scmp.ne.s32.totalorder %s402, %s403
      %p415 = scmp.eq.s32.totalorder %s40, 3
      %p416 = por %p414, %p415
      %p418 = scmp.ne.s32.totalorder %s403, %s417
      %p419 = scmp.eq.s32.totalorder %s40, 0
      %p420 = por %p418, %p419
      %s422 = sadd.s32 %s421, 1
      %p425 = scmp.eq.s32.totalorder %s34, 3
      %p426 = scmp.ne.s32.totalorder %s421, %s423
      %p427 = scmp.eq.s32.totalorder %s34, 0
      %p428 = por %p426, %p427
      %p429 = scmp.ne.s32.totalorder %s421, %s423
      %p430 = scmp.eq.s32.totalorder %s39, 3
      %p431 = por %p429, %p430
      %p432 = scmp.ne.s32.totalorder %s423, %s424
      %p433 = scmp.eq.s32.totalorder %s39, 0
      %p434 = por %p432, %p433
      %p435 = scmp.ne.s32.totalorder %s423, %s424
      %p436 = scmp.eq.s32.totalorder %s40, 3
      %p437 = por %p435, %p436
      %p439 = scmp.ne.s32.totalorder %s424, %s438
      %p440 = scmp.eq.s32.totalorder %s40, 0
      %p441 = por %p439, %p440
      %s443 = sadd.s32 %s442, 1
      %p446 = scmp.eq.s32.totalorder %s34, 3
      %p447 = scmp.ne.s32.totalorder %s442, %s444
      %p448 = scmp.eq.s32.totalorder %s34, 0
      %p449 = por %p447, %p448
      %p450 = scmp.ne.s32.totalorder %s442, %s444
      %p451 = scmp.eq.s32.totalorder %s39, 3
      %p452 = por %p450, %p451
      %p453 = scmp.ne.s32.totalorder %s444, %s445
      %p454 = scmp.eq.s32.totalorder %s39, 0
      %p455 = por %p453, %p454
      %p456 = scmp.ne.s32.totalorder %s444, %s445
      %p457 = scmp.eq.s32.totalorder %s40, 3
      %p458 = por %p456, %p457
      %p460 = scmp.ne.s32.totalorder %s445, %s459
      %p461 = scmp.eq.s32.totalorder %s40, 0
      %p462 = por %p460, %p461
      %s464 = sadd.s32 %s463, 1
      %p467 = scmp.eq.s32.totalorder %s34, 3
      %p468 = scmp.ne.s32.totalorder %s463, %s465
      %p469 = scmp.eq.s32.totalorder %s34, 0
      %p470 = por %p468, %p469
      %p471 = scmp.ne.s32.totalorder %s463, %s465
      %p472 = scmp.eq.s32.totalorder %s39, 3
      %p473 = por %p471, %p472
      %p474 = scmp.ne.s32.totalorder %s465, %s466
      %p475 = scmp.eq.s32.totalorder %s39, 0
      %p476 = por %p474, %p475
      %p477 = scmp.ne.s32.totalorder %s465, %s466
      %p478 = scmp.eq.s32.totalorder %s40, 3
      %p479 = por %p477, %p478
      %p481 = scmp.ne.s32.totalorder %s466, %s480
      %p482 = scmp.eq.s32.totalorder %s40, 0
      %p483 = por %p481, %p482
      %s485 = sadd.s32 %s484, 1
      %p488 = scmp.eq.s32.totalorder %s34, 3
      %p489 = scmp.ne.s32.totalorder %s484, %s486
      %p490 = scmp.eq.s32.totalorder %s34, 0
      %p491 = por %p489, %p490
      %p492 = scmp.ne.s32.totalorder %s484, %s486
      %p493 = scmp.eq.s32.totalorder %s39, 3
      %p494 = por %p492, %p493
      %p495 = scmp.ne.s32.totalorder %s486, %s487
      %p496 = scmp.eq.s32.totalorder %s39, 0
      %p497 = por %p495, %p496
      %p498 = scmp.ne.s32.totalorder %s486, %s487
      %p499 = scmp.eq.s32.totalorder %s40, 3
      %p500 = por %p498, %p499
      %p502 = scmp.ne.s32.totalorder %s487, %s501
      %p503 = scmp.eq.s32.totalorder %s40, 0
      %p504 = por %p502, %p503
      %s506 = sadd.s32 %s505, 1
      %p509 = scmp.eq.s32.totalorder %s34, 3
      %p510 = scmp.ne.s32.totalorder %s505, %s507
      %p511 = scmp.eq.s32.totalorder %s34, 0
      %p512 = por %p510, %p511
      %p513 = scmp.ne.s32.totalorder %s505, %s507
      %p514 = scmp.eq.s32.totalorder %s39, 3
      %p515 = por %p513, %p514
      %p516 = scmp.ne.s32.totalorder %s507, %s508
      %p517 = scmp.eq.s32.totalorder %s39, 0
      %p518 = por %p516, %p517
      %p519 = scmp.ne.s32.totalorder %s507, %s508
      %p520 = scmp.eq.s32.totalorder %s40, 3
      %p521 = por %p519, %p520
      %p523 = scmp.ne.s32.totalorder %s508, %s522
      %p524 = scmp.eq.s32.totalorder %s40, 0
      %p525 = por %p523, %p524
      %s527 = sadd.s32 %s526, 1
      %p530 = scmp.eq.s32.totalorder %s34, 3
      %p531 = scmp.ne.s32.totalorder %s526, %s528
      %p532 = scmp.eq.s32.totalorder %s34, 0
      %p533 = por %p531, %p532
      %p534 = scmp.ne.s32.totalorder %s526, %s528
      %p535 = scmp.eq.s32.totalorder %s39, 3
      %p536 = por %p534, %p535
      %p537 = scmp.ne.s32.totalorder %s528, %s529
      %p538 = scmp.eq.s32.totalorder %s39, 0
      %p539 = por %p537, %p538
      %p540 = scmp.ne.s32.totalorder %s528, %s529
      %p541 = scmp.eq.s32.totalorder %s40, 3
      %p542 = por %p540, %p541
      %p544 = scmp.ne.s32.totalorder %s529, %s543
      %p545 = scmp.eq.s32.totalorder %s40, 0
      %p546 = por %p544, %p545
      %s548 = sadd.s32 %s547, 1
      %p551 = scmp.eq.s32.totalorder %s34, 3
      %p552 = scmp.ne.s32.totalorder %s547, %s549
      %p553 = scmp.eq.s32.totalorder %s34, 0
      %p554 = por %p552, %p553
      %p555 = scmp.ne.s32.totalorder %s547, %s549
      %p556 = scmp.eq.s32.totalorder %s39, 3
      %p557 = por %p555, %p556
      %p558 = scmp.ne.s32.totalorder %s549, %s550
      %p559 = scmp.eq.s32.totalorder %s39, 0
      %p560 = por %p558, %p559
      %p561 = scmp.ne.s32.totalorder %s549, %s550
      %p562 = scmp.eq.s32.totalorder %s40, 3
      %p563 = por %p561, %p562
      %p565 = scmp.ne.s32.totalorder %s550, %s564
      %p566 = scmp.eq.s32.totalorder %s40, 0
      %p567 = por %p565, %p566
      %s569 = sadd.s32 %s568, 1
      %p572 = scmp.eq.s32.totalorder %s34, 3
      %p573 = scmp.ne.s32.totalorder %s568, %s570
      %p574 = scmp.eq.s32.totalorder %s34, 0
      %p575 = por %p573, %p574
      %p576 = scmp.ne.s32.totalorder %s568, %s570
      %p577 = scmp.eq.s32.totalorder %s39, 3
      %p578 = por %p576, %p577
      %p579 = scmp.ne.s32.totalorder %s570, %s571
      %p580 = scmp.eq.s32.totalorder %s39, 0
      %p581 = por %p579, %p580
      %p582 = scmp.ne.s32.totalorder %s570, %s571
      %p583 = scmp.eq.s32.totalorder %s40, 3
      %p584 = por %p582, %p583
      %p586 = scmp.ne.s32.totalorder %s571, %s585
      %p587 = scmp.eq.s32.totalorder %s40, 0
      %p588 = por %p586, %p587
      %s589 = ssub.s32 %s41, %s53
      %s590 = ssub.s32 %s42, %s49
      %s591 = sor.u32 %s589, %s590
      %p592 = scmp.eq.s32.totalorder %s591, 0
      %s594 = sadd.s32 %s593, 1
      %s595 = scalar_select %p592, %s593, %s594
      %p598 = pneg %p592
      %p599 = scmp.eq.s32.totalorder %s34, 3
      %p600 = por %p598, %p599
      %p601 = scmp.ne.s32.totalorder %s593, %s596
      %p602 = scmp.eq.s32.totalorder %s34, 0
      %p603 = por %p601, %p602
      %p604 = scmp.ne.s32.totalorder %s593, %s596
      %p605 = scmp.eq.s32.totalorder %s39, 3
      %p606 = por %p604, %p605
      %p607 = scmp.ne.s32.totalorder %s596, %s597
      %p608 = scmp.eq.s32.totalorder %s39, 0
      %p609 = por %p607, %p608
      %p610 = scmp.ne.s32.totalorder %s596, %s597
      %p611 = scmp.eq.s32.totalorder %s40, 3
      %p612 = por %p610, %p611
      %p614 = scmp.ne.s32.totalorder %s597, %s613
      %p615 = scmp.eq.s32.totalorder %s40, 0
      %p616 = por %p614, %p615
      %p617 = scmp.le.s32.totalorder 1, %s34
      %p618 = scmp.lt.s32.totalorder %s34, 5
      %p619 = pnand %p617, %p618
      %p620 = pneg %p619
      // Predicated region
      $region9: #{tpu_custom_call.1} parent=5 // pred_check
        _
      $region10: #{tpu_custom_call.1} parent=5 // pred_check_branch
        %622 = sbr.rel (%p619) target = $region12
      $region11: #{tpu_custom_call.1} parent=5 // pred_region
        %s623 = ssub.s32 %s34, 1
        // Predicated region
        $region13: #{tpu_custom_call.1} parent=11 // pred_check
          %p624 = pneg %p119
        $region14: #{tpu_custom_call.1} parent=11 // pred_check_branch
          %626 = sbr.rel (%p624) target = $region16
        $region15: #{tpu_custom_call.1} parent=11 // pred_region
          _
        $region16: #{tpu_custom_call.1} parent=11 // pred_fallthru
          _
        // Predicated region
        $region17: #{tpu_custom_call.1} parent=11 // pred_check
          %p627 = pneg %p140
        $region18: #{tpu_custom_call.1} parent=11 // pred_check_branch
          %629 = sbr.rel (%p627) target = $region20
        $region19: #{tpu_custom_call.1} parent=11 // pred_region
          _
        $region20: #{tpu_custom_call.1} parent=11 // pred_fallthru
          _
        // Predicated region
        $region21: #{tpu_custom_call.1} parent=11 // pred_check
          %p630 = pneg %p161
        $region22: #{tpu_custom_call.1} parent=11 // pred_check_branch
          %632 = sbr.rel (%p630) target = $region24
        $region23: #{tpu_custom_call.1} parent=11 // pred_region
          _
        $region24: #{tpu_custom_call.1} parent=11 // pred_fallthru
          _
        // Predicated region
        $region25: #{tpu_custom_call.1} parent=11 // pred_check
          %p633 = pneg %p182
        $region26: #{tpu_custom_call.1} parent=11 // pred_check_branch
          %635 = sbr.rel (%p633) target = $region28
        $region27: #{tpu_custom_call.1} parent=11 // pred_region
          _
        $region28: #{tpu_custom_call.1} parent=11 // pred_fallthru
          _
        // Predicated region
        $region29: #{tpu_custom_call.1} parent=11 // pred_check
          %p636 = pneg %p203
        $region30: #{tpu_custom_call.1} parent=11 // pred_check_branch
          %638 = sbr.rel (%p636) target = $region32
        $region31: #{tpu_custom_call.1} parent=11 // pred_region
          _
        $region32: #{tpu_custom_call.1} parent=11 // pred_fallthru
          _
        // Predicated region
        $region33: #{tpu_custom_call.1} parent=11 // pred_check
          %p639 = pneg %p224
        $region34: #{tpu_custom_call.1} parent=11 // pred_check_branch
          %641 = sbr.rel (%p639) target = $region36
        $region35: #{tpu_custom_call.1} parent=11 // pred_region
          _
        $region36: #{tpu_custom_call.1} parent=11 // pred_fallthru
          _
        // Predicated region
        $region37: #{tpu_custom_call.1} parent=11 // pred_check
          %p642 = pneg %p245
        $region38: #{tpu_custom_call.1} parent=11 // pred_check_branch
          %644 = sbr.rel (%p642) target = $region40
        $region39: #{tpu_custom_call.1} parent=11 // pred_region
          _
        $region40: #{tpu_custom_call.1} parent=11 // pred_fallthru
          _
        // Predicated region
        $region41: #{tpu_custom_call.1} parent=11 // pred_check
          %p645 = pneg %p266
        $region42: #{tpu_custom_call.1} parent=11 // pred_check_branch
          %647 = sbr.rel (%p645) target = $region44
        $region43: #{tpu_custom_call.1} parent=11 // pred_region
          _
        $region44: #{tpu_custom_call.1} parent=11 // pred_fallthru
          _
        // Predicated region
        $region45: #{tpu_custom_call.1} parent=11 // pred_check
          %p648 = pneg %p287
        $region46: #{tpu_custom_call.1} parent=11 // pred_check_branch
          %650 = sbr.rel (%p648) target = $region48
        $region47: #{tpu_custom_call.1} parent=11 // pred_region
          _
        $region48: #{tpu_custom_call.1} parent=11 // pred_fallthru
          _
        // Predicated region
        $region49: #{tpu_custom_call.1} parent=11 // pred_check
          %p651 = pneg %p308
        $region50: #{tpu_custom_call.1} parent=11 // pred_check_branch
          %653 = sbr.rel (%p651) target = $region52
        $region51: #{tpu_custom_call.1} parent=11 // pred_region
          _
        $region52: #{tpu_custom_call.1} parent=11 // pred_fallthru
          _
        // Predicated region
        $region53: #{tpu_custom_call.1} parent=11 // pred_check
          %p654 = pneg %p329
        $region54: #{tpu_custom_call.1} parent=11 // pred_check_branch
          %656 = sbr.rel (%p654) target = $region56
        $region55: #{tpu_custom_call.1} parent=11 // pred_region
          _
        $region56: #{tpu_custom_call.1} parent=11 // pred_fallthru
          _
        // Predicated region
        $region57: #{tpu_custom_call.1} parent=11 // pred_check
          %p657 = pneg %p350
        $region58: #{tpu_custom_call.1} parent=11 // pred_check_branch
          %659 = sbr.rel (%p657) target = $region60
        $region59: #{tpu_custom_call.1} parent=11 // pred_region
          _
        $region60: #{tpu_custom_call.1} parent=11 // pred_fallthru
          _
        // Predicated region
        $region61: #{tpu_custom_call.1} parent=11 // pred_check
          %p660 = pneg %p371
        $region62: #{tpu_custom_call.1} parent=11 // pred_check_branch
          %662 = sbr.rel (%p660) target = $region64
        $region63: #{tpu_custom_call.1} parent=11 // pred_region
          _
        $region64: #{tpu_custom_call.1} parent=11 // pred_fallthru
          _
        // Predicated region
        $region65: #{tpu_custom_call.1} parent=11 // pred_check
          %p663 = pneg %p392
        $region66: #{tpu_custom_call.1} parent=11 // pred_check_branch
          %665 = sbr.rel (%p663) target = $region68
        $region67: #{tpu_custom_call.1} parent=11 // pred_region
          _
        $region68: #{tpu_custom_call.1} parent=11 // pred_fallthru
          _
        // Predicated region
        $region69: #{tpu_custom_call.1} parent=11 // pred_check
          %p666 = pneg %p413
        $region70: #{tpu_custom_call.1} parent=11 // pred_check_branch
          %668 = sbr.rel (%p666) target = $region72
        $region71: #{tpu_custom_call.1} parent=11 // pred_region
          _
        $region72: #{tpu_custom_call.1} parent=11 // pred_fallthru
          _
        // Predicated region
        $region73: #{tpu_custom_call.1} parent=11 // pred_check
          %p669 = pneg %p434
        $region74: #{tpu_custom_call.1} parent=11 // pred_check_branch
          %671 = sbr.rel (%p669) target = $region76
        $region75: #{tpu_custom_call.1} parent=11 // pred_region
          _
        $region76: #{tpu_custom_call.1} parent=11 // pred_fallthru
          _
        // Predicated region
        $region77: #{tpu_custom_call.1} parent=11 // pred_check
          %p672 = pneg %p455
        $region78: #{tpu_custom_call.1} parent=11 // pred_check_branch
          %674 = sbr.rel (%p672) target = $region80
        $region79: #{tpu_custom_call.1} parent=11 // pred_region
          _
        $region80: #{tpu_custom_call.1} parent=11 // pred_fallthru
          _
        // Predicated region
        $region81: #{tpu_custom_call.1} parent=11 // pred_check
          %p675 = pneg %p476
        $region82: #{tpu_custom_call.1} parent=11 // pred_check_branch
          %677 = sbr.rel (%p675) target = $region84
        $region83: #{tpu_custom_call.1} parent=11 // pred_region
          _
        $region84: #{tpu_custom_call.1} parent=11 // pred_fallthru
          _
        // Predicated region
        $region85: #{tpu_custom_call.1} parent=11 // pred_check
          %p678 = pneg %p497
        $region86: #{tpu_custom_call.1} parent=11 // pred_check_branch
          %680 = sbr.rel (%p678) target = $region88
        $region87: #{tpu_custom_call.1} parent=11 // pred_region
          _
        $region88: #{tpu_custom_call.1} parent=11 // pred_fallthru
          _
        // Predicated region
        $region89: #{tpu_custom_call.1} parent=11 // pred_check
          %p681 = pneg %p518
        $region90: #{tpu_custom_call.1} parent=11 // pred_check_branch
          %683 = sbr.rel (%p681) target = $region92
        $region91: #{tpu_custom_call.1} parent=11 // pred_region
          _
        $region92: #{tpu_custom_call.1} parent=11 // pred_fallthru
          _
        // Predicated region
        $region93: #{tpu_custom_call.1} parent=11 // pred_check
          %p684 = pneg %p539
        $region94: #{tpu_custom_call.1} parent=11 // pred_check_branch
          %686 = sbr.rel (%p684) target = $region96
        $region95: #{tpu_custom_call.1} parent=11 // pred_region
          _
        $region96: #{tpu_custom_call.1} parent=11 // pred_fallthru
          _
        // Predicated region
        $region97: #{tpu_custom_call.1} parent=11 // pred_check
          %p687 = pneg %p560
        $region98: #{tpu_custom_call.1} parent=11 // pred_check_branch
          %689 = sbr.rel (%p687) target = $region100
        $region99: #{tpu_custom_call.1} parent=11 // pred_region
          _
        $region100: #{tpu_custom_call.1} parent=11 // pred_fallthru
          _
        // Predicated region
        $region101: #{tpu_custom_call.1} parent=11 // pred_check
          %p690 = pneg %p581
        $region102: #{tpu_custom_call.1} parent=11 // pred_check_branch
          %692 = sbr.rel (%p690) target = $region104
        $region103: #{tpu_custom_call.1} parent=11 // pred_region
          _
        $region104: #{tpu_custom_call.1} parent=11 // pred_fallthru
          _
      $region12: #{tpu_custom_call.1} parent=5 // pred_fallthru
        _
      %p693 = scmp.lt.s32.totalorder %s34, 4
      // Predicated region
      $region105: #{tpu_custom_call.1} parent=5 // pred_check
        %p694 = pneg %p693
      $region106: #{tpu_custom_call.1} parent=5 // pred_check_branch
        %696 = sbr.rel (%p694) target = $region108
      $region107: #{tpu_custom_call.1} parent=5 // pred_region
        // Predicated region
        $region109: #{tpu_custom_call.1} parent=107 // pred_check
          %p697 = pneg %p66
        $region110: #{tpu_custom_call.1} parent=107 // pred_check_branch
          %699 = sbr.rel (%p697) target = $region112
        $region111: #{tpu_custom_call.1} parent=107 // pred_region
          %p700 = scmp.lt.s32.totalorder %s41, 1
          %s701 = scalar_select %p700, %s41, 1
          %s702 = smul.addr %s701, 2
          %s703 = smul.addr %s702, 8
          %s704 = scalar_lea.vmem %s0, %s703
        $region112: #{tpu_custom_call.1} parent=107 // pred_fallthru
          _
        // Predicated region
        $region113: #{tpu_custom_call.1} parent=107 // pred_check
          %p705 = pneg %p92
        $region114: #{tpu_custom_call.1} parent=107 // pred_check_branch
          %707 = sbr.rel (%p705) target = $region116
        $region115: #{tpu_custom_call.1} parent=107 // pred_region
          %p708 = scmp.lt.s32.totalorder %s41, 1
          %s709 = scalar_select %p708, %s41, 1
          %s710 = smul.addr %s709, 8
          %s711 = scalar_lea.vmem %s1, %s710
        $region116: #{tpu_custom_call.1} parent=107 // pred_fallthru
          _
      $region108: #{tpu_custom_call.1} parent=5 // pred_fallthru
        _
      %p712 = scmp.le.s32.totalorder 1, %s34
      %p713 = scmp.lt.s32.totalorder %s34, 5
      %p714 = pnand %p712, %p713
      %p715 = pneg %p714
      // Predicated region
      $region117: #{tpu_custom_call.1} parent=5 // pred_check
        _
      $region118: #{tpu_custom_call.1} parent=5 // pred_check_branch
        %717 = sbr.rel (%p714) target = $region120
      $region119: #{tpu_custom_call.1} parent=5 // pred_region
        %s718 = ssub.s32 %s34, 1
        %p719 = scmp.lt.s32.totalorder %s43, 1
        %s720 = scalar_select %p719, %s43, 1
        %s721 = smul.addr %s720, 2
        %s722 = smul.addr %s721, 8
        %s723 = scalar_lea.vmem %s0, %s722
        %p724 = pneg %p72
        %p725 = pneg %p69
        %p726 = scmp.lt.s32.totalorder %s43, 1
        %s727 = scalar_select %p726, %s43, 1
        %s728 = smul.addr %s727, 8
        %s729 = scalar_lea.vmem %s1, %s728
        %p730 = pneg %p98
        %p731 = pneg %p95
        %p732 = pneg %p119
        %p733 = pneg %p116
        %p734 = pneg %p140
        %p735 = pneg %p137
        %p736 = pneg %p161
        %p737 = pneg %p158
        %p738 = pneg %p182
        %p739 = pneg %p179
        %p740 = pneg %p203
        %p741 = pneg %p200
        %p742 = pneg %p224
        %p743 = pneg %p221
        %p744 = pneg %p245
        %p745 = pneg %p242
        %p746 = pneg %p266
        %p747 = pneg %p263
        %p748 = pneg %p287
        %p749 = pneg %p284
        %p750 = pneg %p308
        %p751 = pneg %p305
        %p752 = pneg %p329
        %p753 = pneg %p326
        %p754 = pneg %p350
        %p755 = pneg %p347
        %p756 = pneg %p371
        %p757 = pneg %p368
        %p758 = pneg %p392
        %p759 = pneg %p389
        %p760 = pneg %p413
        %p761 = pneg %p410
        %p762 = pneg %p434
        %p763 = pneg %p431
        %p764 = pneg %p455
        %p765 = pneg %p452
        %p766 = pneg %p476
        %p767 = pneg %p473
        %p768 = pneg %p497
        %p769 = pneg %p494
        %p770 = pneg %p518
        %p771 = pneg %p515
        %p772 = pneg %p539
        %p773 = pneg %p536
        %p774 = pneg %p560
        %p775 = pneg %p557
        %p776 = pneg %p581
        %p777 = pneg %p578
        %p778 = pneg %p609
        %p779 = pneg %p606
        %s780 = sand.u32 %s596, 1
        %s781 = scalar_lea.sflag [#allocation8], %s780
        %s782 = sand.u32 %s596, 1
        %s783 = smul.addr %s782, 8
        %s784 = scalar_lea.vmem [#allocation7], %s783
        %p785 = scmp.lt.s32.totalorder %s43, 1
        %s786 = scalar_select %p785, %s43, 1
        %s787 = smul.addr %s786, 2
        %s788 = smul.addr %s787, 8
        %s789 = scalar_lea.vmem %s0, %s788
        %p790 = scmp.lt.s32.totalorder %s43, 1
        %s791 = scalar_select %p790, %s43, 1
        %s792 = smul.addr %s791, 8
        %s793 = scalar_lea.vmem %s1, %s792
        %s795 = smul.u32 %s44, 8
        %p796 = scmp.eq.s32.totalorder %s44, 0
        // Predicated region
        $region121: #{tpu_custom_call.1} parent=119 // pred_check
          %p797 = pneg %p796
        $region122: #{tpu_custom_call.1} parent=119 // pred_check_branch
          %799 = sbr.rel (%p797) target = $region124
        $region123: #{tpu_custom_call.1} parent=119 // pred_region
          %v800 = vld [vmem:[%s789] sm:$0xff]
          %v801 = vld [vmem:[%s789 + $0x8] sm:$0xff]
          %vm802 = vcmask 261120
          %v803 = vsel %vm802, %v800, 0.0
          %804 = vadd.xlane.f32.xlu0 %v803
          %v805 = vpop.xlane.xlu0 %804
          %v806 = vsel %vm802, %v801, 0.0
          %807 = vadd.xlane.f32.xlu0 %v806
          %v808 = vpop.xlane.xlu0 %807
          %v809 = vrcp.pop 32.0
          %v810 = vmul.f32 32.0, %v809
          %v811 = vsub.f32 1.0, %v810
          %v812 = vmul.f32 %v809, %v811
          %v813 = vadd.f32 %v809, %v812
          %vm814 = vweird.f32 %v809
          %v815 = vsel %vm814, %v809, %v813
          %v816 = vmul.f32 %v805, %v815
          %v817 = vmul.f32 %v808, %v815
          %v818 = vsub.f32 %v800, %v816
          %v819 = vsub.f32 %v801, %v817
          %v820 = vmul.f32 %v818, %v818
          %v821 = vmul.f32 %v819, %v819
          %v822 = vsel %vm802, %v820, 0.0
          %823 = vadd.xlane.f32.xlu0 %v822
          %v824 = vpop.xlane.xlu0 %823
          %v825 = vsel %vm802, %v821, 0.0
          %826 = vadd.xlane.f32.xlu0 %v825
          %v827 = vpop.xlane.xlu0 %826
          %v828 = vmul.f32 %v824, %v815
          %v829 = vmul.f32 %v827, %v815
          %v830 = vadd.f32 %v828, 1e-05
          %v831 = vadd.f32 %v829, 1e-05
          %v832 = vrsqrt.pop %v830
          %v833 = vmul.f32 %v832, %v830
          %v834 = vmul.f32 %v833, %v832
          %v835 = vmul.f32 0.5, %v834
          %v836 = vsub.f32 1.5, %v835
          %v837 = vmul.f32 %v832, %v836
          %vm838 = vweird.f32 %v830
          %vm839 = vweird.f32 %v832
          %vm840 = vmor %vm838, %vm839
          %v841 = vsel %vm840, %v832, %v837
          %v842 = vrsqrt.pop %v831
          %v843 = vmul.f32 %v842, %v831
          %v844 = vmul.f32 %v843, %v842
          %v845 = vmul.f32 0.5, %v844
          %v846 = vsub.f32 1.5, %v845
          %v847 = vmul.f32 %v842, %v846
          %vm848 = vweird.f32 %v831
          %vm849 = vweird.f32 %v842
          %vm850 = vmor %vm848, %vm849
          %v851 = vsel %vm850, %v842, %v847
          %v852 = vmul.f32 %v818, %v841
          %v853 = vmul.f32 %v819, %v851
          %v854 = vld [vmem:[%s2] sm:$0x1]
          %v856 = vperm.slane %v854, 0
          %v858 = vmul.f32 %v852, %v856
          %v859 = vmul.f32 %v853, %v856
          %v860 = vld [vmem:[%s3] sm:$0x1]
          %v862 = vperm.slane %v860, 0
          %v864 = vadd.f32 %v858, %v862
          %v865 = vadd.f32 %v859, %v862
          %v866 = vpack.c.bf16 %v864, %v864
          %v867 = vpack.c.bf16 %v865, %v865
          %vm868 = vcmask 257024
          %869 = vst.msk [vmem:[#allocation2] sm:$0xf] %vm868, %v866
          %870 = vst.msk [vmem:[#allocation2 + $0x4] sm:$0xf] %vm868, %v867
          %v871 = vld [vmem:[%s10] sm:$0xf]
          %v872 = vld [vmem:[%s10 + $0x4] sm:$0xf]
          %v873 = vld [vmem:[%s10 + $0x8] sm:$0xf]
          %v874 = vld [vmem:[%s10 + $0xc] sm:$0xf]
          %v875 = vld [vmem:[%s11] sm:$0x1]
          %v877 = vperm.slane %v875, 0
          %v881 = vunpack.c.l.b16 %v866
          %v882 = vunpack.c.l.b16 %v867
          %v883 = vpack.c.b16 %v882, %v881
          %v888 = vunpack.c.l.b16 %v871
          %v889 = vunpack.c.l.b16 %v872
          %v890 = vunpack.c.l.b16 %v873
          %v891 = vunpack.c.l.b16 %v874
          %v892 = vpack.c.b16 %v889, %v888
          %v893 = vpack.c.b16 %v891, %v890
          %v897 = vsel %vm802, %v883, 0
          %899 = vmatpush.bf16.msra.mxu0 0
          %900 = vmatpush.bf16.msra.mxu0 0
          %901 = vmatpush.bf16.msra.mxu0 0
          %902 = vmatpush.bf16.msra.mxu0 0
          %903 = vmatpush.bf16.msra.mxu0 0
          %904 = vmatpush.bf16.msra.mxu0 0
          %905 = vmatpush.bf16.msra.mxu0 %v893
          %906 = vmatpush.bf16.msra.mxu0 %v892
          %907 = vmatmul.bf16.gmra.mxu0 %v897
          %v908 = vpop.f32.mrf.mxu0
          %v909 = vadd.f32 %v877, %v908
          %v910 = vpop.f32.mrf.mxu0
          %v911 = vadd.f32 %v877, %v910
          %912 = vdwg.mxu0
          %v913 = vpack.c.bf16 %v909, %v909
          %v914 = vpack.c.bf16 %v911, %v911
          %917 = vrot.lane.b32.xlu0 %v913, 120
          %v918 = vpop.permute.xlu0 %917
          %919 = vrot.lane.b32.xlu0 %v914, 120
          %v920 = vpop.permute.xlu0 %919
          %921 = vrot.lane.b32.xlu0 %v913, 112
          %v922 = vpop.permute.xlu0 %921
          %923 = vrot.lane.b32.xlu0 %v914, 112
          %v924 = vpop.permute.xlu0 %923
          %925 = vrot.lane.b32.xlu0 %v913, 104
          %v926 = vpop.permute.xlu0 %925
          %927 = vrot.lane.b32.xlu0 %v914, 104
          %v928 = vpop.permute.xlu0 %927
          %v931 = vpack.i.b16 %v918, %v913
          %v932 = vshrl.u32 %v913, 16
          %v933 = vshrl.u32 %v918, 16
          %v934 = vpack.i.b16 %v933, %v932
          %v937 = vpack.i.b16 %v926, %v922
          %v938 = vshrl.u32 %v922, 16
          %v939 = vshrl.u32 %v926, 16
          %v940 = vpack.i.b16 %v939, %v938
          %v943 = vpack.i.b16 %v920, %v914
          %v944 = vshrl.u32 %v914, 16
          %v945 = vshrl.u32 %v920, 16
          %v946 = vpack.i.b16 %v945, %v944
          %v949 = vpack.i.b16 %v928, %v924
          %v950 = vshrl.u32 %v924, 16
          %v951 = vshrl.u32 %v928, 16
          %v952 = vpack.i.b16 %v951, %v950
          %v955 = vunpack.c.l.s4 1983009808
          %v956 = vunpack.c.0.s8 %v955
          %v957 = vperm.slane %v931, %v956
          %v960 = vunpack.c.l.s4 1983009808
          %v961 = vunpack.c.0.s8 %v960
          %v962 = vperm.slane %v937, %v961
          %v963 = vrot.slane %v962, 4
          %vm964 = vcmask 1047556
          %v965 = vsel %vm964, %v963, %v957
          %v966 = vrot.slane %v957, 4
          %v967 = vsel %vm964, %v962, %v966
          %v969 = vunpack.c.l.s4 1934713408
          %v970 = vunpack.c.0.s8 %v969
          %v971 = vperm.slane %v965, %v970
          %v973 = vunpack.c.l.s4 1934713408
          %v974 = vunpack.c.0.s8 %v973
          %v975 = vperm.slane %v967, %v974
          %v976 = vrot.slane %v971, 4
          %v977 = vsel %vm964, 0, %v976
          %v978 = vrot.slane %v975, 4
          %v979 = vsel %vm964, 0, %v978
          %v982 = vunpack.c.l.s4 1983009808
          %v983 = vunpack.c.0.s8 %v982
          %v984 = vperm.slane %v934, %v983
          %v987 = vunpack.c.l.s4 1983009808
          %v988 = vunpack.c.0.s8 %v987
          %v989 = vperm.slane %v940, %v988
          %v990 = vrot.slane %v989, 4
          %v991 = vsel %vm964, %v990, %v984
          %v992 = vrot.slane %v984, 4
          %v993 = vsel %vm964, %v989, %v992
          %v995 = vunpack.c.l.s4 1934713408
          %v996 = vunpack.c.0.s8 %v995
          %v997 = vperm.slane %v991, %v996
          %v999 = vunpack.c.l.s4 1934713408
          %v1000 = vunpack.c.0.s8 %v999
          %v1001 = vperm.slane %v993, %v1000
          %v1002 = vrot.slane %v997, 4
          %v1003 = vsel %vm964, 0, %v1002
          %v1004 = vrot.slane %v1001, 4
          %v1005 = vsel %vm964, 0, %v1004
          %v1008 = vunpack.c.l.s4 1983009808
          %v1009 = vunpack.c.0.s8 %v1008
          %v1010 = vperm.slane %v943, %v1009
          %v1013 = vunpack.c.l.s4 1983009808
          %v1014 = vunpack.c.0.s8 %v1013
          %v1015 = vperm.slane %v949, %v1014
          %v1016 = vrot.slane %v1015, 4
          %v1017 = vsel %vm964, %v1016, %v1010
          %v1018 = vrot.slane %v1010, 4
          %v1019 = vsel %vm964, %v1015, %v1018
          %v1021 = vunpack.c.l.s4 1934713408
          %v1022 = vunpack.c.0.s8 %v1021
          %v1023 = vperm.slane %v1017, %v1022
          %v1025 = vunpack.c.l.s4 1934713408
          %v1026 = vunpack.c.0.s8 %v1025
          %v1027 = vperm.slane %v1019, %v1026
          %v1028 = vrot.slane %v1023, 4
          %v1029 = vsel %vm964, 0, %v1028
          %v1030 = vrot.slane %v1027, 4
          %v1031 = vsel %vm964, 0, %v1030
          %v1034 = vunpack.c.l.s4 1983009808
          %v1035 = vunpack.c.0.s8 %v1034
          %v1036 = vperm.slane %v946, %v1035
          %v1039 = vunpack.c.l.s4 1983009808
          %v1040 = vunpack.c.0.s8 %v1039
          %v1041 = vperm.slane %v952, %v1040
          %v1042 = vrot.slane %v1041, 4
          %v1043 = vsel %vm964, %v1042, %v1036
          %v1044 = vrot.slane %v1036, 4
          %v1045 = vsel %vm964, %v1041, %v1044
          %v1047 = vunpack.c.l.s4 1934713408
          %v1048 = vunpack.c.0.s8 %v1047
          %v1049 = vperm.slane %v1043, %v1048
          %v1051 = vunpack.c.l.s4 1934713408
          %v1052 = vunpack.c.0.s8 %v1051
          %v1053 = vperm.slane %v1045, %v1052
          %v1054 = vrot.slane %v1049, 4
          %v1055 = vsel %vm964, 0, %v1054
          %v1056 = vrot.slane %v1053, 4
          %v1057 = vsel %vm964, 0, %v1056
          %v1058 = vsel %vm964, %v978, %v971
          %v1060 = vunpack.c.l.s4 1983009808
          %v1061 = vunpack.c.0.s8 %v1060
          %v1062 = vperm.slane %v1058, %v1061
          %v1063 = vrot.slane %v979, 4
          %v1064 = vsel %vm964, %v1063, %v977
          %v1066 = vunpack.c.l.s4 1983009808
          %v1067 = vunpack.c.0.s8 %v1066
          %v1068 = vperm.slane %v1064, %v1067
          %v1069 = vrot.slane %v1068, 4
          %v1070 = vsel %vm964, %v1069, %v1062
          %v1072 = vunpack.c.l.s4 1934713408
          %v1073 = vunpack.c.0.s8 %v1072
          %v1074 = vperm.slane %v1070, %v1073
          %v1075 = vrot.slane %v1074, 4
          %v1076 = vsel %vm964, 0, %v1075
          %v1077 = vsel %vm964, %v1004, %v997
          %v1079 = vunpack.c.l.s4 1983009808
          %v1080 = vunpack.c.0.s8 %v1079
          %v1081 = vperm.slane %v1077, %v1080
          %v1082 = vrot.slane %v1005, 4
          %v1083 = vsel %vm964, %v1082, %v1003
          %v1085 = vunpack.c.l.s4 1983009808
          %v1086 = vunpack.c.0.s8 %v1085
          %v1087 = vperm.slane %v1083, %v1086
          %v1088 = vrot.slane %v1087, 4
          %v1089 = vsel %vm964, %v1088, %v1081
          %v1091 = vunpack.c.l.s4 1934713408
          %v1092 = vunpack.c.0.s8 %v1091
          %v1093 = vperm.slane %v1089, %v1092
          %v1094 = vrot.slane %v1093, 4
          %v1095 = vsel %vm964, 0, %v1094
          %v1096 = vsel %vm964, %v1030, %v1023
          %v1098 = vunpack.c.l.s4 1983009808
          %v1099 = vunpack.c.0.s8 %v1098
          %v1100 = vperm.slane %v1096, %v1099
          %v1101 = vrot.slane %v1031, 4
          %v1102 = vsel %vm964, %v1101, %v1029
          %v1104 = vunpack.c.l.s4 1983009808
          %v1105 = vunpack.c.0.s8 %v1104
          %v1106 = vperm.slane %v1102, %v1105
          %v1107 = vrot.slane %v1106, 4
          %v1108 = vsel %vm964, %v1107, %v1100
          %v1110 = vunpack.c.l.s4 1934713408
          %v1111 = vunpack.c.0.s8 %v1110
          %v1112 = vperm.slane %v1108, %v1111
          %v1113 = vrot.slane %v1112, 4
          %v1114 = vsel %vm964, 0, %v1113
          %v1115 = vsel %vm964, %v1056, %v1049
          %v1117 = vunpack.c.l.s4 1983009808
          %v1118 = vunpack.c.0.s8 %v1117
          %v1119 = vperm.slane %v1115, %v1118
          %v1120 = vrot.slane %v1057, 4
          %v1121 = vsel %vm964, %v1120, %v1055
          %v1123 = vunpack.c.l.s4 1983009808
          %v1124 = vunpack.c.0.s8 %v1123
          %v1125 = vperm.slane %v1121, %v1124
          %v1126 = vrot.slane %v1125, 4
          %v1127 = vsel %vm964, %v1126, %v1119
          %v1129 = vunpack.c.l.s4 1934713408
          %v1130 = vunpack.c.0.s8 %v1129
          %v1131 = vperm.slane %v1127, %v1130
          %v1132 = vrot.slane %v1131, 4
          %v1133 = vsel %vm964, 0, %v1132
          %v1136 = vpack.i.b16 %v1093, %v1074
          %v1138 = vshrl.u32 %v1074, 16
          %v1139 = vshrl.u32 %v1093, 16
          %v1140 = vpack.i.b16 %v1139, %v1138
          %v1144 = vpack.i.b16 %v1095, %v1076
          %v1146 = vshrl.u32 %v1076, 16
          %v1147 = vshrl.u32 %v1095, 16
          %v1148 = vpack.i.b16 %v1147, %v1146
          %v1152 = vpack.i.b16 %v1131, %v1112
          %v1154 = vshrl.u32 %v1112, 16
          %v1155 = vshrl.u32 %v1131, 16
          %v1156 = vpack.i.b16 %v1155, %v1154
          %v1160 = vpack.i.b16 %v1133, %v1114
          %v1162 = vshrl.u32 %v1114, 16
          %v1163 = vshrl.u32 %v1133, 16
          %v1164 = vpack.i.b16 %v1163, %v1162
          %vm1166 = vcmask 60416
          %1167 = vst.msk [vmem:[#allocation3] sm:$0xf] %vm1166, %v1136
          %1168 = vst.msk [vmem:[#allocation3 + $0x4] sm:$0xf] %vm1166, %v1152
          %1169 = vst.msk [vmem:[#allocation3 + $0x8] sm:$0xf] %vm1166, %v1140
          %1170 = vst.msk [vmem:[#allocation3 + $0xc] sm:$0xf] %vm1166, %v1156
          %1171 = vst.msk [vmem:[#allocation3 + $0x10] sm:$0xf] %vm1166, %v1144
          %1172 = vst.msk [vmem:[#allocation3 + $0x14] sm:$0xf] %vm1166, %v1160
          %1173 = vst.msk [vmem:[#allocation3 + $0x18] sm:$0xf] %vm1166, %v1148
          %1174 = vst.msk [vmem:[#allocation3 + $0x1c] sm:$0xf] %vm1166, %v1164
          %v1175 = vld [vmem:[%s12] sm:$0xf]
          %v1176 = vld [vmem:[%s12 + $0x4] sm:$0xf]
          %v1177 = vld [vmem:[%s12 + $0x8] sm:$0xf]
          %v1178 = vld [vmem:[%s12 + $0xc] sm:$0xf]
          %v1179 = vld [vmem:[%s13] sm:$0x1]
          %v1181 = vperm.slane %v1179, 0
          %v1187 = vunpack.c.l.b16 %v1175
          %v1188 = vunpack.c.l.b16 %v1176
          %v1189 = vunpack.c.l.b16 %v1177
          %v1190 = vunpack.c.l.b16 %v1178
          %v1191 = vpack.c.b16 %v1188, %v1187
          %v1192 = vpack.c.b16 %v1190, %v1189
          %1195 = vmatpush.bf16.msra.mxu0 0
          %1196 = vmatpush.bf16.msra.mxu0 0
          %1197 = vmatpush.bf16.msra.mxu0 0
          %1198 = vmatpush.bf16.msra.mxu0 0
          %1199 = vmatpush.bf16.msra.mxu0 0
          %1200 = vmatpush.bf16.msra.mxu0 0
          %1201 = vmatpush.bf16.msra.mxu0 %v1192
          %1202 = vmatpush.bf16.msra.mxu0 %v1191
          %1203 = vmatmul.bf16.gmra.mxu0 %v897
          %v1204 = vpop.f32.mrf.mxu0
          %v1205 = vadd.f32 %v1181, %v1204
          %v1206 = vpop.f32.mrf.mxu0
          %v1207 = vadd.f32 %v1181, %v1206
          %1208 = vdwg.mxu0
          %v1209 = vpack.c.bf16 %v1205, %v1205
          %v1210 = vpack.c.bf16 %v1207, %v1207
          %1213 = vrot.lane.b32.xlu0 %v1209, 120
          %v1214 = vpop.permute.xlu0 %1213
          %1215 = vrot.lane.b32.xlu0 %v1210, 120
          %v1216 = vpop.permute.xlu0 %1215
          %1217 = vrot.lane.b32.xlu0 %v1209, 112
          %v1218 = vpop.permute.xlu0 %1217
          %1219 = vrot.lane.b32.xlu0 %v1210, 112
          %v1220 = vpop.permute.xlu0 %1219
          %1221 = vrot.lane.b32.xlu0 %v1209, 104
          %v1222 = vpop.permute.xlu0 %1221
          %1223 = vrot.lane.b32.xlu0 %v1210, 104
          %v1224 = vpop.permute.xlu0 %1223
          %v1227 = vpack.i.b16 %v1214, %v1209
          %v1228 = vshrl.u32 %v1209, 16
          %v1229 = vshrl.u32 %v1214, 16
          %v1230 = vpack.i.b16 %v1229, %v1228
          %v1233 = vpack.i.b16 %v1222, %v1218
          %v1234 = vshrl.u32 %v1218, 16
          %v1235 = vshrl.u32 %v1222, 16
          %v1236 = vpack.i.b16 %v1235, %v1234
          %v1239 = vpack.i.b16 %v1216, %v1210
          %v1240 = vshrl.u32 %v1210, 16
          %v1241 = vshrl.u32 %v1216, 16
          %v1242 = vpack.i.b16 %v1241, %v1240
          %v1245 = vpack.i.b16 %v1224, %v1220
          %v1246 = vshrl.u32 %v1220, 16
          %v1247 = vshrl.u32 %v1224, 16
          %v1248 = vpack.i.b16 %v1247, %v1246
          %v1251 = vunpack.c.l.s4 1983009808
          %v1252 = vunpack.c.0.s8 %v1251
          %v1253 = vperm.slane %v1227, %v1252
          %v1256 = vunpack.c.l.s4 1983009808
          %v1257 = vunpack.c.0.s8 %v1256
          %v1258 = vperm.slane %v1233, %v1257
          %v1259 = vrot.slane %v1258, 4
          %v1260 = vsel %vm964, %v1259, %v1253
          %v1261 = vrot.slane %v1253, 4
          %v1262 = vsel %vm964, %v1258, %v1261
          %v1264 = vunpack.c.l.s4 1934713408
          %v1265 = vunpack.c.0.s8 %v1264
          %v1266 = vperm.slane %v1260, %v1265
          %v1268 = vunpack.c.l.s4 1934713408
          %v1269 = vunpack.c.0.s8 %v1268
          %v1270 = vperm.slane %v1262, %v1269
          %v1271 = vrot.slane %v1266, 4
          %v1272 = vsel %vm964, 0, %v1271
          %v1273 = vrot.slane %v1270, 4
          %v1274 = vsel %vm964, 0, %v1273
          %v1277 = vunpack.c.l.s4 1983009808
          %v1278 = vunpack.c.0.s8 %v1277
          %v1279 = vperm.slane %v1230, %v1278
          %v1282 = vunpack.c.l.s4 1983009808
          %v1283 = vunpack.c.0.s8 %v1282
          %v1284 = vperm.slane %v1236, %v1283
          %v1285 = vrot.slane %v1284, 4
          %v1286 = vsel %vm964, %v1285, %v1279
          %v1287 = vrot.slane %v1279, 4
          %v1288 = vsel %vm964, %v1284, %v1287
          %v1290 = vunpack.c.l.s4 1934713408
          %v1291 = vunpack.c.0.s8 %v1290
          %v1292 = vperm.slane %v1286, %v1291
          %v1294 = vunpack.c.l.s4 1934713408
          %v1295 = vunpack.c.0.s8 %v1294
          %v1296 = vperm.slane %v1288, %v1295
          %v1297 = vrot.slane %v1292, 4
          %v1298 = vsel %vm964, 0, %v1297
          %v1299 = vrot.slane %v1296, 4
          %v1300 = vsel %vm964, 0, %v1299
          %v1303 = vunpack.c.l.s4 1983009808
          %v1304 = vunpack.c.0.s8 %v1303
          %v1305 = vperm.slane %v1239, %v1304
          %v1308 = vunpack.c.l.s4 1983009808
          %v1309 = vunpack.c.0.s8 %v1308
          %v1310 = vperm.slane %v1245, %v1309
          %v1311 = vrot.slane %v1310, 4
          %v1312 = vsel %vm964, %v1311, %v1305
          %v1313 = vrot.slane %v1305, 4
          %v1314 = vsel %vm964, %v1310, %v1313
          %v1316 = vunpack.c.l.s4 1934713408
          %v1317 = vunpack.c.0.s8 %v1316
          %v1318 = vperm.slane %v1312, %v1317
          %v1320 = vunpack.c.l.s4 1934713408
          %v1321 = vunpack.c.0.s8 %v1320
          %v1322 = vperm.slane %v1314, %v1321
          %v1323 = vrot.slane %v1318, 4
          %v1324 = vsel %vm964, 0, %v1323
          %v1325 = vrot.slane %v1322, 4
          %v1326 = vsel %vm964, 0, %v1325
          %v1329 = vunpack.c.l.s4 1983009808
          %v1330 = vunpack.c.0.s8 %v1329
          %v1331 = vperm.slane %v1242, %v1330
          %v1334 = vunpack.c.l.s4 1983009808
          %v1335 = vunpack.c.0.s8 %v1334
          %v1336 = vperm.slane %v1248, %v1335
          %v1337 = vrot.slane %v1336, 4
          %v1338 = vsel %vm964, %v1337, %v1331
          %v1339 = vrot.slane %v1331, 4
          %v1340 = vsel %vm964, %v1336, %v1339
          %v1342 = vunpack.c.l.s4 1934713408
          %v1343 = vunpack.c.0.s8 %v1342
          %v1344 = vperm.slane %v1338, %v1343
          %v1346 = vunpack.c.l.s4 1934713408
          %v1347 = vunpack.c.0.s8 %v1346
          %v1348 = vperm.slane %v1340, %v1347
          %v1349 = vrot.slane %v1344, 4
          %v1350 = vsel %vm964, 0, %v1349
          %v1351 = vrot.slane %v1348, 4
          %v1352 = vsel %vm964, 0, %v1351
          %v1353 = vsel %vm964, %v1273, %v1266
          %v1355 = vunpack.c.l.s4 1983009808
          %v1356 = vunpack.c.0.s8 %v1355
          %v1357 = vperm.slane %v1353, %v1356
          %v1358 = vrot.slane %v1274, 4
          %v1359 = vsel %vm964, %v1358, %v1272
          %v1361 = vunpack.c.l.s4 1983009808
          %v1362 = vunpack.c.0.s8 %v1361
          %v1363 = vperm.slane %v1359, %v1362
          %v1364 = vrot.slane %v1363, 4
          %v1365 = vsel %vm964, %v1364, %v1357
          %v1367 = vunpack.c.l.s4 1934713408
          %v1368 = vunpack.c.0.s8 %v1367
          %v1369 = vperm.slane %v1365, %v1368
          %v1370 = vrot.slane %v1369, 4
          %v1371 = vsel %vm964, 0, %v1370
          %v1372 = vsel %vm964, %v1299, %v1292
          %v1374 = vunpack.c.l.s4 1983009808
          %v1375 = vunpack.c.0.s8 %v1374
          %v1376 = vperm.slane %v1372, %v1375
          %v1377 = vrot.slane %v1300, 4
          %v1378 = vsel %vm964, %v1377, %v1298
          %v1380 = vunpack.c.l.s4 1983009808
          %v1381 = vunpack.c.0.s8 %v1380
          %v1382 = vperm.slane %v1378, %v1381
          %v1383 = vrot.slane %v1382, 4
          %v1384 = vsel %vm964, %v1383, %v1376
          %v1386 = vunpack.c.l.s4 1934713408
          %v1387 = vunpack.c.0.s8 %v1386
          %v1388 = vperm.slane %v1384, %v1387
          %v1389 = vrot.slane %v1388, 4
          %v1390 = vsel %vm964, 0, %v1389
          %v1391 = vsel %vm964, %v1325, %v1318
          %v1393 = vunpack.c.l.s4 1983009808
          %v1394 = vunpack.c.0.s8 %v1393
          %v1395 = vperm.slane %v1391, %v1394
          %v1396 = vrot.slane %v1326, 4
          %v1397 = vsel %vm964, %v1396, %v1324
          %v1399 = vunpack.c.l.s4 1983009808
          %v1400 = vunpack.c.0.s8 %v1399
          %v1401 = vperm.slane %v1397, %v1400
          %v1402 = vrot.slane %v1401, 4
          %v1403 = vsel %vm964, %v1402, %v1395
          %v1405 = vunpack.c.l.s4 1934713408
          %v1406 = vunpack.c.0.s8 %v1405
          %v1407 = vperm.slane %v1403, %v1406
          %v1408 = vrot.slane %v1407, 4
          %v1409 = vsel %vm964, 0, %v1408
          %v1410 = vsel %vm964, %v1351, %v1344
          %v1412 = vunpack.c.l.s4 1983009808
          %v1413 = vunpack.c.0.s8 %v1412
          %v1414 = vperm.slane %v1410, %v1413
          %v1415 = vrot.slane %v1352, 4
          %v1416 = vsel %vm964, %v1415, %v1350
          %v1418 = vunpack.c.l.s4 1983009808
          %v1419 = vunpack.c.0.s8 %v1418
          %v1420 = vperm.slane %v1416, %v1419
          %v1421 = vrot.slane %v1420, 4
          %v1422 = vsel %vm964, %v1421, %v1414
          %v1424 = vunpack.c.l.s4 1934713408
          %v1425 = vunpack.c.0.s8 %v1424
          %v1426 = vperm.slane %v1422, %v1425
          %v1427 = vrot.slane %v1426, 4
          %v1428 = vsel %vm964, 0, %v1427
          %v1431 = vpack.i.b16 %v1388, %v1369
          %v1433 = vshrl.u32 %v1369, 16
          %v1434 = vshrl.u32 %v1388, 16
          %v1435 = vpack.i.b16 %v1434, %v1433
          %v1439 = vpack.i.b16 %v1390, %v1371
          %v1441 = vshrl.u32 %v1371, 16
          %v1442 = vshrl.u32 %v1390, 16
          %v1443 = vpack.i.b16 %v1442, %v1441
          %v1447 = vpack.i.b16 %v1426, %v1407
          %v1449 = vshrl.u32 %v1407, 16
          %v1450 = vshrl.u32 %v1426, 16
          %v1451 = vpack.i.b16 %v1450, %v1449
          %v1455 = vpack.i.b16 %v1428, %v1409
          %v1457 = vshrl.u32 %v1409, 16
          %v1458 = vshrl.u32 %v1428, 16
          %v1459 = vpack.i.b16 %v1458, %v1457
          %1461 = vst.msk [vmem:[#allocation4] sm:$0xf] %vm1166, %v1431
          %1462 = vst.msk [vmem:[#allocation4 + $0x4] sm:$0xf] %vm1166, %v1447
          %1463 = vst.msk [vmem:[#allocation4 + $0x8] sm:$0xf] %vm1166, %v1435
          %1464 = vst.msk [vmem:[#allocation4 + $0xc] sm:$0xf] %vm1166, %v1451
          %1465 = vst.msk [vmem:[#allocation4 + $0x10] sm:$0xf] %vm1166, %v1439
          %1466 = vst.msk [vmem:[#allocation4 + $0x14] sm:$0xf] %vm1166, %v1455
          %1467 = vst.msk [vmem:[#allocation4 + $0x18] sm:$0xf] %vm1166, %v1443
          %1468 = vst.msk [vmem:[#allocation4 + $0x1c] sm:$0xf] %vm1166, %v1459
          %v1469 = vld [vmem:[%s793] sm:$0xff]
          %v1470 = vpack.c.bf16 %v1469, %v1469
          %v1471 = vld [vmem:[%s17] sm:$0xff]
          %v1472 = vld [vmem:[%s17 + $0x8] sm:$0xff]
          %v1475 = vunpack.c.l.b16 %v1471
          %v1476 = vunpack.c.h.b16 %v1471
          %v1477 = vunpack.c.l.b16 %v1472
          %v1478 = vunpack.c.h.b16 %v1472
          %v1479 = vpack.c.b16 %v1477, %v1475
          %v1480 = vpack.c.b16 %v1478, %v1476
          %vm1483 = vcmask 130048
          %v1485 = vsel %vm1483, %v1470, 0
          %1487 = vmatpush.bf16.msra.mxu0 0
          %1488 = vmatpush.bf16.msra.mxu0 0
          %1489 = vmatpush.bf16.msra.mxu0 0
          %1490 = vmatpush.bf16.msra.mxu0 0
          %1491 = vmatpush.bf16.msra.mxu0 0
          %1492 = vmatpush.bf16.msra.mxu0 0
          %1493 = vmatpush.bf16.msra.mxu0 0
          %1494 = vmatpush.bf16.msra.mxu0 %v1479
          %1495 = vmatmul.bf16.gmra.mxu0 %v1485
          %v1496 = vpop.f32.mrf.mxu0
          %v1497 = vadd.f32 0.0, %v1496
          %v1498 = vpop.f32.mrf.mxu0
          %1499 = vdwg.mxu0
          %1500 = vmatpush.bf16.msra.mxu0 0
          %1501 = vmatpush.bf16.msra.mxu0 0
          %1502 = vmatpush.bf16.msra.mxu0 0
          %1503 = vmatpush.bf16.msra.mxu0 0
          %1504 = vmatpush.bf16.msra.mxu0 0
          %1505 = vmatpush.bf16.msra.mxu0 0
          %1506 = vmatpush.bf16.msra.mxu0 0
          %1507 = vmatpush.bf16.msra.mxu0 %v1480
          %1508 = vmatmul.bf16.gmra.mxu0 %v1485
          %v1509 = vpop.f32.mrf.mxu0
          %v1510 = vadd.f32 0.0, %v1509
          %v1511 = vpop.f32.mrf.mxu0
          %1512 = vdwg.mxu0
          %v1513 = vpack.c.bf16 %v1510, %v1497
          %v1515 = vrot.slane %v1513, 4
          %1516 = vrot.lane.b32.xlu0 %v1513, 64
          %v1517 = vpop.permute.xlu0 %1516
          %v1518 = vrot.slane %v1517, 4
          %v1521 = vpack.i.b16 %v1517, %v1513
          %v1522 = vshrl.u32 %v1513, 16
          %v1523 = vshrl.u32 %v1517, 16
          %v1524 = vpack.i.b16 %v1523, %v1522
          %v1527 = vpack.i.b16 %v1518, %v1515
          %v1528 = vshrl.u32 %v1515, 16
          %v1529 = vshrl.u32 %v1518, 16
          %v1530 = vpack.i.b16 %v1529, %v1528
          %v1533 = vunpack.c.l.s4 1983009808
          %v1534 = vunpack.c.0.s8 %v1533
          %v1535 = vperm.slane %v1521, %v1534
          %v1538 = vunpack.c.l.s4 1983009808
          %v1539 = vunpack.c.0.s8 %v1538
          %v1540 = vperm.slane %v1527, %v1539
          %v1541 = vrot.slane %v1540, 4
          %v1542 = vsel %vm964, %v1541, %v1535
          %v1543 = vrot.slane %v1535, 4
          %v1544 = vsel %vm964, %v1540, %v1543
          %v1546 = vunpack.c.l.s4 1934713408
          %v1547 = vunpack.c.0.s8 %v1546
          %v1548 = vperm.slane %v1542, %v1547
          %v1550 = vunpack.c.l.s4 1934713408
          %v1551 = vunpack.c.0.s8 %v1550
          %v1552 = vperm.slane %v1544, %v1551
          %v1553 = vrot.slane %v1548, 4
          %v1554 = vsel %vm964, 0, %v1553
          %v1555 = vrot.slane %v1552, 4
          %v1556 = vsel %vm964, 0, %v1555
          %v1559 = vunpack.c.l.s4 1983009808
          %v1560 = vunpack.c.0.s8 %v1559
          %v1561 = vperm.slane %v1524, %v1560
          %v1564 = vunpack.c.l.s4 1983009808
          %v1565 = vunpack.c.0.s8 %v1564
          %v1566 = vperm.slane %v1530, %v1565
          %v1567 = vrot.slane %v1566, 4
          %v1568 = vsel %vm964, %v1567, %v1561
          %v1569 = vrot.slane %v1561, 4
          %v1570 = vsel %vm964, %v1566, %v1569
          %v1572 = vunpack.c.l.s4 1934713408
          %v1573 = vunpack.c.0.s8 %v1572
          %v1574 = vperm.slane %v1568, %v1573
          %v1576 = vunpack.c.l.s4 1934713408
          %v1577 = vunpack.c.0.s8 %v1576
          %v1578 = vperm.slane %v1570, %v1577
          %v1579 = vrot.slane %v1574, 4
          %v1580 = vsel %vm964, 0, %v1579
          %v1581 = vrot.slane %v1578, 4
          %v1582 = vsel %vm964, 0, %v1581
          %v1583 = vsel %vm964, %v1555, %v1548
          %v1585 = vunpack.c.l.s4 1983009808
          %v1586 = vunpack.c.0.s8 %v1585
          %v1587 = vperm.slane %v1583, %v1586
          %v1588 = vrot.slane %v1556, 4
          %v1589 = vsel %vm964, %v1588, %v1554
          %v1591 = vunpack.c.l.s4 1983009808
          %v1592 = vunpack.c.0.s8 %v1591
          %v1593 = vperm.slane %v1589, %v1592
          %v1594 = vrot.slane %v1593, 4
          %v1595 = vsel %vm964, %v1594, %v1587
          %v1597 = vunpack.c.l.s4 1934713408
          %v1598 = vunpack.c.0.s8 %v1597
          %v1599 = vperm.slane %v1595, %v1598
          %v1600 = vrot.slane %v1599, 4
          %v1601 = vsel %vm964, 0, %v1600
          %v1602 = vsel %vm964, %v1581, %v1574
          %v1604 = vunpack.c.l.s4 1983009808
          %v1605 = vunpack.c.0.s8 %v1604
          %v1606 = vperm.slane %v1602, %v1605
          %v1607 = vrot.slane %v1582, 4
          %v1608 = vsel %vm964, %v1607, %v1580
          %v1610 = vunpack.c.l.s4 1983009808
          %v1611 = vunpack.c.0.s8 %v1610
          %v1612 = vperm.slane %v1608, %v1611
          %v1613 = vrot.slane %v1612, 4
          %v1614 = vsel %vm964, %v1613, %v1606
          %v1616 = vunpack.c.l.s4 1934713408
          %v1617 = vunpack.c.0.s8 %v1616
          %v1618 = vperm.slane %v1614, %v1617
          %v1619 = vrot.slane %v1618, 4
          %v1620 = vsel %vm964, 0, %v1619
          %v1623 = vpack.i.b16 %v1618, %v1599
          %v1625 = vshrl.u32 %v1599, 16
          %v1626 = vshrl.u32 %v1618, 16
          %v1627 = vpack.i.b16 %v1626, %v1625
          %v1631 = vpack.i.b16 %v1620, %v1601
          %v1633 = vshrl.u32 %v1601, 16
          %v1634 = vshrl.u32 %v1620, 16
          %v1635 = vpack.i.b16 %v1634, %v1633
          %vm1637 = vcmask 519168
          %1638 = vst.msk [vmem:[#allocation5] sm:$0xf] %vm1637, %v1623
          %1639 = vst.msk [vmem:[#allocation5 + $0x4] sm:$0xf] %vm1637, %v1627
          %1640 = vst.msk [vmem:[#allocation5 + $0x8] sm:$0xf] %vm1637, %v1631
          %1641 = vst.msk [vmem:[#allocation5 + $0xc] sm:$0xf] %vm1637, %v1635
          %v1642 = vld [vmem:[%s18] sm:$0xff]
          %v1643 = vld [vmem:[%s18 + $0x8] sm:$0xff]
          %v1646 = vunpack.c.l.b16 %v1642
          %v1647 = vunpack.c.h.b16 %v1642
          %v1648 = vunpack.c.l.b16 %v1643
          %v1649 = vunpack.c.h.b16 %v1643
          %v1650 = vpack.c.b16 %v1648, %v1646
          %v1651 = vpack.c.b16 %v1649, %v1647
          %1654 = vmatpush.bf16.msra.mxu0 0
          %1655 = vmatpush.bf16.msra.mxu0 0
          %1656 = vmatpush.bf16.msra.mxu0 0
          %1657 = vmatpush.bf16.msra.mxu0 0
          %1658 = vmatpush.bf16.msra.mxu0 0
          %1659 = vmatpush.bf16.msra.mxu0 0
          %1660 = vmatpush.bf16.msra.mxu0 0
          %1661 = vmatpush.bf16.msra.mxu0 %v1650
          %1662 = vmatmul.bf16.gmra.mxu0 %v1485
          %v1663 = vpop.f32.mrf.mxu0
          %v1664 = vadd.f32 0.0, %v1663
          %v1665 = vpop.f32.mrf.mxu0
          %1666 = vdwg.mxu0
          %1667 = vmatpush.bf16.msra.mxu0 0
          %1668 = vmatpush.bf16.msra.mxu0 0
          %1669 = vmatpush.bf16.msra.mxu0 0
          %1670 = vmatpush.bf16.msra.mxu0 0
          %1671 = vmatpush.bf16.msra.mxu0 0
          %1672 = vmatpush.bf16.msra.mxu0 0
          %1673 = vmatpush.bf16.msra.mxu0 0
          %1674 = vmatpush.bf16.msra.mxu0 %v1651
          %1675 = vmatmul.bf16.gmra.mxu0 %v1485
          %v1676 = vpop.f32.mrf.mxu0
          %v1677 = vadd.f32 0.0, %v1676
          %v1678 = vpop.f32.mrf.mxu0
          %1679 = vdwg.mxu0
          %v1680 = vpack.c.bf16 %v1677, %v1664
          %v1682 = vrot.slane %v1680, 4
          %1683 = vrot.lane.b32.xlu0 %v1680, 64
          %v1684 = vpop.permute.xlu0 %1683
          %v1685 = vrot.slane %v1684, 4
          %v1688 = vpack.i.b16 %v1684, %v1680
          %v1689 = vshrl.u32 %v1680, 16
          %v1690 = vshrl.u32 %v1684, 16
          %v1691 = vpack.i.b16 %v1690, %v1689
          %v1694 = vpack.i.b16 %v1685, %v1682
          %v1695 = vshrl.u32 %v1682, 16
          %v1696 = vshrl.u32 %v1685, 16
          %v1697 = vpack.i.b16 %v1696, %v1695
          %v1700 = vunpack.c.l.s4 1983009808
          %v1701 = vunpack.c.0.s8 %v1700
          %v1702 = vperm.slane %v1688, %v1701
          %v1705 = vunpack.c.l.s4 1983009808
          %v1706 = vunpack.c.0.s8 %v1705
          %v1707 = vperm.slane %v1694, %v1706
          %v1708 = vrot.slane %v1707, 4
          %v1709 = vsel %vm964, %v1708, %v1702
          %v1710 = vrot.slane %v1702, 4
          %v1711 = vsel %vm964, %v1707, %v1710
          %v1713 = vunpack.c.l.s4 1934713408
          %v1714 = vunpack.c.0.s8 %v1713
          %v1715 = vperm.slane %v1709, %v1714
          %v1717 = vunpack.c.l.s4 1934713408
          %v1718 = vunpack.c.0.s8 %v1717
          %v1719 = vperm.slane %v1711, %v1718
          %v1720 = vrot.slane %v1715, 4
          %v1721 = vsel %vm964, 0, %v1720
          %v1722 = vrot.slane %v1719, 4
          %v1723 = vsel %vm964, 0, %v1722
          %v1726 = vunpack.c.l.s4 1983009808
          %v1727 = vunpack.c.0.s8 %v1726
          %v1728 = vperm.slane %v1691, %v1727
          %v1731 = vunpack.c.l.s4 1983009808
          %v1732 = vunpack.c.0.s8 %v1731
          %v1733 = vperm.slane %v1697, %v1732
          %v1734 = vrot.slane %v1733, 4
          %v1735 = vsel %vm964, %v1734, %v1728
          %v1736 = vrot.slane %v1728, 4
          %v1737 = vsel %vm964, %v1733, %v1736
          %v1739 = vunpack.c.l.s4 1934713408
          %v1740 = vunpack.c.0.s8 %v1739
          %v1741 = vperm.slane %v1735, %v1740
          %v1743 = vunpack.c.l.s4 1934713408
          %v1744 = vunpack.c.0.s8 %v1743
          %v1745 = vperm.slane %v1737, %v1744
          %v1746 = vrot.slane %v1741, 4
          %v1747 = vsel %vm964, 0, %v1746
          %v1748 = vrot.slane %v1745, 4
          %v1749 = vsel %vm964, 0, %v1748
          %v1750 = vsel %vm964, %v1722, %v1715
          %v1752 = vunpack.c.l.s4 1983009808
          %v1753 = vunpack.c.0.s8 %v1752
          %v1754 = vperm.slane %v1750, %v1753
          %v1755 = vrot.slane %v1723, 4
          %v1756 = vsel %vm964, %v1755, %v1721
          %v1758 = vunpack.c.l.s4 1983009808
          %v1759 = vunpack.c.0.s8 %v1758
          %v1760 = vperm.slane %v1756, %v1759
          %v1761 = vrot.slane %v1760, 4
          %v1762 = vsel %vm964, %v1761, %v1754
          %v1764 = vunpack.c.l.s4 1934713408
          %v1765 = vunpack.c.0.s8 %v1764
          %v1766 = vperm.slane %v1762, %v1765
          %v1767 = vrot.slane %v1766, 4
          %v1768 = vsel %vm964, 0, %v1767
          %v1769 = vsel %vm964, %v1748, %v1741
          %v1771 = vunpack.c.l.s4 1983009808
          %v1772 = vunpack.c.0.s8 %v1771
          %v1773 = vperm.slane %v1769, %v1772
          %v1774 = vrot.slane %v1749, 4
          %v1775 = vsel %vm964, %v1774, %v1747
          %v1777 = vunpack.c.l.s4 1983009808
          %v1778 = vunpack.c.0.s8 %v1777
          %v1779 = vperm.slane %v1775, %v1778
          %v1780 = vrot.slane %v1779, 4
          %v1781 = vsel %vm964, %v1780, %v1773
          %v1783 = vunpack.c.l.s4 1934713408
          %v1784 = vunpack.c.0.s8 %v1783
          %v1785 = vperm.slane %v1781, %v1784
          %v1786 = vrot.slane %v1785, 4
          %v1787 = vsel %vm964, 0, %v1786
          %v1790 = vpack.i.b16 %v1785, %v1766
          %v1792 = vshrl.u32 %v1766, 16
          %v1793 = vshrl.u32 %v1785, 16
          %v1794 = vpack.i.b16 %v1793, %v1792
          %v1798 = vpack.i.b16 %v1787, %v1768
          %v1800 = vshrl.u32 %v1768, 16
          %v1801 = vshrl.u32 %v1787, 16
          %v1802 = vpack.i.b16 %v1801, %v1800
          %1804 = vst.msk [vmem:[#allocation6] sm:$0xf] %vm1637, %v1790
          %1805 = vst.msk [vmem:[#allocation6 + $0x4] sm:$0xf] %vm1637, %v1794
          %1806 = vst.msk [vmem:[#allocation6 + $0x8] sm:$0xf] %vm1637, %v1798
          %1807 = vst.msk [vmem:[#allocation6 + $0xc] sm:$0xf] %vm1637, %v1802
        $region124: #{tpu_custom_call.1} parent=119 // pred_fallthru
          _
        %s1808 = scalar_lea.vmem %s789, %s795
        %v1809 = vld [vmem:[%s1808] sm:$0xff]
        %s1810 = sshra.s32 %s795, 3
        %s1811 = sand.u32 %s795, 7
        %s1812 = smul.addr %s1810, 4
        %s1813 = scalar_lea.vmem [#allocation2], %s1812
        %v1814 = vld [vmem:[%s1813] sm:$0xf]
        %v1815 = vld [vmem:[%s8] sm:$0xf]
        %v1816 = vld [vmem:[%s8 + $0x4] sm:$0xf]
        %v1817 = vld [vmem:[%s8 + $0x8] sm:$0xf]
        %v1818 = vld [vmem:[%s8 + $0xc] sm:$0xf]
        %v1819 = vld [vmem:[%s9] sm:$0x1]
        %v1821 = vperm.slane %v1819, 0
        %v1827 = vunpack.c.l.b16 %v1815
        %v1828 = vunpack.c.l.b16 %v1816
        %v1829 = vunpack.c.l.b16 %v1817
        %v1830 = vunpack.c.l.b16 %v1818
        %v1831 = vpack.c.b16 %v1828, %v1827
        %v1832 = vpack.c.b16 %v1830, %v1829
        %vm1835 = vcmask 261120
        %v1837 = vsel %vm1835, %v1814, 0
        %1839 = vmatpush.bf16.msra.mxu0 0
        %1840 = vmatpush.bf16.msra.mxu0 0
        %1841 = vmatpush.bf16.msra.mxu0 0
        %1842 = vmatpush.bf16.msra.mxu0 0
        %1843 = vmatpush.bf16.msra.mxu0 0
        %1844 = vmatpush.bf16.msra.mxu0 0
        %1845 = vmatpush.bf16.msra.mxu0 %v1832
        %1846 = vmatpush.bf16.msra.mxu0 %v1831
        %1847 = vmatmul.bf16.gmra.mxu0 %v1837
        %v1848 = vpop.f32.mrf.mxu0
        %v1849 = vadd.f32 %v1821, %v1848
        %v1850 = vpop.f32.mrf.mxu0
        %1851 = vdwg.mxu0
        %v1852 = vld [vmem:[#allocation3] sm:$0xf]
        %v1853 = vld [vmem:[#allocation3 + $0x4] sm:$0xf]
        %v1854 = vld [vmem:[#allocation3 + $0x8] sm:$0xf]
        %v1855 = vld [vmem:[#allocation3 + $0xc] sm:$0xf]
        %v1856 = vld [vmem:[#allocation3 + $0x10] sm:$0xf]
        %v1857 = vld [vmem:[#allocation3 + $0x14] sm:$0xf]
        %v1858 = vld [vmem:[#allocation3 + $0x18] sm:$0xf]
        %v1859 = vld [vmem:[#allocation3 + $0x1c] sm:$0xf]
        %v1860 = vld [vmem:[#allocation4] sm:$0xf]
        %v1861 = vld [vmem:[#allocation4 + $0x4] sm:$0xf]
        %v1862 = vld [vmem:[#allocation4 + $0x8] sm:$0xf]
        %v1863 = vld [vmem:[#allocation4 + $0xc] sm:$0xf]
        %v1864 = vld [vmem:[#allocation4 + $0x10] sm:$0xf]
        %v1865 = vld [vmem:[#allocation4 + $0x14] sm:$0xf]
        %v1866 = vld [vmem:[#allocation4 + $0x18] sm:$0xf]
        %v1867 = vld [vmem:[#allocation4 + $0x1c] sm:$0xf]
        %v1868 = vmul.f32 %v1849, 0.35355338
        %v1869 = vpack.c.bf16 %v1868, %v1868
        %1871 = vrot.lane.b32.xlu0 %v1869, 120
        %v1872 = vpop.permute.xlu0 %1871
        %1873 = vrot.lane.b32.xlu0 %v1869, 112
        %v1874 = vpop.permute.xlu0 %1873
        %1875 = vrot.lane.b32.xlu0 %v1869, 104
        %v1876 = vpop.permute.xlu0 %1875
        %v1879 = vpack.i.b16 %v1872, %v1869
        %v1880 = vshrl.u32 %v1869, 16
        %v1881 = vshrl.u32 %v1872, 16
        %v1882 = vpack.i.b16 %v1881, %v1880
        %v1885 = vpack.i.b16 %v1876, %v1874
        %v1886 = vshrl.u32 %v1874, 16
        %v1887 = vshrl.u32 %v1876, 16
        %v1888 = vpack.i.b16 %v1887, %v1886
        %v1891 = vunpack.c.l.s4 1983009808
        %v1892 = vunpack.c.0.s8 %v1891
        %v1893 = vperm.slane %v1879, %v1892
        %v1896 = vunpack.c.l.s4 1983009808
        %v1897 = vunpack.c.0.s8 %v1896
        %v1898 = vperm.slane %v1885, %v1897
        %v1899 = vrot.slane %v1898, 4
        %vm1900 = vcmask 1047556
        %v1901 = vsel %vm1900, %v1899, %v1893
        %v1902 = vrot.slane %v1893, 4
        %v1903 = vsel %vm1900, %v1898, %v1902
        %v1905 = vunpack.c.l.s4 1934713408
        %v1906 = vunpack.c.0.s8 %v1905
        %v1907 = vperm.slane %v1901, %v1906
        %v1909 = vunpack.c.l.s4 1934713408
        %v1910 = vunpack.c.0.s8 %v1909
        %v1911 = vperm.slane %v1903, %v1910
        %v1912 = vrot.slane %v1907, 4
        %v1913 = vsel %vm1900, 0, %v1912
        %v1914 = vrot.slane %v1911, 4
        %v1915 = vsel %vm1900, 0, %v1914
        %v1918 = vunpack.c.l.s4 1983009808
        %v1919 = vunpack.c.0.s8 %v1918
        %v1920 = vperm.slane %v1882, %v1919
        %v1923 = vunpack.c.l.s4 1983009808
        %v1924 = vunpack.c.0.s8 %v1923
        %v1925 = vperm.slane %v1888, %v1924
        %v1926 = vrot.slane %v1925, 4
        %v1927 = vsel %vm1900, %v1926, %v1920
        %v1928 = vrot.slane %v1920, 4
        %v1929 = vsel %vm1900, %v1925, %v1928
        %v1931 = vunpack.c.l.s4 1934713408
        %v1932 = vunpack.c.0.s8 %v1931
        %v1933 = vperm.slane %v1927, %v1932
        %v1935 = vunpack.c.l.s4 1934713408
        %v1936 = vunpack.c.0.s8 %v1935
        %v1937 = vperm.slane %v1929, %v1936
        %v1938 = vrot.slane %v1933, 4
        %v1939 = vsel %vm1900, 0, %v1938
        %v1940 = vrot.slane %v1937, 4
        %v1941 = vsel %vm1900, 0, %v1940
        %v1942 = vsel %vm1900, %v1914, %v1907
        %v1944 = vunpack.c.l.s4 1983009808
        %v1945 = vunpack.c.0.s8 %v1944
        %v1946 = vperm.slane %v1942, %v1945
        %v1947 = vrot.slane %v1915, 4
        %v1948 = vsel %vm1900, %v1947, %v1913
        %v1950 = vunpack.c.l.s4 1983009808
        %v1951 = vunpack.c.0.s8 %v1950
        %v1952 = vperm.slane %v1948, %v1951
        %v1953 = vrot.slane %v1952, 4
        %v1954 = vsel %vm1900, %v1953, %v1946
        %v1956 = vunpack.c.l.s4 1934713408
        %v1957 = vunpack.c.0.s8 %v1956
        %v1958 = vperm.slane %v1954, %v1957
        %v1959 = vrot.slane %v1958, 4
        %v1960 = vsel %vm1900, 0, %v1959
        %v1961 = vsel %vm1900, %v1940, %v1933
        %v1963 = vunpack.c.l.s4 1983009808
        %v1964 = vunpack.c.0.s8 %v1963
        %v1965 = vperm.slane %v1961, %v1964
        %v1966 = vrot.slane %v1941, 4
        %v1967 = vsel %vm1900, %v1966, %v1939
        %v1969 = vunpack.c.l.s4 1983009808
        %v1970 = vunpack.c.0.s8 %v1969
        %v1971 = vperm.slane %v1967, %v1970
        %v1972 = vrot.slane %v1971, 4
        %v1973 = vsel %vm1900, %v1972, %v1965
        %v1975 = vunpack.c.l.s4 1934713408
        %v1976 = vunpack.c.0.s8 %v1975
        %v1977 = vperm.slane %v1973, %v1976
        %v1978 = vrot.slane %v1977, 4
        %v1979 = vsel %vm1900, 0, %v1978
        %v1982 = vpack.i.b16 %v1977, %v1958
        %v1983 = vshrl.u32 %v1958, 16
        %v1984 = vshrl.u32 %v1977, 16
        %v1985 = vpack.i.b16 %v1984, %v1983
        %v1988 = vpack.i.b16 %v1979, %v1960
        %v1989 = vshrl.u32 %v1960, 16
        %v1990 = vshrl.u32 %v1979, 16
        %v1991 = vpack.i.b16 %v1990, %v1989
        %v1994 = vunpack.c.l.b16 %v1852
        %v1995 = vunpack.c.l.b16 %v1853
        %v1996 = vpack.c.b16 %v1995, %v1994
        %vm1997 = vcmask 64512
        %v1999 = vsel %vm1997, %v1982, 0
        %v2002 = vsel %vm1997, %v1996, 0
        %2004 = vmatpush.bf16.xpose.msra.mxu0 0
        %2005 = vmatpush.bf16.xpose.msra.mxu0 0
        %2006 = vmatpush.bf16.xpose.msra.mxu0 0
        %2007 = vmatpush.bf16.xpose.msra.mxu0 0
        %2008 = vmatpush.bf16.xpose.msra.mxu0 0
        %2009 = vmatpush.bf16.xpose.msra.mxu0 0
        %2010 = vmatpush.bf16.xpose.msra.mxu0 0
        %2011 = vmatpush.bf16.xpose.msra.mxu0 %v2002
        %2012 = vmatmul.bf16.gmra.mxu0 %v1999
        %v2013 = vpop.f32.mrf.mxu0
        %v2014 = vadd.f32 0.0, %v2013
        %v2015 = vpop.f32.mrf.mxu0
        %2016 = vdwg.mxu0
        %v2019 = vunpack.c.l.b16 %v1854
        %v2020 = vunpack.c.l.b16 %v1855
        %v2021 = vpack.c.b16 %v2020, %v2019
        %v2023 = vsel %vm1997, %v1985, 0
        %v2026 = vsel %vm1997, %v2021, 0
        %2028 = vmatpush.bf16.xpose.msra.mxu0 0
        %2029 = vmatpush.bf16.xpose.msra.mxu0 0
        %2030 = vmatpush.bf16.xpose.msra.mxu0 0
        %2031 = vmatpush.bf16.xpose.msra.mxu0 0
        %2032 = vmatpush.bf16.xpose.msra.mxu0 0
        %2033 = vmatpush.bf16.xpose.msra.mxu0 0
        %2034 = vmatpush.bf16.xpose.msra.mxu0 0
        %2035 = vmatpush.bf16.xpose.msra.mxu0 %v2026
        %2036 = vmatmul.bf16.gmra.mxu0 %v2023
        %v2037 = vpop.f32.mrf.mxu0
        %v2038 = vadd.f32 0.0, %v2037
        %v2039 = vpop.f32.mrf.mxu0
        %2040 = vdwg.mxu0
        %v2043 = vunpack.c.l.b16 %v1856
        %v2044 = vunpack.c.l.b16 %v1857
        %v2045 = vpack.c.b16 %v2044, %v2043
        %v2047 = vsel %vm1997, %v1988, 0
        %v2050 = vsel %vm1997, %v2045, 0
        %2052 = vmatpush.bf16.xpose.msra.mxu0 0
        %2053 = vmatpush.bf16.xpose.msra.mxu0 0
        %2054 = vmatpush.bf16.xpose.msra.mxu0 0
        %2055 = vmatpush.bf16.xpose.msra.mxu0 0
        %2056 = vmatpush.bf16.xpose.msra.mxu0 0
        %2057 = vmatpush.bf16.xpose.msra.mxu0 0
        %2058 = vmatpush.bf16.xpose.msra.mxu0 0
        %2059 = vmatpush.bf16.xpose.msra.mxu0 %v2050
        %2060 = vmatmul.bf16.gmra.mxu0 %v2047
        %v2061 = vpop.f32.mrf.mxu0
        %v2062 = vadd.f32 0.0, %v2061
        %v2063 = vpop.f32.mrf.mxu0
        %2064 = vdwg.mxu0
        %v2067 = vunpack.c.l.b16 %v1858
        %v2068 = vunpack.c.l.b16 %v1859
        %v2069 = vpack.c.b16 %v2068, %v2067
        %v2071 = vsel %vm1997, %v1991, 0
        %v2074 = vsel %vm1997, %v2069, 0
        %2076 = vmatpush.bf16.xpose.msra.mxu0 0
        %2077 = vmatpush.bf16.xpose.msra.mxu0 0
        %2078 = vmatpush.bf16.xpose.msra.mxu0 0
        %2079 = vmatpush.bf16.xpose.msra.mxu0 0
        %2080 = vmatpush.bf16.xpose.msra.mxu0 0
        %2081 = vmatpush.bf16.xpose.msra.mxu0 0
        %2082 = vmatpush.bf16.xpose.msra.mxu0 0
        %2083 = vmatpush.bf16.xpose.msra.mxu0 %v2074
        %2084 = vmatmul.bf16.gmra.mxu0 %v2071
        %v2085 = vpop.f32.mrf.mxu0
        %v2086 = vadd.f32 0.0, %v2085
        %v2087 = vpop.f32.mrf.mxu0
        %2088 = vdwg.mxu0
        %vm2089 = vcmask 130048
        %v2090 = vsel %vm2089, %v2014, -inf
        %2091 = vmax.xlane.f32.xlu0 %v2090
        %v2092 = vpop.xlane.xlu0 %2091
        %v2093 = vsel %vm2089, %v2038, -inf
        %2094 = vmax.xlane.f32.xlu0 %v2093
        %v2095 = vpop.xlane.xlu0 %2094
        %v2096 = vsel %vm2089, %v2062, -inf
        %2097 = vmax.xlane.f32.xlu0 %v2096
        %v2098 = vpop.xlane.xlu0 %2097
        %v2099 = vsel %vm2089, %v2086, -inf
        %2100 = vmax.xlane.f32.xlu0 %v2099
        %v2101 = vpop.xlane.xlu0 %2100
        %v2102 = vsub.f32 %v2014, %v2092
        %v2103 = vsub.f32 %v2038, %v2095
        %v2104 = vsub.f32 %v2062, %v2098
        %v2105 = vsub.f32 %v2086, %v2101
        %v2106 = vmul.f32 %v2102, 1.442695
        %v2107 = vpow.pop %v2106
        %v2108 = vmul.f32 %v2103, 1.442695
        %v2109 = vpow.pop %v2108
        %v2110 = vmul.f32 %v2104, 1.442695
        %v2111 = vpow.pop %v2110
        %v2112 = vmul.f32 %v2105, 1.442695
        %v2113 = vpow.pop %v2112
        %v2114 = vsel %vm2089, %v2107, 0.0
        %2115 = vadd.xlane.f32.xlu0 %v2114
        %v2116 = vpop.xlane.xlu0 %2115
        %v2117 = vsel %vm2089, %v2109, 0.0
        %2118 = vadd.xlane.f32.xlu0 %v2117
        %v2119 = vpop.xlane.xlu0 %2118
        %v2120 = vsel %vm2089, %v2111, 0.0
        %2121 = vadd.xlane.f32.xlu0 %v2120
        %v2122 = vpop.xlane.xlu0 %2121
        %v2123 = vsel %vm2089, %v2113, 0.0
        %2124 = vadd.xlane.f32.xlu0 %v2123
        %v2125 = vpop.xlane.xlu0 %2124
        %v2126 = vrcp.pop %v2116
        %v2127 = vrcp.pop %v2119
        %v2128 = vrcp.pop %v2122
        %v2129 = vrcp.pop %v2125
        %v2130 = vmul.f32 %v2107, %v2126
        %v2131 = vmul.f32 %v2109, %v2127
        %v2132 = vmul.f32 %v2111, %v2128
        %v2133 = vmul.f32 %v2113, %v2129
        %v2134 = vpack.c.bf16 %v2130, %v2130
        %v2135 = vpack.c.bf16 %v2131, %v2131
        %v2136 = vpack.c.bf16 %v2132, %v2132
        %v2137 = vpack.c.bf16 %v2133, %v2133
        %v2140 = vunpack.c.l.b16 %v1860
        %v2141 = vunpack.c.l.b16 %v1861
        %v2142 = vpack.c.b16 %v2141, %v2140
        %v2145 = vsel %vm2089, %v2134, 0
        %2147 = vmatpush.bf16.msra.mxu0 0
        %2148 = vmatpush.bf16.msra.mxu0 0
        %2149 = vmatpush.bf16.msra.mxu0 0
        %2150 = vmatpush.bf16.msra.mxu0 0
        %2151 = vmatpush.bf16.msra.mxu0 0
        %2152 = vmatpush.bf16.msra.mxu0 0
        %2153 = vmatpush.bf16.msra.mxu0 0
        %2154 = vmatpush.bf16.msra.mxu0 %v2142
        %2155 = vmatmul.bf16.gmra.mxu0 %v2145
        %v2156 = vpop.f32.mrf.mxu0
        %v2157 = vadd.f32 0.0, %v2156
        %v2158 = vpop.f32.mrf.mxu0
        %2159 = vdwg.mxu0
        %v2162 = vunpack.c.l.b16 %v1862
        %v2163 = vunpack.c.l.b16 %v1863
        %v2164 = vpack.c.b16 %v2163, %v2162
        %v2167 = vsel %vm2089, %v2135, 0
        %2169 = vmatpush.bf16.msra.mxu0 0
        %2170 = vmatpush.bf16.msra.mxu0 0
        %2171 = vmatpush.bf16.msra.mxu0 0
        %2172 = vmatpush.bf16.msra.mxu0 0
        %2173 = vmatpush.bf16.msra.mxu0 0
        %2174 = vmatpush.bf16.msra.mxu0 0
        %2175 = vmatpush.bf16.msra.mxu0 0
        %2176 = vmatpush.bf16.msra.mxu0 %v2164
        %2177 = vmatmul.bf16.gmra.mxu0 %v2167
        %v2178 = vpop.f32.mrf.mxu0
        %v2179 = vadd.f32 0.0, %v2178
        %v2180 = vpop.f32.mrf.mxu0
        %2181 = vdwg.mxu0
        %v2184 = vunpack.c.l.b16 %v1864
        %v2185 = vunpack.c.l.b16 %v1865
        %v2186 = vpack.c.b16 %v2185, %v2184
        %v2189 = vsel %vm2089, %v2136, 0
        %2191 = vmatpush.bf16.msra.mxu0 0
        %2192 = vmatpush.bf16.msra.mxu0 0
        %2193 = vmatpush.bf16.msra.mxu0 0
        %2194 = vmatpush.bf16.msra.mxu0 0
        %2195 = vmatpush.bf16.msra.mxu0 0
        %2196 = vmatpush.bf16.msra.mxu0 0
        %2197 = vmatpush.bf16.msra.mxu0 0
        %2198 = vmatpush.bf16.msra.mxu0 %v2186
        %2199 = vmatmul.bf16.gmra.mxu0 %v2189
        %v2200 = vpop.f32.mrf.mxu0
        %v2201 = vadd.f32 0.0, %v2200
        %v2202 = vpop.f32.mrf.mxu0
        %2203 = vdwg.mxu0
        %v2206 = vunpack.c.l.b16 %v1866
        %v2207 = vunpack.c.l.b16 %v1867
        %v2208 = vpack.c.b16 %v2207, %v2206
        %v2211 = vsel %vm2089, %v2137, 0
        %2213 = vmatpush.bf16.msra.mxu0 0
        %2214 = vmatpush.bf16.msra.mxu0 0
        %2215 = vmatpush.bf16.msra.mxu0 0
        %2216 = vmatpush.bf16.msra.mxu0 0
        %2217 = vmatpush.bf16.msra.mxu0 0
        %2218 = vmatpush.bf16.msra.mxu0 0
        %2219 = vmatpush.bf16.msra.mxu0 0
        %2220 = vmatpush.bf16.msra.mxu0 %v2208
        %2221 = vmatmul.bf16.gmra.mxu0 %v2211
        %v2222 = vpop.f32.mrf.mxu0
        %v2223 = vadd.f32 0.0, %v2222
        %v2224 = vpop.f32.mrf.mxu0
        %2225 = vdwg.mxu0
        %v2226 = vrot.slane %v2201, 4
        %vm2227 = vcmask 1047556
        %v2228 = vsel %vm2227, %v2226, %v2157
        %v2229 = vrot.slane %v2157, 4
        %v2230 = vsel %vm2227, %v2201, %v2229
        %v2232 = vunpack.c.l.s4 1983009808
        %v2233 = vunpack.c.0.s8 %v2232
        %v2234 = vperm.slane %v2228, %v2233
        %v2236 = vunpack.c.l.s4 1983009808
        %v2237 = vunpack.c.0.s8 %v2236
        %v2238 = vperm.slane %v2230, %v2237
        %v2239 = vrot.slane %v2223, 4
        %v2240 = vsel %vm2227, %v2239, %v2179
        %v2241 = vrot.slane %v2179, 4
        %v2242 = vsel %vm2227, %v2223, %v2241
        %v2244 = vunpack.c.l.s4 1983009808
        %v2245 = vunpack.c.0.s8 %v2244
        %v2246 = vperm.slane %v2240, %v2245
        %v2248 = vunpack.c.l.s4 1983009808
        %v2249 = vunpack.c.0.s8 %v2248
        %v2250 = vperm.slane %v2242, %v2249
        %v2251 = vrot.slane %v2246, 4
        %v2252 = vsel %vm2227, %v2251, %v2234
        %v2253 = vrot.slane %v2234, 4
        %v2254 = vsel %vm2227, %v2246, %v2253
        %v2256 = vunpack.c.l.s4 1934713408
        %v2257 = vunpack.c.0.s8 %v2256
        %v2258 = vperm.slane %v2252, %v2257
        %v2260 = vunpack.c.l.s4 1934713408
        %v2261 = vunpack.c.0.s8 %v2260
        %v2262 = vperm.slane %v2254, %v2261
        %v2263 = vrot.slane %v2250, 4
        %v2264 = vsel %vm2227, %v2263, %v2238
        %v2265 = vrot.slane %v2238, 4
        %v2266 = vsel %vm2227, %v2250, %v2265
        %v2268 = vunpack.c.l.s4 1934713408
        %v2269 = vunpack.c.0.s8 %v2268
        %v2270 = vperm.slane %v2264, %v2269
        %v2272 = vunpack.c.l.s4 1934713408
        %v2273 = vunpack.c.0.s8 %v2272
        %v2274 = vperm.slane %v2266, %v2273
        %v2275 = vrot.slane %v2258, 4
        %v2276 = vsel %vm2227, 0.0, %v2275
        %v2277 = vrot.slane %v2262, 4
        %v2278 = vsel %vm2227, 0.0, %v2277
        %v2279 = vrot.slane %v2270, 4
        %v2280 = vsel %vm2227, 0.0, %v2279
        %v2281 = vrot.slane %v2274, 4
        %v2282 = vsel %vm2227, 0.0, %v2281
        %v2283 = vsel %vm2227, %v2277, %v2258
        %v2285 = vunpack.c.l.s4 1983009808
        %v2286 = vunpack.c.0.s8 %v2285
        %v2287 = vperm.slane %v2283, %v2286
        %v2288 = vrot.slane %v2278, 4
        %v2289 = vsel %vm2227, %v2288, %v2276
        %v2291 = vunpack.c.l.s4 1983009808
        %v2292 = vunpack.c.0.s8 %v2291
        %v2293 = vperm.slane %v2289, %v2292
        %v2294 = vsel %vm2227, %v2281, %v2270
        %v2296 = vunpack.c.l.s4 1983009808
        %v2297 = vunpack.c.0.s8 %v2296
        %v2298 = vperm.slane %v2294, %v2297
        %v2299 = vrot.slane %v2282, 4
        %v2300 = vsel %vm2227, %v2299, %v2280
        %v2302 = vunpack.c.l.s4 1983009808
        %v2303 = vunpack.c.0.s8 %v2302
        %v2304 = vperm.slane %v2300, %v2303
        %v2305 = vrot.slane %v2293, 4
        %v2306 = vsel %vm2227, %v2305, %v2287
        %v2307 = vrot.slane %v2287, 4
        %v2308 = vsel %vm2227, %v2293, %v2307
        %v2310 = vunpack.c.l.s4 1934713408
        %v2311 = vunpack.c.0.s8 %v2310
        %v2312 = vperm.slane %v2306, %v2311
        %v2314 = vunpack.c.l.s4 1934713408
        %v2315 = vunpack.c.0.s8 %v2314
        %v2316 = vperm.slane %v2308, %v2315
        %v2317 = vrot.slane %v2304, 4
        %v2318 = vsel %vm2227, %v2317, %v2298
        %v2319 = vrot.slane %v2298, 4
        %v2320 = vsel %vm2227, %v2304, %v2319
        %v2322 = vunpack.c.l.s4 1934713408
        %v2323 = vunpack.c.0.s8 %v2322
        %v2324 = vperm.slane %v2318, %v2323
        %v2326 = vunpack.c.l.s4 1934713408
        %v2327 = vunpack.c.0.s8 %v2326
        %v2328 = vperm.slane %v2320, %v2327
        %v2329 = vrot.slane %v2324, 4
        %v2330 = vsel %vm2227, %v2329, %v2312
        %v2331 = vrot.slane %v2312, 4
        %v2332 = vsel %vm2227, %v2324, %v2331
        %v2333 = vrot.slane %v2328, 4
        %v2334 = vsel %vm2227, %v2333, %v2316
        %v2335 = vrot.slane %v2316, 4
        %v2336 = vsel %vm2227, %v2328, %v2335
        %2338 = vrot.lane.b32.xlu0 %v2332, 8
        %v2339 = vpop.permute.xlu0 %2338
        %2342 = vrot.lane.b32.xlu0 %v2334, 16
        %v2343 = vpop.permute.xlu0 %2342
        %2346 = vrot.lane.b32.xlu0 %v2336, 24
        %v2347 = vpop.permute.xlu0 %2346
        %v2349 = vsel %vm1997, %v2330, %v2339
        %v2350 = vsel %vm2089, %v2349, %v2343
        %vm2351 = vcmask 195584
        %v2352 = vsel %vm2351, %v2350, %v2347
        %v2353 = vpack.c.bf16 %v2352, %v2352
        %v2354 = vld [vmem:[%s14] sm:$0xf]
        %v2355 = vld [vmem:[%s14 + $0x4] sm:$0xf]
        %v2356 = vld [vmem:[%s14 + $0x8] sm:$0xf]
        %v2357 = vld [vmem:[%s14 + $0xc] sm:$0xf]
        %v2358 = vld [vmem:[%s15] sm:$0x1]
        %v2360 = vperm.slane %v2358, 0
        %v2366 = vunpack.c.l.b16 %v2354
        %v2367 = vunpack.c.l.b16 %v2355
        %v2368 = vunpack.c.l.b16 %v2356
        %v2369 = vunpack.c.l.b16 %v2357
        %v2370 = vpack.c.b16 %v2367, %v2366
        %v2371 = vpack.c.b16 %v2369, %v2368
        %v2375 = vsel %vm1835, %v2353, 0
        %2377 = vmatpush.bf16.msra.mxu0 0
        %2378 = vmatpush.bf16.msra.mxu0 0
        %2379 = vmatpush.bf16.msra.mxu0 0
        %2380 = vmatpush.bf16.msra.mxu0 0
        %2381 = vmatpush.bf16.msra.mxu0 0
        %2382 = vmatpush.bf16.msra.mxu0 0
        %2383 = vmatpush.bf16.msra.mxu0 %v2371
        %2384 = vmatpush.bf16.msra.mxu0 %v2370
        %2385 = vmatmul.bf16.gmra.mxu0 %v2375
        %v2386 = vpop.f32.mrf.mxu0
        %v2387 = vadd.f32 %v2360, %v2386
        %v2388 = vpop.f32.mrf.mxu0
        %2389 = vdwg.mxu0
        %v2390 = vadd.f32 %v1809, %v2387
        %v2391 = vsel %vm1835, %v2390, 0.0
        %2392 = vadd.xlane.f32.xlu0 %v2391
        %v2393 = vpop.xlane.xlu0 %2392
        %v2394 = vrcp.pop 32.0
        %v2395 = vmul.f32 32.0, %v2394
        %v2396 = vsub.f32 1.0, %v2395
        %v2397 = vmul.f32 %v2394, %v2396
        %v2398 = vadd.f32 %v2394, %v2397
        %vm2399 = vweird.f32 %v2394
        %v2400 = vsel %vm2399, %v2394, %v2398
        %v2401 = vmul.f32 %v2393, %v2400
        %v2402 = vsub.f32 %v2390, %v2401
        %v2403 = vmul.f32 %v2402, %v2402
        %v2404 = vsel %vm1835, %v2403, 0.0
        %2405 = vadd.xlane.f32.xlu0 %v2404
        %v2406 = vpop.xlane.xlu0 %2405
        %v2407 = vmul.f32 %v2406, %v2400
        %v2408 = vadd.f32 %v2407, 1e-05
        %v2409 = vrsqrt.pop %v2408
        %v2410 = vmul.f32 %v2409, %v2408
        %v2411 = vmul.f32 %v2410, %v2409
        %v2412 = vmul.f32 0.5, %v2411
        %v2413 = vsub.f32 1.5, %v2412
        %v2414 = vmul.f32 %v2409, %v2413
        %vm2415 = vweird.f32 %v2408
        %vm2416 = vweird.f32 %v2409
        %vm2417 = vmor %vm2415, %vm2416
        %v2418 = vsel %vm2417, %v2409, %v2414
        %v2419 = vmul.f32 %v2402, %v2418
        %v2420 = vld [vmem:[%s4] sm:$0x1]
        %v2422 = vperm.slane %v2420, 0
        %v2424 = vmul.f32 %v2419, %v2422
        %v2425 = vld [vmem:[%s5] sm:$0x1]
        %v2427 = vperm.slane %v2425, 0
        %v2429 = vadd.f32 %v2424, %v2427
        %v2430 = vpack.c.bf16 %v2429, %v2429
        %v2431 = vld [vmem:[%s16] sm:$0xff]
        %v2432 = vld [vmem:[%s16 + $0x8] sm:$0xff]
        %v2433 = vld [vmem:[%s16 + $0x10] sm:$0xff]
        %v2434 = vld [vmem:[%s16 + $0x18] sm:$0xff]
        %v2439 = vunpack.c.l.b16 %v2431
        %v2440 = vunpack.c.h.b16 %v2431
        %v2441 = vunpack.c.l.b16 %v2432
        %v2442 = vunpack.c.h.b16 %v2432
        %v2443 = vunpack.c.l.b16 %v2433
        %v2444 = vunpack.c.h.b16 %v2433
        %v2445 = vunpack.c.l.b16 %v2434
        %v2446 = vunpack.c.h.b16 %v2434
        %v2447 = vpack.c.b16 %v2441, %v2439
        %v2448 = vpack.c.b16 %v2442, %v2440
        %v2449 = vpack.c.b16 %v2445, %v2443
        %v2450 = vpack.c.b16 %v2446, %v2444
        %v2456 = vsel %vm1835, %v2430, 0
        %2458 = vmatpush.bf16.msra.mxu0 0
        %2459 = vmatpush.bf16.msra.mxu0 0
        %2460 = vmatpush.bf16.msra.mxu0 0
        %2461 = vmatpush.bf16.msra.mxu0 0
        %2462 = vmatpush.bf16.msra.mxu0 0
        %2463 = vmatpush.bf16.msra.mxu0 0
        %2464 = vmatpush.bf16.msra.mxu0 %v2449
        %2465 = vmatpush.bf16.msra.mxu0 %v2447
        %2466 = vmatmul.bf16.gmra.mxu0 %v2456
        %v2467 = vpop.f32.mrf.mxu0
        %v2468 = vadd.f32 0.0, %v2467
        %v2469 = vpop.f32.mrf.mxu0
        %2470 = vdwg.mxu0
        %2471 = vmatpush.bf16.msra.mxu0 0
        %2472 = vmatpush.bf16.msra.mxu0 0
        %2473 = vmatpush.bf16.msra.mxu0 0
        %2474 = vmatpush.bf16.msra.mxu0 0
        %2475 = vmatpush.bf16.msra.mxu0 0
        %2476 = vmatpush.bf16.msra.mxu0 0
        %2477 = vmatpush.bf16.msra.mxu0 %v2450
        %2478 = vmatpush.bf16.msra.mxu0 %v2448
        %2479 = vmatmul.bf16.gmra.mxu0 %v2456
        %v2480 = vpop.f32.mrf.mxu0
        %v2481 = vadd.f32 0.0, %v2480
        %v2482 = vpop.f32.mrf.mxu0
        %2483 = vdwg.mxu0
        %v2484 = vld [vmem:[#allocation5] sm:$0xf]
        %v2485 = vld [vmem:[#allocation5 + $0x4] sm:$0xf]
        %v2486 = vld [vmem:[#allocation5 + $0x8] sm:$0xf]
        %v2487 = vld [vmem:[#allocation5 + $0xc] sm:$0xf]
        %v2488 = vld [vmem:[#allocation6] sm:$0xf]
        %v2489 = vld [vmem:[#allocation6 + $0x4] sm:$0xf]
        %v2490 = vld [vmem:[#allocation6 + $0x8] sm:$0xf]
        %v2491 = vld [vmem:[#allocation6 + $0xc] sm:$0xf]
        %v2492 = vmul.f32 %v2468, 0.125
        %v2493 = vmul.f32 %v2481, 0.125
        %v2494 = vpack.c.bf16 %v2493, %v2492
        %v2496 = vrot.slane %v2494, 4
        %2497 = vrot.lane.b32.xlu0 %v2494, 64
        %v2498 = vpop.permute.xlu0 %2497
        %v2499 = vrot.slane %v2498, 4
        %v2502 = vpack.i.b16 %v2498, %v2494
        %v2503 = vshrl.u32 %v2494, 16
        %v2504 = vshrl.u32 %v2498, 16
        %v2505 = vpack.i.b16 %v2504, %v2503
        %v2508 = vpack.i.b16 %v2499, %v2496
        %v2509 = vshrl.u32 %v2496, 16
        %v2510 = vshrl.u32 %v2499, 16
        %v2511 = vpack.i.b16 %v2510, %v2509
        %v2514 = vunpack.c.l.s4 1983009808
        %v2515 = vunpack.c.0.s8 %v2514
        %v2516 = vperm.slane %v2502, %v2515
        %v2519 = vunpack.c.l.s4 1983009808
        %v2520 = vunpack.c.0.s8 %v2519
        %v2521 = vperm.slane %v2508, %v2520
        %v2522 = vrot.slane %v2521, 4
        %v2523 = vsel %vm1900, %v2522, %v2516
        %v2524 = vrot.slane %v2516, 4
        %v2525 = vsel %vm1900, %v2521, %v2524
        %v2527 = vunpack.c.l.s4 1934713408
        %v2528 = vunpack.c.0.s8 %v2527
        %v2529 = vperm.slane %v2523, %v2528
        %v2531 = vunpack.c.l.s4 1934713408
        %v2532 = vunpack.c.0.s8 %v2531
        %v2533 = vperm.slane %v2525, %v2532
        %v2534 = vrot.slane %v2529, 4
        %v2535 = vsel %vm1900, 0, %v2534
        %v2536 = vrot.slane %v2533, 4
        %v2537 = vsel %vm1900, 0, %v2536
        %v2540 = vunpack.c.l.s4 1983009808
        %v2541 = vunpack.c.0.s8 %v2540
        %v2542 = vperm.slane %v2505, %v2541
        %v2545 = vunpack.c.l.s4 1983009808
        %v2546 = vunpack.c.0.s8 %v2545
        %v2547 = vperm.slane %v2511, %v2546
        %v2548 = vrot.slane %v2547, 4
        %v2549 = vsel %vm1900, %v2548, %v2542
        %v2550 = vrot.slane %v2542, 4
        %v2551 = vsel %vm1900, %v2547, %v2550
        %v2553 = vunpack.c.l.s4 1934713408
        %v2554 = vunpack.c.0.s8 %v2553
        %v2555 = vperm.slane %v2549, %v2554
        %v2557 = vunpack.c.l.s4 1934713408
        %v2558 = vunpack.c.0.s8 %v2557
        %v2559 = vperm.slane %v2551, %v2558
        %v2560 = vrot.slane %v2555, 4
        %v2561 = vsel %vm1900, 0, %v2560
        %v2562 = vrot.slane %v2559, 4
        %v2563 = vsel %vm1900, 0, %v2562
        %v2564 = vsel %vm1900, %v2536, %v2529
        %v2566 = vunpack.c.l.s4 1983009808
        %v2567 = vunpack.c.0.s8 %v2566
        %v2568 = vperm.slane %v2564, %v2567
        %v2569 = vrot.slane %v2537, 4
        %v2570 = vsel %vm1900, %v2569, %v2535
        %v2572 = vunpack.c.l.s4 1983009808
        %v2573 = vunpack.c.0.s8 %v2572
        %v2574 = vperm.slane %v2570, %v2573
        %v2575 = vrot.slane %v2574, 4
        %v2576 = vsel %vm1900, %v2575, %v2568
        %v2578 = vunpack.c.l.s4 1934713408
        %v2579 = vunpack.c.0.s8 %v2578
        %v2580 = vperm.slane %v2576, %v2579
        %v2581 = vrot.slane %v2580, 4
        %v2582 = vsel %vm1900, 0, %v2581
        %v2583 = vsel %vm1900, %v2562, %v2555
        %v2585 = vunpack.c.l.s4 1983009808
        %v2586 = vunpack.c.0.s8 %v2585
        %v2587 = vperm.slane %v2583, %v2586
        %v2588 = vrot.slane %v2563, 4
        %v2589 = vsel %vm1900, %v2588, %v2561
        %v2591 = vunpack.c.l.s4 1983009808
        %v2592 = vunpack.c.0.s8 %v2591
        %v2593 = vperm.slane %v2589, %v2592
        %v2594 = vrot.slane %v2593, 4
        %v2595 = vsel %vm1900, %v2594, %v2587
        %v2597 = vunpack.c.l.s4 1934713408
        %v2598 = vunpack.c.0.s8 %v2597
        %v2599 = vperm.slane %v2595, %v2598
        %v2600 = vrot.slane %v2599, 4
        %v2601 = vsel %vm1900, 0, %v2600
        %v2604 = vpack.i.b16 %v2599, %v2580
        %v2605 = vshrl.u32 %v2580, 16
        %v2606 = vshrl.u32 %v2599, 16
        %v2607 = vpack.i.b16 %v2606, %v2605
        %v2610 = vpack.i.b16 %v2601, %v2582
        %v2611 = vshrl.u32 %v2582, 16
        %v2612 = vshrl.u32 %v2601, 16
        %v2613 = vpack.i.b16 %v2612, %v2611
        %vm2614 = vcmask 523264
        %v2616 = vsel %vm2614, %v2604, 0
        %v2619 = vsel %vm2614, %v2484, 0
        %2621 = vmatpush.bf16.xpose.msra.mxu0 0
        %2622 = vmatpush.bf16.xpose.msra.mxu0 0
        %2623 = vmatpush.bf16.xpose.msra.mxu0 0
        %2624 = vmatpush.bf16.xpose.msra.mxu0 0
        %2625 = vmatpush.bf16.xpose.msra.mxu0 0
        %2626 = vmatpush.bf16.xpose.msra.mxu0 0
        %2627 = vmatpush.bf16.xpose.msra.mxu0 0
        %2628 = vmatpush.bf16.xpose.msra.mxu0 %v2619
        %2629 = vmatmul.bf16.gmra.mxu0 %v2616
        %v2630 = vpop.f32.mrf.mxu0
        %v2631 = vadd.f32 0.0, %v2630
        %v2632 = vpop.f32.mrf.mxu0
        %2633 = vdwg.mxu0
        %v2635 = vsel %vm2614, %v2607, 0
        %v2638 = vsel %vm2614, %v2485, 0
        %2640 = vmatpush.bf16.xpose.msra.mxu0 0
        %2641 = vmatpush.bf16.xpose.msra.mxu0 0
        %2642 = vmatpush.bf16.xpose.msra.mxu0 0
        %2643 = vmatpush.bf16.xpose.msra.mxu0 0
        %2644 = vmatpush.bf16.xpose.msra.mxu0 0
        %2645 = vmatpush.bf16.xpose.msra.mxu0 0
        %2646 = vmatpush.bf16.xpose.msra.mxu0 0
        %2647 = vmatpush.bf16.xpose.msra.mxu0 %v2638
        %2648 = vmatmul.bf16.gmra.mxu0 %v2635
        %v2649 = vpop.f32.mrf.mxu0
        %v2650 = vadd.f32 0.0, %v2649
        %v2651 = vpop.f32.mrf.mxu0
        %2652 = vdwg.mxu0
        %v2654 = vsel %vm2614, %v2610, 0
        %v2657 = vsel %vm2614, %v2486, 0
        %2659 = vmatpush.bf16.xpose.msra.mxu0 0
        %2660 = vmatpush.bf16.xpose.msra.mxu0 0
        %2661 = vmatpush.bf16.xpose.msra.mxu0 0
        %2662 = vmatpush.bf16.xpose.msra.mxu0 0
        %2663 = vmatpush.bf16.xpose.msra.mxu0 0
        %2664 = vmatpush.bf16.xpose.msra.mxu0 0
        %2665 = vmatpush.bf16.xpose.msra.mxu0 0
        %2666 = vmatpush.bf16.xpose.msra.mxu0 %v2657
        %2667 = vmatmul.bf16.gmra.mxu0 %v2654
        %v2668 = vpop.f32.mrf.mxu0
        %v2669 = vadd.f32 0.0, %v2668
        %v2670 = vpop.f32.mrf.mxu0
        %2671 = vdwg.mxu0
        %v2673 = vsel %vm2614, %v2613, 0
        %v2676 = vsel %vm2614, %v2487, 0
        %2678 = vmatpush.bf16.xpose.msra.mxu0 0
        %2679 = vmatpush.bf16.xpose.msra.mxu0 0
        %2680 = vmatpush.bf16.xpose.msra.mxu0 0
        %2681 = vmatpush.bf16.xpose.msra.mxu0 0
        %2682 = vmatpush.bf16.xpose.msra.mxu0 0
        %2683 = vmatpush.bf16.xpose.msra.mxu0 0
        %2684 = vmatpush.bf16.xpose.msra.mxu0 0
        %2685 = vmatpush.bf16.xpose.msra.mxu0 %v2676
        %2686 = vmatmul.bf16.gmra.mxu0 %v2673
        %v2687 = vpop.f32.mrf.mxu0
        %v2688 = vadd.f32 0.0, %v2687
        %v2689 = vpop.f32.mrf.mxu0
        %2690 = vdwg.mxu0
        %v2691 = vsel %vm1997, %v2631, -inf
        %2692 = vmax.xlane.f32.xlu0 %v2691
        %v2693 = vpop.xlane.xlu0 %2692
        %v2694 = vsel %vm1997, %v2650, -inf
        %2695 = vmax.xlane.f32.xlu0 %v2694
        %v2696 = vpop.xlane.xlu0 %2695
        %v2697 = vsel %vm1997, %v2669, -inf
        %2698 = vmax.xlane.f32.xlu0 %v2697
        %v2699 = vpop.xlane.xlu0 %2698
        %v2700 = vsel %vm1997, %v2688, -inf
        %2701 = vmax.xlane.f32.xlu0 %v2700
        %v2702 = vpop.xlane.xlu0 %2701
        %v2703 = vsub.f32 %v2631, %v2693
        %v2704 = vsub.f32 %v2650, %v2696
        %v2705 = vsub.f32 %v2669, %v2699
        %v2706 = vsub.f32 %v2688, %v2702
        %v2707 = vmul.f32 %v2703, 1.442695
        %v2708 = vpow.pop %v2707
        %v2709 = vmul.f32 %v2704, 1.442695
        %v2710 = vpow.pop %v2709
        %v2711 = vmul.f32 %v2705, 1.442695
        %v2712 = vpow.pop %v2711
        %v2713 = vmul.f32 %v2706, 1.442695
        %v2714 = vpow.pop %v2713
        %v2715 = vsel %vm1997, %v2708, 0.0
        %2716 = vadd.xlane.f32.xlu0 %v2715
        %v2717 = vpop.xlane.xlu0 %2716
        %v2718 = vsel %vm1997, %v2710, 0.0
        %2719 = vadd.xlane.f32.xlu0 %v2718
        %v2720 = vpop.xlane.xlu0 %2719
        %v2721 = vsel %vm1997, %v2712, 0.0
        %2722 = vadd.xlane.f32.xlu0 %v2721
        %v2723 = vpop.xlane.xlu0 %2722
        %v2724 = vsel %vm1997, %v2714, 0.0
        %2725 = vadd.xlane.f32.xlu0 %v2724
        %v2726 = vpop.xlane.xlu0 %2725
        %v2727 = vrcp.pop %v2717
        %v2728 = vrcp.pop %v2720
        %v2729 = vrcp.pop %v2723
        %v2730 = vrcp.pop %v2726
        %v2731 = vmul.f32 %v2708, %v2727
        %v2732 = vmul.f32 %v2710, %v2728
        %v2733 = vmul.f32 %v2712, %v2729
        %v2734 = vmul.f32 %v2714, %v2730
        %v2735 = vpack.c.bf16 %v2731, %v2731
        %v2736 = vpack.c.bf16 %v2732, %v2732
        %v2737 = vpack.c.bf16 %v2733, %v2733
        %v2738 = vpack.c.bf16 %v2734, %v2734
        %v2740 = vsel %vm1997, %v2735, 0
        %vm2742 = vcmask 1043456
        %v2744 = vsel %vm2742, %v2488, 0
        %2746 = vmatpush.bf16.msra.mxu0 0
        %2747 = vmatpush.bf16.msra.mxu0 0
        %2748 = vmatpush.bf16.msra.mxu0 0
        %2749 = vmatpush.bf16.msra.mxu0 0
        %2750 = vmatpush.bf16.msra.mxu0 0
        %2751 = vmatpush.bf16.msra.mxu0 0
        %2752 = vmatpush.bf16.msra.mxu0 0
        %2753 = vmatpush.bf16.msra.mxu0 %v2744
        %2754 = vmatmul.bf16.gmra.mxu0 %v2740
        %v2755 = vpop.f32.mrf.mxu0
        %v2756 = vadd.f32 0.0, %v2755
        %v2757 = vpop.f32.mrf.mxu0
        %2758 = vdwg.mxu0
        %v2760 = vsel %vm1997, %v2736, 0
        %v2763 = vsel %vm2742, %v2489, 0
        %2765 = vmatpush.bf16.msra.mxu0 0
        %2766 = vmatpush.bf16.msra.mxu0 0
        %2767 = vmatpush.bf16.msra.mxu0 0
        %2768 = vmatpush.bf16.msra.mxu0 0
        %2769 = vmatpush.bf16.msra.mxu0 0
        %2770 = vmatpush.bf16.msra.mxu0 0
        %2771 = vmatpush.bf16.msra.mxu0 0
        %2772 = vmatpush.bf16.msra.mxu0 %v2763
        %2773 = vmatmul.bf16.gmra.mxu0 %v2760
        %v2774 = vpop.f32.mrf.mxu0
        %v2775 = vadd.f32 0.0, %v2774
        %v2776 = vpop.f32.mrf.mxu0
        %2777 = vdwg.mxu0
        %v2779 = vsel %vm1997, %v2737, 0
        %v2782 = vsel %vm2742, %v2490, 0
        %2784 = vmatpush.bf16.msra.mxu0 0
        %2785 = vmatpush.bf16.msra.mxu0 0
        %2786 = vmatpush.bf16.msra.mxu0 0
        %2787 = vmatpush.bf16.msra.mxu0 0
        %2788 = vmatpush.bf16.msra.mxu0 0
        %2789 = vmatpush.bf16.msra.mxu0 0
        %2790 = vmatpush.bf16.msra.mxu0 0
        %2791 = vmatpush.bf16.msra.mxu0 %v2782
        %2792 = vmatmul.bf16.gmra.mxu0 %v2779
        %v2793 = vpop.f32.mrf.mxu0
        %v2794 = vadd.f32 0.0, %v2793
        %v2795 = vpop.f32.mrf.mxu0
        %2796 = vdwg.mxu0
        %v2798 = vsel %vm1997, %v2738, 0
        %v2801 = vsel %vm2742, %v2491, 0
        %2803 = vmatpush.bf16.msra.mxu0 0
        %2804 = vmatpush.bf16.msra.mxu0 0
        %2805 = vmatpush.bf16.msra.mxu0 0
        %2806 = vmatpush.bf16.msra.mxu0 0
        %2807 = vmatpush.bf16.msra.mxu0 0
        %2808 = vmatpush.bf16.msra.mxu0 0
        %2809 = vmatpush.bf16.msra.mxu0 0
        %2810 = vmatpush.bf16.msra.mxu0 %v2801
        %2811 = vmatmul.bf16.gmra.mxu0 %v2798
        %v2812 = vpop.f32.mrf.mxu0
        %v2813 = vadd.f32 0.0, %v2812
        %v2814 = vpop.f32.mrf.mxu0
        %2815 = vdwg.mxu0
        %v2816 = vrot.slane %v2794, 4
        %v2817 = vsel %vm2227, %v2816, %v2756
        %v2818 = vrot.slane %v2756, 4
        %v2819 = vsel %vm2227, %v2794, %v2818
        %v2821 = vunpack.c.l.s4 1983009808
        %v2822 = vunpack.c.0.s8 %v2821
        %v2823 = vperm.slane %v2817, %v2822
        %v2825 = vunpack.c.l.s4 1983009808
        %v2826 = vunpack.c.0.s8 %v2825
        %v2827 = vperm.slane %v2819, %v2826
        %v2828 = vrot.slane %v2813, 4
        %v2829 = vsel %vm2227, %v2828, %v2775
        %v2830 = vrot.slane %v2775, 4
        %v2831 = vsel %vm2227, %v2813, %v2830
        %v2833 = vunpack.c.l.s4 1983009808
        %v2834 = vunpack.c.0.s8 %v2833
        %v2835 = vperm.slane %v2829, %v2834
        %v2837 = vunpack.c.l.s4 1983009808
        %v2838 = vunpack.c.0.s8 %v2837
        %v2839 = vperm.slane %v2831, %v2838
        %v2840 = vrot.slane %v2835, 4
        %v2841 = vsel %vm2227, %v2840, %v2823
        %v2842 = vrot.slane %v2823, 4
        %v2843 = vsel %vm2227, %v2835, %v2842
        %v2845 = vunpack.c.l.s4 1934713408
        %v2846 = vunpack.c.0.s8 %v2845
        %v2847 = vperm.slane %v2841, %v2846
        %v2849 = vunpack.c.l.s4 1934713408
        %v2850 = vunpack.c.0.s8 %v2849
        %v2851 = vperm.slane %v2843, %v2850
        %v2852 = vrot.slane %v2839, 4
        %v2853 = vsel %vm2227, %v2852, %v2827
        %v2854 = vrot.slane %v2827, 4
        %v2855 = vsel %vm2227, %v2839, %v2854
        %v2857 = vunpack.c.l.s4 1934713408
        %v2858 = vunpack.c.0.s8 %v2857
        %v2859 = vperm.slane %v2853, %v2858
        %v2861 = vunpack.c.l.s4 1934713408
        %v2862 = vunpack.c.0.s8 %v2861
        %v2863 = vperm.slane %v2855, %v2862
        %v2864 = vrot.slane %v2847, 4
        %v2865 = vsel %vm2227, 0.0, %v2864
        %v2866 = vrot.slane %v2851, 4
        %v2867 = vsel %vm2227, 0.0, %v2866
        %v2868 = vrot.slane %v2859, 4
        %v2869 = vsel %vm2227, 0.0, %v2868
        %v2870 = vrot.slane %v2863, 4
        %v2871 = vsel %vm2227, 0.0, %v2870
        %v2872 = vsel %vm2227, %v2866, %v2847
        %v2874 = vunpack.c.l.s4 1983009808
        %v2875 = vunpack.c.0.s8 %v2874
        %v2876 = vperm.slane %v2872, %v2875
        %v2877 = vrot.slane %v2867, 4
        %v2878 = vsel %vm2227, %v2877, %v2865
        %v2880 = vunpack.c.l.s4 1983009808
        %v2881 = vunpack.c.0.s8 %v2880
        %v2882 = vperm.slane %v2878, %v2881
        %v2883 = vsel %vm2227, %v2870, %v2859
        %v2885 = vunpack.c.l.s4 1983009808
        %v2886 = vunpack.c.0.s8 %v2885
        %v2887 = vperm.slane %v2883, %v2886
        %v2888 = vrot.slane %v2871, 4
        %v2889 = vsel %vm2227, %v2888, %v2869
        %v2891 = vunpack.c.l.s4 1983009808
        %v2892 = vunpack.c.0.s8 %v2891
        %v2893 = vperm.slane %v2889, %v2892
        %v2894 = vrot.slane %v2882, 4
        %v2895 = vsel %vm2227, %v2894, %v2876
        %v2896 = vrot.slane %v2876, 4
        %v2897 = vsel %vm2227, %v2882, %v2896
        %v2899 = vunpack.c.l.s4 1934713408
        %v2900 = vunpack.c.0.s8 %v2899
        %v2901 = vperm.slane %v2895, %v2900
        %v2903 = vunpack.c.l.s4 1934713408
        %v2904 = vunpack.c.0.s8 %v2903
        %v2905 = vperm.slane %v2897, %v2904
        %v2906 = vrot.slane %v2893, 4
        %v2907 = vsel %vm2227, %v2906, %v2887
        %v2908 = vrot.slane %v2887, 4
        %v2909 = vsel %vm2227, %v2893, %v2908
        %v2911 = vunpack.c.l.s4 1934713408
        %v2912 = vunpack.c.0.s8 %v2911
        %v2913 = vperm.slane %v2907, %v2912
        %v2915 = vunpack.c.l.s4 1934713408
        %v2916 = vunpack.c.0.s8 %v2915
        %v2917 = vperm.slane %v2909, %v2916
        %v2918 = vrot.slane %v2913, 4
        %v2919 = vsel %vm2227, %v2918, %v2901
        %v2920 = vrot.slane %v2901, 4
        %v2921 = vsel %vm2227, %v2913, %v2920
        %v2922 = vrot.slane %v2917, 4
        %v2923 = vsel %vm2227, %v2922, %v2905
        %v2924 = vrot.slane %v2905, 4
        %v2925 = vsel %vm2227, %v2917, %v2924
        %2927 = vrot.lane.b32.xlu0 %v2921, 64
        %v2928 = vpop.permute.xlu0 %2927
        %2931 = vrot.lane.b32.xlu0 %v2925, 64
        %v2932 = vpop.permute.xlu0 %2931
        %v2934 = vsel %vm2614, %v2919, %v2928
        %v2935 = vsel %vm2614, %v2923, %v2932
        %v2936 = vpack.c.bf16 %v2934, %v2934
        %v2937 = vpack.c.bf16 %v2935, %v2935
        %v2938 = vld [vmem:[%s19] sm:$0xf]
        %v2939 = vld [vmem:[%s19 + $0x4] sm:$0xf]
        %v2940 = vld [vmem:[%s19 + $0x8] sm:$0xf]
        %v2941 = vld [vmem:[%s19 + $0xc] sm:$0xf]
        %v2942 = vld [vmem:[%s19 + $0x10] sm:$0xf]
        %v2943 = vld [vmem:[%s19 + $0x14] sm:$0xf]
        %v2944 = vld [vmem:[%s19 + $0x18] sm:$0xf]
        %v2945 = vld [vmem:[%s19 + $0x1c] sm:$0xf]
        %v2946 = vld [vmem:[%s19 + $0x20] sm:$0xf]
        %v2947 = vld [vmem:[%s19 + $0x24] sm:$0xf]
        %v2948 = vld [vmem:[%s19 + $0x28] sm:$0xf]
        %v2949 = vld [vmem:[%s19 + $0x2c] sm:$0xf]
        %v2950 = vld [vmem:[%s19 + $0x30] sm:$0xf]
        %v2951 = vld [vmem:[%s19 + $0x34] sm:$0xf]
        %v2952 = vld [vmem:[%s19 + $0x38] sm:$0xf]
        %v2953 = vld [vmem:[%s19 + $0x3c] sm:$0xf]
        %v2954 = vld [vmem:[%s19 + $0x40] sm:$0xf]
        %v2955 = vld [vmem:[%s19 + $0x44] sm:$0xf]
        %v2956 = vld [vmem:[%s19 + $0x48] sm:$0xf]
        %v2957 = vld [vmem:[%s19 + $0x4c] sm:$0xf]
        %v2958 = vld [vmem:[%s19 + $0x50] sm:$0xf]
        %v2959 = vld [vmem:[%s19 + $0x54] sm:$0xf]
        %v2960 = vld [vmem:[%s19 + $0x58] sm:$0xf]
        %v2961 = vld [vmem:[%s19 + $0x5c] sm:$0xf]
        %v2962 = vld [vmem:[%s19 + $0x60] sm:$0xf]
        %v2963 = vld [vmem:[%s19 + $0x64] sm:$0xf]
        %v2964 = vld [vmem:[%s19 + $0x68] sm:$0xf]
        %v2965 = vld [vmem:[%s19 + $0x6c] sm:$0xf]
        %v2966 = vld [vmem:[%s19 + $0x70] sm:$0xf]
        %v2967 = vld [vmem:[%s19 + $0x74] sm:$0xf]
        %v2968 = vld [vmem:[%s19 + $0x78] sm:$0xf]
        %v2969 = vld [vmem:[%s19 + $0x7c] sm:$0xf]
        %v2970 = vld [vmem:[%s20] sm:$0x1]
        %v2972 = vperm.slane %v2970, 0
        %v3006 = vunpack.c.l.b16 %v2938
        %v3007 = vunpack.c.l.b16 %v2939
        %v3008 = vunpack.c.l.b16 %v2940
        %v3009 = vunpack.c.l.b16 %v2941
        %v3010 = vunpack.c.l.b16 %v2942
        %v3011 = vunpack.c.l.b16 %v2943
        %v3012 = vunpack.c.l.b16 %v2944
        %v3013 = vunpack.c.l.b16 %v2945
        %v3014 = vunpack.c.l.b16 %v2946
        %v3015 = vunpack.c.l.b16 %v2947
        %v3016 = vunpack.c.l.b16 %v2948
        %v3017 = vunpack.c.l.b16 %v2949
        %v3018 = vunpack.c.l.b16 %v2950
        %v3019 = vunpack.c.l.b16 %v2951
        %v3020 = vunpack.c.l.b16 %v2952
        %v3021 = vunpack.c.l.b16 %v2953
        %v3022 = vunpack.c.l.b16 %v2954
        %v3023 = vunpack.c.l.b16 %v2955
        %v3024 = vunpack.c.l.b16 %v2956
        %v3025 = vunpack.c.l.b16 %v2957
        %v3026 = vunpack.c.l.b16 %v2958
        %v3027 = vunpack.c.l.b16 %v2959
        %v3028 = vunpack.c.l.b16 %v2960
        %v3029 = vunpack.c.l.b16 %v2961
        %v3030 = vunpack.c.l.b16 %v2962
        %v3031 = vunpack.c.l.b16 %v2963
        %v3032 = vunpack.c.l.b16 %v2964
        %v3033 = vunpack.c.l.b16 %v2965
        %v3034 = vunpack.c.l.b16 %v2966
        %v3035 = vunpack.c.l.b16 %v2967
        %v3036 = vunpack.c.l.b16 %v2968
        %v3037 = vunpack.c.l.b16 %v2969
        %v3038 = vpack.c.b16 %v3007, %v3006
        %v3039 = vpack.c.b16 %v3009, %v3008
        %v3040 = vpack.c.b16 %v3011, %v3010
        %v3041 = vpack.c.b16 %v3013, %v3012
        %v3042 = vpack.c.b16 %v3015, %v3014
        %v3043 = vpack.c.b16 %v3017, %v3016
        %v3044 = vpack.c.b16 %v3019, %v3018
        %v3045 = vpack.c.b16 %v3021, %v3020
        %v3046 = vpack.c.b16 %v3023, %v3022
        %v3047 = vpack.c.b16 %v3025, %v3024
        %v3048 = vpack.c.b16 %v3027, %v3026
        %v3049 = vpack.c.b16 %v3029, %v3028
        %v3050 = vpack.c.b16 %v3031, %v3030
        %v3051 = vpack.c.b16 %v3033, %v3032
        %v3052 = vpack.c.b16 %v3035, %v3034
        %v3053 = vpack.c.b16 %v3037, %v3036
        %3070 = vmatpush.bf16.msra.mxu0 %v3045
        %3071 = vmatpush.bf16.msra.mxu0 %v3044
        %3072 = vmatpush.bf16.msra.mxu0 %v3043
        %3073 = vmatpush.bf16.msra.mxu0 %v3042
        %3074 = vmatpush.bf16.msra.mxu0 %v3041
        %3075 = vmatpush.bf16.msra.mxu0 %v3040
        %3076 = vmatpush.bf16.msra.mxu0 %v3039
        %3077 = vmatpush.bf16.msra.mxu0 %v3038
        %3078 = vmatmul.bf16.gmra.mxu0 %v2936
        %v3079 = vpop.f32.mrf.mxu0
        %v3080 = vadd.f32 %v2972, %v3079
        %v3081 = vpop.f32.mrf.mxu0
        %3082 = vdwg.mxu0
        %3083 = vmatpush.bf16.msra.mxu0 %v3053
        %3084 = vmatpush.bf16.msra.mxu0 %v3052
        %3085 = vmatpush.bf16.msra.mxu0 %v3051
        %3086 = vmatpush.bf16.msra.mxu0 %v3050
        %3087 = vmatpush.bf16.msra.mxu0 %v3049
        %3088 = vmatpush.bf16.msra.mxu0 %v3048
        %3089 = vmatpush.bf16.msra.mxu0 %v3047
        %3090 = vmatpush.bf16.msra.mxu0 %v3046
        %3091 = vmatmul.bf16.gmra.mxu0 %v2937
        %v3092 = vpop.f32.mrf.mxu0
        %v3093 = vadd.f32 %v3080, %v3092
        %v3094 = vpop.f32.mrf.mxu0
        %3095 = vdwg.mxu0
        %v3096 = vadd.f32 %v2390, %v3093
        %v3097 = vsel %vm1835, %v3096, 0.0
        %3098 = vadd.xlane.f32.xlu0 %v3097
        %v3099 = vpop.xlane.xlu0 %3098
        %v3100 = vmul.f32 %v3099, %v2400
        %v3101 = vsub.f32 %v3096, %v3100
        %v3102 = vmul.f32 %v3101, %v3101
        %v3103 = vsel %vm1835, %v3102, 0.0
        %3104 = vadd.xlane.f32.xlu0 %v3103
        %v3105 = vpop.xlane.xlu0 %3104
        %v3106 = vmul.f32 %v3105, %v2400
        %v3107 = vadd.f32 %v3106, 1e-05
        %v3108 = vrsqrt.pop %v3107
        %v3109 = vmul.f32 %v3108, %v3107
        %v3110 = vmul.f32 %v3109, %v3108
        %v3111 = vmul.f32 0.5, %v3110
        %v3112 = vsub.f32 1.5, %v3111
        %v3113 = vmul.f32 %v3108, %v3112
        %vm3114 = vweird.f32 %v3107
        %vm3115 = vweird.f32 %v3108
        %vm3116 = vmor %vm3114, %vm3115
        %v3117 = vsel %vm3116, %v3108, %v3113
        %v3118 = vmul.f32 %v3101, %v3117
        %v3119 = vld [vmem:[%s6] sm:$0x1]
        %v3121 = vperm.slane %v3119, 0
        %v3123 = vmul.f32 %v3118, %v3121
        %v3124 = vld [vmem:[%s7] sm:$0x1]
        %v3126 = vperm.slane %v3124, 0
        %v3128 = vadd.f32 %v3123, %v3126
        %v3129 = vpack.c.bf16 %v3128, %v3128
        %v3130 = vld [vmem:[%s21] sm:$0xf]
        %v3131 = vld [vmem:[%s21 + $0x4] sm:$0xf]
        %v3132 = vld [vmem:[%s21 + $0x8] sm:$0xf]
        %v3133 = vld [vmem:[%s21 + $0xc] sm:$0xf]
        %v3134 = vld [vmem:[%s22] sm:$0x1]
        %v3136 = vperm.slane %v3134, 0
        %v3142 = vunpack.c.l.b16 %v3130
        %v3143 = vunpack.c.l.b16 %v3131
        %v3144 = vunpack.c.l.b16 %v3132
        %v3145 = vunpack.c.l.b16 %v3133
        %v3146 = vpack.c.b16 %v3143, %v3142
        %v3147 = vpack.c.b16 %v3145, %v3144
        %v3151 = vsel %vm1835, %v3129, 0
        %3153 = vmatpush.bf16.msra.mxu0 0
        %3154 = vmatpush.bf16.msra.mxu0 0
        %3155 = vmatpush.bf16.msra.mxu0 0
        %3156 = vmatpush.bf16.msra.mxu0 0
        %3157 = vmatpush.bf16.msra.mxu0 0
        %3158 = vmatpush.bf16.msra.mxu0 0
        %3159 = vmatpush.bf16.msra.mxu0 %v3147
        %3160 = vmatpush.bf16.msra.mxu0 %v3146
        %3161 = vmatmul.bf16.gmra.mxu0 %v3151
        %v3162 = vpop.f32.mrf.mxu0
        %v3163 = vadd.f32 %v3136, %v3162
        %v3164 = vpop.f32.mrf.mxu0
        %3165 = vdwg.mxu0
        %v3166 = vmul.f32 %v3163, 0.5
        %v3167 = vmul.f32 %v3163, 0.70710677
        %v3168 = vmul.f32 %v3167, %v3167
        %v3169 = vmin.f32 16.0, %v3168
        %v3170 = vmul.f32 %v3169, 2.1237322e-06
        %v3171 = vadd.f32 %v3170, 0.00028619796
        %v3172 = vmul.f32 %v3169, %v3171
        %v3173 = vadd.f32 %v3172, 0.0036580483
        %v3174 = vmul.f32 %v3169, %v3173
        %v3175 = vadd.f32 %v3174, 0.05243302
        %v3176 = vmul.f32 %v3169, %v3175
        %v3177 = vadd.f32 %v3176, 0.18741608
        %v3178 = vmul.f32 %v3169, %v3177
        %v3179 = vadd.f32 %v3178, 1.1283791
        %v3180 = vmul.f32 %v3167, %v3179
        %v3181 = vmul.f32 %v3169, 3.8918573e-05
        %v3182 = vadd.f32 %v3181, 0.001143296
        %v3183 = vmul.f32 %v3169, %v3182
        %v3184 = vadd.f32 %v3183, 0.014752088
        %v3185 = vmul.f32 %v3169, %v3184
        %v3186 = vadd.f32 %v3185, 0.112945676
        %v3187 = vmul.f32 %v3169, %v3186
        %v3188 = vadd.f32 %v3187, 0.4994258
        %v3189 = vmul.f32 %v3169, %v3188
        %v3190 = vadd.f32 %v3189, 1.0
        %v3191 = vrcp.pop %v3190
        %v3192 = vmul.f32 %v3190, %v3191
        %v3193 = vsub.f32 1.0, %v3192
        %v3194 = vmul.f32 %v3191, %v3193
        %v3195 = vadd.f32 %v3191, %v3194
        %vm3196 = vweird.f32 %v3190
        %vm3197 = vweird.f32 %v3191
        %vm3198 = vmor %vm3196, %vm3197
        %v3199 = vsel %vm3198, %v3191, %v3195
        %v3200 = vand.u32 2147483647, %v3190
        %vm3201 = vcmp.eq.f32.partialorder %v3200, 8.507059e+37
        %v3202 = vand.u32 %v3190, 2147483648
        %v3203 = vor.u32 1.1754944e-38, %v3202
        %v3204 = vsel %vm3201, %v3203, %v3199
        %v3205 = vmul.f32 %v3180, %v3204
        %v3206 = vmin.f32 %v3205, 1.0
        %v3207 = vmax.f32 %v3206, -1.0
        %v3208 = vadd.f32 %v3207, 1.0
        %v3209 = vmul.f32 %v3166, %v3208
        %v3210 = vpack.c.bf16 %v3209, %v3209
        %v3211 = vld [vmem:[%s23] sm:$0xf]
        %v3212 = vld [vmem:[%s23 + $0x4] sm:$0xf]
        %v3213 = vld [vmem:[%s23 + $0x8] sm:$0xf]
        %v3214 = vld [vmem:[%s23 + $0xc] sm:$0xf]
        %v3215 = vld [vmem:[%s23 + $0x10] sm:$0xf]
        %v3216 = vld [vmem:[%s23 + $0x14] sm:$0xf]
        %v3217 = vld [vmem:[%s23 + $0x18] sm:$0xf]
        %v3218 = vld [vmem:[%s23 + $0x1c] sm:$0xf]
        %v3219 = vld [vmem:[%s23 + $0x20] sm:$0xf]
        %v3220 = vld [vmem:[%s23 + $0x24] sm:$0xf]
        %v3221 = vld [vmem:[%s23 + $0x28] sm:$0xf]
        %v3222 = vld [vmem:[%s23 + $0x2c] sm:$0xf]
        %v3223 = vld [vmem:[%s23 + $0x30] sm:$0xf]
        %v3224 = vld [vmem:[%s23 + $0x34] sm:$0xf]
        %v3225 = vld [vmem:[%s23 + $0x38] sm:$0xf]
        %v3226 = vld [vmem:[%s23 + $0x3c] sm:$0xf]
        %v3227 = vld [vmem:[%s24] sm:$0x1]
        %v3229 = vperm.slane %v3227, 0
        %v3247 = vunpack.c.l.b16 %v3211
        %v3248 = vunpack.c.l.b16 %v3212
        %v3249 = vunpack.c.l.b16 %v3213
        %v3250 = vunpack.c.l.b16 %v3214
        %v3251 = vunpack.c.l.b16 %v3215
        %v3252 = vunpack.c.l.b16 %v3216
        %v3253 = vunpack.c.l.b16 %v3217
        %v3254 = vunpack.c.l.b16 %v3218
        %v3255 = vunpack.c.l.b16 %v3219
        %v3256 = vunpack.c.l.b16 %v3220
        %v3257 = vunpack.c.l.b16 %v3221
        %v3258 = vunpack.c.l.b16 %v3222
        %v3259 = vunpack.c.l.b16 %v3223
        %v3260 = vunpack.c.l.b16 %v3224
        %v3261 = vunpack.c.l.b16 %v3225
        %v3262 = vunpack.c.l.b16 %v3226
        %v3263 = vpack.c.b16 %v3248, %v3247
        %v3264 = vpack.c.b16 %v3250, %v3249
        %v3265 = vpack.c.b16 %v3252, %v3251
        %v3266 = vpack.c.b16 %v3254, %v3253
        %v3267 = vpack.c.b16 %v3256, %v3255
        %v3268 = vpack.c.b16 %v3258, %v3257
        %v3269 = vpack.c.b16 %v3260, %v3259
        %v3270 = vpack.c.b16 %v3262, %v3261
        %3279 = vmatpush.bf16.msra.mxu0 %v3270
        %3280 = vmatpush.bf16.msra.mxu0 %v3269
        %3281 = vmatpush.bf16.msra.mxu0 %v3268
        %3282 = vmatpush.bf16.msra.mxu0 %v3267
        %3283 = vmatpush.bf16.msra.mxu0 %v3266
        %3284 = vmatpush.bf16.msra.mxu0 %v3265
        %3285 = vmatpush.bf16.msra.mxu0 %v3264
        %3286 = vmatpush.bf16.msra.mxu0 %v3263
        %3287 = vmatmul.bf16.gmra.mxu0 %v3210
        %v3288 = vpop.f32.mrf.mxu0
        %v3289 = vadd.f32 %v3229, %v3288
        %v3290 = vpop.f32.mrf.mxu0
        %3291 = vdwg.mxu0
        %v3292 = vadd.f32 %v3096, %v3289
        %3293 = vst.msk [vmem:[%s784] sm:$0xff] %vm1835, %v3292
        %s3294 = sand.u32 %s596, 1
        %s3295 = scalar_lea.sflag [#allocation8], %s3294
        %s3296 = sand.u32 %s596, 1
        %s3297 = smul.addr %s3296, 8
        %s3298 = scalar_lea.vmem [#allocation7], %s3297
        // Predicated region
        $region125: #{tpu_custom_call.1} parent=119 // pred_check
          %p3299 = pneg %p606
        $region126: #{tpu_custom_call.1} parent=119 // pred_check_branch
          %3301 = sbr.rel (%p3299) target = $region128
        $region127: #{tpu_custom_call.1} parent=119 // pred_region
          %3303 = vsyncadd %s3295, 0
          %s3304 = smul.addr %s43, 2
          %s3305 = sadd.s32 %s44, %s3304
          %s3306 = smul.addr %s3305, 8
          %s3307 = scalar_lea.hbm %s25, %s3306
          %s3309 = sshll.u32 %s3298, 4
          %s3310 = int_to_ptr.vmem [resolvable:$true] %s3309
          %s3311 = sshll.u32 %s3307, 4
          %s3312 = int_to_ptr.hbm [resolvable:$true] %s3311
          %3314 = dma.vmem_to_hbm [thread:$0]  %s3310, 128, %s3312, %s3295
        $region128: #{tpu_custom_call.1} parent=119 // pred_fallthru
          _
      $region120: #{tpu_custom_call.1} parent=5 // pred_fallthru
        _
      %p3315 = scmp.le.s32.totalorder 2, %s34
      // Predicated region
      $region129: #{tpu_custom_call.1} parent=5 // pred_check
        %p3316 = pneg %p3315
      $region130: #{tpu_custom_call.1} parent=5 // pred_check_branch
        %3318 = sbr.rel (%p3316) target = $region132
      $region131: #{tpu_custom_call.1} parent=5 // pred_region
        %s3319 = ssub.s32 %s34, 2
        // Predicated region
        $region133: #{tpu_custom_call.1} parent=131 // pred_check
          %p3320 = pneg %p612
        $region134: #{tpu_custom_call.1} parent=131 // pred_check_branch
          %3322 = sbr.rel (%p3320) target = $region136
        $region135: #{tpu_custom_call.1} parent=131 // pred_region
          %s3323 = sand.u32 %s597, 1
          %s3324 = scalar_lea.sflag [#allocation8], %s3323
          %s3325 = sand.u32 %s597, 1
          %s3326 = smul.addr %s3325, 8
          %s3327 = scalar_lea.vmem [#allocation7], %s3326
          %3329 = dma.done %s3324, 128
        $region136: #{tpu_custom_call.1} parent=131 // pred_fallthru
          _
      $region132: #{tpu_custom_call.1} parent=5 // pred_fallthru
        _
    $region6: #{tpu_custom_call.1} parent=1 // loop_footer
      %s38 = sadd.s32 1, %s34
    $region7: #{tpu_custom_call.1} parent=1 // loop_footer_branch
      %33 = sbr.rel target = $region3
    $region8: #{tpu_custom_call.1} parent=1 // loop_exit
      _
    %3330 = vsyncpa [#allocation8], 1
    %s3331 = scalar_lea.sflag [#allocation8], 1
    %3332 = vsyncpa %s3331, 1

</llo_original>
